<compile_context>
chip_gen: v7x
topology: tpu7x:2x2x1
jax: 0.10.0
libtpu: 0.0.40
codegen_flags: <defaults>
</compile_context>

<pallas_src>
import jax
import jax.numpy as jnp
from jax.experimental import pallas as pl
from jax.experimental.pallas import tpu as pltpu


# ----------------------------------------------------------------------------
# Kernel: 5 dense layers, batch on lanes.
# ----------------------------------------------------------------------------
def cnn_m_kernel(x_ref, a1_ref, b1_ref, a2_ref, b2_ref, a3_ref, b3_ref,
                 fc1w_ref, fc1b_ref, fc2w_ref, fc2b_ref, out_ref):
    def layer(a_ref, b_ref, h, relu):
        # Activations cast to the weight dtype (f32 or bf16) for the MXU;
        # accumulation + bias add + ReLU stay f32 (VPU-safe on v5e).
        y = jnp.dot(a_ref[...], h.astype(a_ref.dtype),
                    preferred_element_type=jnp.float32) + b_ref[...]
        return jnp.maximum(y, 0.0) if relu else y

    # Layer 1 folds the batch->lane rotation into the matmul:
    # x block is (BT, L) in its natural (batch, lookback) layout; contracting
    # a1's dim 1 against x's dim 1 computes a1 @ x^T -> (C1*L, BT) with the
    # batch on lanes.  No host-side transpose pass over x is needed.
    x = x_ref[...]
    h = jax.lax.dot_general(
        a1_ref[...], x.astype(a1_ref.dtype),
        dimension_numbers=(((1,), (1,)), ((), ())),
        preferred_element_type=jnp.float32) + b1_ref[...]
    h = jnp.maximum(h, 0.0)                       # (C1*L, BT)   conv1 + ReLU

    h = layer(a2_ref, b2_ref, h, True)            # (C2*L, BT)   conv2 + ReLU
    h = layer(a3_ref, b3_ref, h, True)            # (C3*L, BT)   conv3 + ReLU (rows = c*L+t == flatten order)
    h = layer(fc1w_ref, fc1b_ref, h, True)        # (32, BT)     fc1 + ReLU (single matmul)
    out_ref[...] = layer(fc2w_ref, fc2b_ref, h, False)   # (Dout, BT) lane-dense store


# ----------------------------------------------------------------------------
# Batch-tile selection
# ----------------------------------------------------------------------------
def _round_up(n, m):
    return ((n + m - 1) // m) * m


def _pick_bt(batch, *, target=2048, min_tile=256):
    """Large tiles to amortize per-step overhead, but >=2 grid steps when the
    batch allows it (so v7x's two TensorCores both get work via the "parallel"
    axis).  target=2048 keeps the f32 live set (~12 MB) inside the 32 MiB
    scoped-VMEM default on v5e/v6e/v7x."""
    if batch <= min_tile:
        return min_tile
    half = -(-batch // 2)                       # cdiv(batch, 2)
    return max(min_tile, min(target, _round_up(half, min_tile)))


# ----------------------------------------------------------------------------
# Wrapper
# ----------------------------------------------------------------------------
def cnn_m_forward(x, kparams, *, bt=None):
    """x: (B, 1, L) float32. Returns (B, output_dim) float32."""
    a1, b1, a2, b2, a3, b3, fc1w, fc1b, fc2w, fc2b = kparams
    B = x.shape[0]
    L = x.shape[-1]
    dout = fc2w.shape[0]

    if bt is None:
        bt = _pick_bt(B)
    bt = _round_up(bt, 256)                      # lane-dense output blocks

    # (B, 1, L) -> (B, L): a pure reshape, no relayout / extra HBM pass.
    xk = x.reshape(B, L).astype(jnp.float32)
    nb = -(-B // bt)
    b_pad = nb * bt
    if b_pad != B:
        # Padded rows compute relu(bias) garbage in the padded lanes; it is
        # sliced off below. Intentional — do NOT replace with a masked store.
        xk = jnp.pad(xk, ((0, b_pad - B), (0, 0)))

    def const2d(arr):
        # Constant index_map -> block stays resident in VMEM, fetched once.
        return pl.BlockSpec(arr.shape, lambda i: (0, 0))

    weights = (a1, b1, a2, b2, a3, b3, fc1w, fc1b, fc2w, fc2b)

    out = pl.pallas_call(
        cnn_m_kernel,
        out_shape=jax.ShapeDtypeStruct((dout, b_pad), jnp.float32),
        grid=(nb,),
        in_specs=[pl.BlockSpec((bt, L), lambda i: (i, 0))]     # streamed x tiles
                 + [const2d(w) for w in weights],
        out_specs=pl.BlockSpec((dout, bt), lambda i: (0, i)),  # lane-dense
        compiler_params=pltpu.CompilerParams(
            dimension_semantics=("parallel",)),                # v7x: 2 TCs share tiles
    )(xk, *weights)
    return out[:, :B].T                          # (B, Dout); tiny (4 B/sample)


# ----------------------------------------------------------------------------
# Host-side parameter re-layout
# ----------------------------------------------------------------------------
def _conv_to_band(w, L):
    """(Cout, Cin, K) conv weight -> (Cout*L, Cin*L) banded 'same'-conv matrix.

    A[co*L + t, ci*L + s] = w[co, ci, s - t + K//2] inside the kernel window,
    else 0.  Matches PyTorch Conv1d with padding = K//2 (odd K; module default 3).
    """
    cout, cin, K = w.shape
    pad = K // 2
    t = jnp.arange(L)[:, None]
    s = jnp.arange(L)[None, :]
    k = s - t + pad                                           # (L, L)
    valid = (k >= 0) & (k < K)
    kc = jnp.clip(k, 0, K - 1)
    band = w[:, :, kc] * valid[None, None].astype(w.dtype)    # (Cout, Cin, L, L)
    return jnp.transpose(band, (0, 2, 1, 3)).reshape(cout * L, cin * L)


def to_kernel_layout(params, lookback, compute_dtype=jnp.float32):
    """compute_dtype=jnp.bfloat16 recommended on v6e/v7x (weights + MXU operands
    in bf16, f32 accumulation/biases); default f32 keeps the strict check."""
    w1, b1, w2, b2, w3, b3, fc1_w, fc1_b, fc2_w, fc2_b = params
    L = lookback

    def band_bias(w, b):
        a = _conv_to_band(w, L).astype(compute_dtype)
        bb = jnp.repeat(b, L).reshape(-1, 1).astype(jnp.float32)   # row = co*L + t
        return a, bb

    a1, bb1 = band_bias(w1, b1)
    a2, bb2 = band_bias(w2, b2)
    a3, bb3 = band_bias(w3, b3)
    # fc1_w columns are indexed c*L + t (PyTorch flatten order) == our row order,
    # so it is used unmodified.
    return (a1, bb1, a2, bb2, a3, bb3,
            fc1_w.astype(compute_dtype), fc1_b.reshape(-1, 1).astype(jnp.float32),
            fc2_w.astype(compute_dtype), fc2_b.reshape(-1, 1).astype(jnp.float32))


# ----------------------------------------------------------------------------
# PyTorch-shaped params + pure-JAX reference
# ----------------------------------------------------------------------------
def init_params(key, input_dim=1, output_dim=1, lookback=10,
                num_filters=16, kernel_size=3):
    ks = jax.random.split(key, 10)

    def uniform(k, shape, fan_in):
        bound = 1.0 / jnp.sqrt(jnp.float32(fan_in))
        return jax.random.uniform(k, shape, jnp.float32, -bound, bound)

    c1, c2, c3 = num_filters, 2 * num_filters, 4 * num_filters
    w1 = uniform(ks[0], (c1, input_dim, kernel_size), input_dim * kernel_size)
    b1 = uniform(ks[1], (c1,), input_dim * kernel_size)
    w2 = uniform(ks[2], (c2, c1, kernel_size), c1 * kernel_size)
    b2 = uniform(ks[3], (c2,), c1 * kernel_size)
    w3 = uniform(ks[4], (c3, c2, kernel_size), c2 * kernel_size)
    b3 = uniform(ks[5], (c3,), c2 * kernel_size)
    fc_in = c3 * lookback
    fc1_w = uniform(ks[6], (32, fc_in), fc_in)
    fc1_b = uniform(ks[7], (32,), fc_in)
    fc2_w = uniform(ks[8], (output_dim, 32), 32)
    fc2_b = uniform(ks[9], (output_dim,), 32)
    return (w1, b1, w2, b2, w3, b3, fc1_w, fc1_b, fc2_w, fc2_b)


def ref_forward(x, params):
    """Pure-JAX reference matching the PyTorch forward exactly."""
    w1, b1, w2, b2, w3, b3, fc1_w, fc1_b, fc2_w, fc2_b = params

    def conv_relu(h, w, b):
        pad = w.shape[-1] // 2
        y = jax.lax.conv_general_dilated(
            h, w, window_strides=(1,), padding=[(pad, pad)],
            dimension_numbers=('NCH', 'OIH', 'NCH'))
        return jnp.maximum(y + b[None, :, None], 0.0)

    h = x.reshape(x.shape[0], 1, -1)
    h = conv_relu(h, w1, b1)
    h = conv_relu(h, w2, b2)
    h = conv_relu(h, w3, b3)
    flat = h.reshape(h.shape[0], -1)                 # channel-major flatten
    z = jnp.maximum(flat @ fc1_w.T + fc1_b, 0.0)
    return z @ fc2_w.T + fc2_b                       # (B, output_dim)


if __name__ == "__main__":
    lookback = 10
    key = jax.random.PRNGKey(0)
    pkey, xkey1, xkey2 = jax.random.split(key, 3)

    params = init_params(pkey, lookback=lookback)

    # ---------- f32 compute path: strict tolerance ----------
    kparams_f32 = to_kernel_layout(params, lookback, compute_dtype=jnp.float32)

    # Small batch: single 256-wide tile (padded lanes compute garbage, sliced off).
    x_small = jax.random.normal(xkey1, (4, 1, lookback), jnp.float32)
    out_small = jax.block_until_ready(cnn_m_forward(x_small, kparams_f32))
    ref_small = ref_forward(x_small, params)
    assert out_small.shape == (4, 1), out_small.shape
    assert jnp.allclose(out_small, ref_small, atol=1e-4, rtol=1e-4), (out_small, ref_small)

    # Larger batch: bt = round_up(cdiv(300,2),256) = 256 -> 2 grid steps, so both
    # v7x TensorCores get a tile; also exercises tail padding.
    x_big = jax.random.normal(xkey2, (300, 1, lookback), jnp.float32)
    out_big = jax.block_until_ready(cnn_m_forward(x_big, kparams_f32))
    ref_big = ref_forward(x_big, params)
    assert out_big.shape == (300, 1), out_big.shape
    assert jnp.allclose(out_big, ref_big, atol=1e-4, rtol=1e-4)

    # ---------- bf16 weights/operands (recommended on v6e/v7x): loose tolerance ----------
    kparams_bf16 = to_kernel_layout(params, lookback, compute_dtype=jnp.bfloat16)
    out_bf16 = jax.block_until_ready(cnn_m_forward(x_big, kparams_bf16))
    assert out_bf16.shape == (300, 1), out_bf16.shape
    assert jnp.allclose(out_bf16, ref_big, atol=1e-1, rtol=1e-1)

    print("KERNEL_OK")
</pallas_src>

<mosaic_0001>
module attributes {stable_mosaic.version = 11 : i64} {
  func.func @cnn_m_kernel(%arg0: i32, %arg1: memref<256x10xf32, #tpu.memory_space<vmem>>, %arg2: memref<160x10xf32, #tpu.memory_space<vmem>>, %arg3: memref<160x1xf32, #tpu.memory_space<vmem>>, %arg4: memref<320x160xf32, #tpu.memory_space<vmem>>, %arg5: memref<320x1xf32, #tpu.memory_space<vmem>>, %arg6: memref<640x320xf32, #tpu.memory_space<vmem>>, %arg7: memref<640x1xf32, #tpu.memory_space<vmem>>, %arg8: memref<32x640xf32, #tpu.memory_space<vmem>>, %arg9: memref<32x1xf32, #tpu.memory_space<vmem>>, %arg10: memref<1x32xf32, #tpu.memory_space<vmem>>, %arg11: memref<1x1xf32, #tpu.memory_space<vmem>>, %arg12: memref<1x256xf32, #tpu.memory_space<vmem>>) attributes {dimension_semantics = [#tpu.dimension_semantics<parallel>], iteration_bounds = array<i64: 1>, scalar_prefetch = 0 : i64, scratch_operands = 0 : i64, tpu.core_type = #tpu.core_type<tc>, window_params = [{transform_indices = @transform_0, window_bounds = array<i64: 256, 10>}, {pipeline_mode = #tpu.pipeline_mode<synchronous>, transform_indices = @transform_1, window_bounds = array<i64: 160, 10>}, {pipeline_mode = #tpu.pipeline_mode<synchronous>, transform_indices = @transform_2, window_bounds = array<i64: 160, 1>}, {pipeline_mode = #tpu.pipeline_mode<synchronous>, transform_indices = @transform_3, window_bounds = array<i64: 320, 160>}, {pipeline_mode = #tpu.pipeline_mode<synchronous>, transform_indices = @transform_4, window_bounds = array<i64: 320, 1>}, {pipeline_mode = #tpu.pipeline_mode<synchronous>, transform_indices = @transform_5, window_bounds = array<i64: 640, 320>}, {pipeline_mode = #tpu.pipeline_mode<synchronous>, transform_indices = @transform_6, window_bounds = array<i64: 640, 1>}, {pipeline_mode = #tpu.pipeline_mode<synchronous>, transform_indices = @transform_7, window_bounds = array<i64: 32, 640>}, {pipeline_mode = #tpu.pipeline_mode<synchronous>, transform_indices = @transform_8, window_bounds = array<i64: 32, 1>}, {pipeline_mode = #tpu.pipeline_mode<synchronous>, transform_indices = @transform_9, window_bounds = array<i64: 1, 32>}, {pipeline_mode = #tpu.pipeline_mode<synchronous>, transform_indices = @transform_10, window_bounds = array<i64: 1, 1>}, {transform_indices = @transform_11, window_bounds = array<i64: 1, 256>}]} {
    %c0 = arith.constant 0 : index
    %c0_0 = arith.constant 0 : index
    %0 = vector.load %arg1[%c0, %c0_0] : memref<256x10xf32, #tpu.memory_space<vmem>>, vector<256x10xf32>
    %c0_1 = arith.constant 0 : index
    %c0_2 = arith.constant 0 : index
    %1 = vector.load %arg2[%c0_1, %c0_2] : memref<160x10xf32, #tpu.memory_space<vmem>>, vector<160x10xf32>
    %cst = arith.constant dense<0.000000e+00> : vector<160x256xf32>
    %2 = tpu.matmul %1, %0, %cst {dimension_numbers = #tpu.dot_dimension_numbers<[1], [1], [0], [0], [0, 0, 1, 0], [], []>} : vector<160x10xf32>, vector<256x10xf32>, vector<160x256xf32> -> vector<160x256xf32>
    %c0_3 = arith.constant 0 : index
    %c0_4 = arith.constant 0 : index
    %3 = vector.load %arg3[%c0_3, %c0_4] : memref<160x1xf32, #tpu.memory_space<vmem>>, vector<160x1xf32>
    %4 = vector.broadcast %3 : vector<160x1xf32> to vector<160x256xf32>
    %5 = arith.addf %2, %4 : vector<160x256xf32>
    %cst_5 = arith.constant 0.000000e+00 : f32
    %6 = vector.broadcast %cst_5 : f32 to vector<160x256xf32>
    %7 = arith.maximumf %5, %6 : vector<160x256xf32>
    %c0_6 = arith.constant 0 : index
    %c0_7 = arith.constant 0 : index
    %8 = vector.load %arg4[%c0_6, %c0_7] : memref<320x160xf32, #tpu.memory_space<vmem>>, vector<320x160xf32>
    %cst_8 = arith.constant dense<0.000000e+00> : vector<320x256xf32>
    %9 = tpu.matmul %8, %7, %cst_8 {dimension_numbers = #tpu.dot_dimension_numbers<[1], [0], [0], [1], [0, 0, 1, 1], [], []>} : vector<320x160xf32>, vector<160x256xf32>, vector<320x256xf32> -> vector<320x256xf32>
    %c0_9 = arith.constant 0 : index
    %c0_10 = arith.constant 0 : index
    %10 = vector.load %arg5[%c0_9, %c0_10] : memref<320x1xf32, #tpu.memory_space<vmem>>, vector<320x1xf32>
    %11 = vector.broadcast %10 : vector<320x1xf32> to vector<320x256xf32>
    %12 = arith.addf %9, %11 : vector<320x256xf32>
    %cst_11 = arith.constant 0.000000e+00 : f32
    %13 = vector.broadcast %cst_11 : f32 to vector<320x256xf32>
    %14 = arith.maximumf %12, %13 : vector<320x256xf32>
    %c0_12 = arith.constant 0 : index
    %c0_13 = arith.constant 0 : index
    %15 = vector.load %arg6[%c0_12, %c0_13] : memref<640x320xf32, #tpu.memory_space<vmem>>, vector<640x320xf32>
    %cst_14 = arith.constant dense<0.000000e+00> : vector<640x256xf32>
    %16 = tpu.matmul %15, %14, %cst_14 {dimension_numbers = #tpu.dot_dimension_numbers<[1], [0], [0], [1], [0, 0, 1, 1], [], []>} : vector<640x320xf32>, vector<320x256xf32>, vector<640x256xf32> -> vector<640x256xf32>
    %c0_15 = arith.constant 0 : index
    %c0_16 = arith.constant 0 : index
    %17 = vector.load %arg7[%c0_15, %c0_16] : memref<640x1xf32, #tpu.memory_space<vmem>>, vector<640x1xf32>
    %18 = vector.broadcast %17 : vector<640x1xf32> to vector<640x256xf32>
    %19 = arith.addf %16, %18 : vector<640x256xf32>
    %cst_17 = arith.constant 0.000000e+00 : f32
    %20 = vector.broadcast %cst_17 : f32 to vector<640x256xf32>
    %21 = arith.maximumf %19, %20 : vector<640x256xf32>
    %c0_18 = arith.constant 0 : index
    %c0_19 = arith.constant 0 : index
    %22 = vector.load %arg8[%c0_18, %c0_19] : memref<32x640xf32, #tpu.memory_space<vmem>>, vector<32x640xf32>
    %cst_20 = arith.constant dense<0.000000e+00> : vector<32x256xf32>
    %23 = tpu.matmul %22, %21, %cst_20 {dimension_numbers = #tpu.dot_dimension_numbers<[1], [0], [0], [1], [0, 0, 1, 1], [], []>} : vector<32x640xf32>, vector<640x256xf32>, vector<32x256xf32> -> vector<32x256xf32>
    %c0_21 = arith.constant 0 : index
    %c0_22 = arith.constant 0 : index
    %24 = vector.load %arg9[%c0_21, %c0_22] : memref<32x1xf32, #tpu.memory_space<vmem>>, vector<32x1xf32>
    %25 = vector.broadcast %24 : vector<32x1xf32> to vector<32x256xf32>
    %26 = arith.addf %23, %25 : vector<32x256xf32>
    %cst_23 = arith.constant 0.000000e+00 : f32
    %27 = vector.broadcast %cst_23 : f32 to vector<32x256xf32>
    %28 = arith.maximumf %26, %27 : vector<32x256xf32>
    %c0_24 = arith.constant 0 : index
    %c0_25 = arith.constant 0 : index
    %29 = vector.load %arg10[%c0_24, %c0_25] : memref<1x32xf32, #tpu.memory_space<vmem>>, vector<1x32xf32>
    %cst_26 = arith.constant dense<0.000000e+00> : vector<1x256xf32>
    %30 = tpu.matmul %29, %28, %cst_26 {dimension_numbers = #tpu.dot_dimension_numbers<[1], [0], [0], [1], [0, 0, 1, 1], [], []>} : vector<1x32xf32>, vector<32x256xf32>, vector<1x256xf32> -> vector<1x256xf32>
    %c0_27 = arith.constant 0 : index
    %c0_28 = arith.constant 0 : index
    %31 = vector.load %arg11[%c0_27, %c0_28] : memref<1x1xf32, #tpu.memory_space<vmem>>, vector<1x1xf32>
    %32 = vector.broadcast %31 : vector<1x1xf32> to vector<1x256xf32>
    %33 = arith.addf %30, %32 : vector<1x256xf32>
    %c0_29 = arith.constant 0 : index
    %c0_30 = arith.constant 0 : index
    %34 = vector.load %arg12[%c0_29, %c0_30] : memref<1x256xf32, #tpu.memory_space<vmem>>, vector<1x256xf32>
    tpu.vector_store %arg12[%c0_29, %c0_30], %33 {strides = array<i32>} : memref<1x256xf32, #tpu.memory_space<vmem>>, vector<1x256xf32>,
    return
  }
  func.func @transform_0(%arg0: i32) -> (i32, i32) {
    %c0_i32 = arith.constant 0 : i32
    %c0_i32_0 = arith.constant 0 : i32
    return %arg0, %c0_i32 : i32, i32
  }
  func.func @transform_1(%arg0: i32) -> (i32, i32) {
    %c0_i32 = arith.constant 0 : i32
    %c0_i32_0 = arith.constant 0 : i32
    %c0_i32_1 = arith.constant 0 : i32
    return %c0_i32, %c0_i32_0 : i32, i32
  }
  func.func @transform_2(%arg0: i32) -> (i32, i32) {
    %c0_i32 = arith.constant 0 : i32
    %c0_i32_0 = arith.constant 0 : i32
    %c0_i32_1 = arith.constant 0 : i32
    return %c0_i32, %c0_i32_0 : i32, i32
  }
  func.func @transform_3(%arg0: i32) -> (i32, i32) {
    %c0_i32 = arith.constant 0 : i32
    %c0_i32_0 = arith.constant 0 : i32
    %c0_i32_1 = arith.constant 0 : i32
    return %c0_i32, %c0_i32_0 : i32, i32
  }
  func.func @transform_4(%arg0: i32) -> (i32, i32) {
    %c0_i32 = arith.constant 0 : i32
    %c0_i32_0 = arith.constant 0 : i32
    %c0_i32_1 = arith.constant 0 : i32
    return %c0_i32, %c0_i32_0 : i32, i32
  }
  func.func @transform_5(%arg0: i32) -> (i32, i32) {
    %c0_i32 = arith.constant 0 : i32
    %c0_i32_0 = arith.constant 0 : i32
    %c0_i32_1 = arith.constant 0 : i32
    return %c0_i32, %c0_i32_0 : i32, i32
  }
  func.func @transform_6(%arg0: i32) -> (i32, i32) {
    %c0_i32 = arith.constant 0 : i32
    %c0_i32_0 = arith.constant 0 : i32
    %c0_i32_1 = arith.constant 0 : i32
    return %c0_i32, %c0_i32_0 : i32, i32
  }
  func.func @transform_7(%arg0: i32) -> (i32, i32) {
    %c0_i32 = arith.constant 0 : i32
    %c0_i32_0 = arith.constant 0 : i32
    %c0_i32_1 = arith.constant 0 : i32
    return %c0_i32, %c0_i32_0 : i32, i32
  }
  func.func @transform_8(%arg0: i32) -> (i32, i32) {
    %c0_i32 = arith.constant 0 : i32
    %c0_i32_0 = arith.constant 0 : i32
    %c0_i32_1 = arith.constant 0 : i32
    return %c0_i32, %c0_i32_0 : i32, i32
  }
  func.func @transform_9(%arg0: i32) -> (i32, i32) {
    %c0_i32 = arith.constant 0 : i32
    %c0_i32_0 = arith.constant 0 : i32
    %c0_i32_1 = arith.constant 0 : i32
    return %c0_i32, %c0_i32_0 : i32, i32
  }
  func.func @transform_10(%arg0: i32) -> (i32, i32) {
    %c0_i32 = arith.constant 0 : i32
    %c0_i32_0 = arith.constant 0 : i32
    %c0_i32_1 = arith.constant 0 : i32
    return %c0_i32, %c0_i32_0 : i32, i32
  }
  func.func @transform_11(%arg0: i32) -> (i32, i32) {
    %c0_i32 = arith.constant 0 : i32
    %c0_i32_0 = arith.constant 0 : i32
    return %c0_i32, %arg0 : i32, i32
  }
}

</mosaic_0001>

<llo_original>
// kernel: tpu_custom_call.1
$region0: #{tpu_custom_call.1}
  #allocation0 [shape = 'u32[]', space=smem, size = 0x4, offset = 0x4, fixed_abs, tag = 'smem constant byte address 0x4 - core index']
  #allocation1 [shape = 'u32[144,128]{1,0:T(1,128)}', space=vmem, size = 0x12000, scoped, tag = 'internal scratch']
  #allocation2 [shape = 'f32[1,1]{1,0:T(1,128)S(1)}', space=vmem, size = 0x200, scoped, tag = 'scoped memory for tpu_custom_call.1']
  %s0 = inlined_call_operand.vmem [shape: f32[256,10], index: 0, kind: input, shape index: {}]
  %s1 = inlined_call_operand.vmem [shape: f32[160,10], index: 1, kind: input, shape index: {}]
  %s2 = inlined_call_operand.vmem [shape: f32[160,1], index: 2, kind: input, shape index: {}]
  %s3 = inlined_call_operand.vmem [shape: f32[320,160], index: 3, kind: input, shape index: {}]
  %s4 = inlined_call_operand.vmem [shape: f32[320,1], index: 4, kind: input, shape index: {}]
  %s5 = inlined_call_operand.vmem [shape: f32[640,320], index: 5, kind: input, shape index: {}]
  %s6 = inlined_call_operand.vmem [shape: f32[640,1], index: 6, kind: input, shape index: {}]
  %s7 = inlined_call_operand.vmem [shape: f32[32,640], index: 7, kind: input, shape index: {}]
  %s8 = inlined_call_operand.vmem [shape: f32[32,1], index: 8, kind: input, shape index: {}]
  %s9 = inlined_call_operand.vmem [shape: f32[1,32], index: 9, kind: input, shape index: {}]
  %s10 = inlined_call_operand.<no memory space> [shape: f32[1,1], index: 10, kind: input, shape index: {}]
  %s11 = inlined_call_operand.hbm [shape: f32[1,256], index: 11, kind: output, shape index: {}]
  %s12 = sld [smem:[#allocation0]]
  $region54: #{tpu_custom_call.1} parent=0
    _
  %s14 = ssub.s32 1, %s12
  %s15 = scalar_select 0, %s14, %s12
  %v16 = vstv %s10
  %17 = vst [vmem:[#allocation2] sm:$0x1] %v16
  $region1: #{tpu_custom_call.1} parent=0
    #allocation3 [shape = 'u8[1024]{0}', space=vmem, size = 0x400, scoped, tag = 'output window, operand 0, single buffered']
    #allocation4 [shape = 's32[1]{0}', space=sflag, size = 0x4, scoped, tag = 'scoped memory for tpu_custom_call.1']
    %18 = vsyncpa [#allocation4], 0
    // Predicated region
    $region2: #{tpu_custom_call.1} parent=1 // pred_check
      _
    $region3: #{tpu_custom_call.1} parent=1 // pred_check_branch
      %20 = sbr.rel (0) target = $region5
    $region4: #{tpu_custom_call.1} parent=1 // pred_region
      _
    $region5: #{tpu_custom_call.1} parent=1 // pred_fallthru
      _
    // Predicated region
    $region6: #{tpu_custom_call.1} parent=1 // pred_check
      _
    $region7: #{tpu_custom_call.1} parent=1 // pred_check_branch
      %22 = sbr.rel (0) target = $region9
    $region8: #{tpu_custom_call.1} parent=1 // pred_region
      _
    $region9: #{tpu_custom_call.1} parent=1 // pred_fallthru
      _
    // Predicated region
    $region10: #{tpu_custom_call.1} parent=1 // pred_check
      _
    $region11: #{tpu_custom_call.1} parent=1 // pred_check_branch
      %24 = sbr.rel (0) target = $region13
    $region12: #{tpu_custom_call.1} parent=1 // pred_region
      _
    $region13: #{tpu_custom_call.1} parent=1 // pred_fallthru
      _
    // Predicated region
    $region14: #{tpu_custom_call.1} parent=1 // pred_check
      _
    $region15: #{tpu_custom_call.1} parent=1 // pred_check_branch
      %26 = sbr.rel (0) target = $region17
    $region16: #{tpu_custom_call.1} parent=1 // pred_region
      _
    $region17: #{tpu_custom_call.1} parent=1 // pred_fallthru
      _
    // Predicated region
    $region18: #{tpu_custom_call.1} parent=1 // pred_check
      _
    $region19: #{tpu_custom_call.1} parent=1 // pred_check_branch
      %28 = sbr.rel (0) target = $region21
    $region20: #{tpu_custom_call.1} parent=1 // pred_region
      _
    $region21: #{tpu_custom_call.1} parent=1 // pred_fallthru
      _
    // Predicated region
    $region22: #{tpu_custom_call.1} parent=1 // pred_check
      _
    $region23: #{tpu_custom_call.1} parent=1 // pred_check_branch
      %30 = sbr.rel (0) target = $region25
    $region24: #{tpu_custom_call.1} parent=1 // pred_region
      _
    $region25: #{tpu_custom_call.1} parent=1 // pred_fallthru
      _
    // Predicated region
    $region26: #{tpu_custom_call.1} parent=1 // pred_check
      _
    $region27: #{tpu_custom_call.1} parent=1 // pred_check_branch
      %32 = sbr.rel (0) target = $region29
    $region28: #{tpu_custom_call.1} parent=1 // pred_region
      _
    $region29: #{tpu_custom_call.1} parent=1 // pred_fallthru
      _
    // Predicated region
    $region30: #{tpu_custom_call.1} parent=1 // pred_check
      _
    $region31: #{tpu_custom_call.1} parent=1 // pred_check_branch
      %34 = sbr.rel (0) target = $region33
    $region32: #{tpu_custom_call.1} parent=1 // pred_region
      _
    $region33: #{tpu_custom_call.1} parent=1 // pred_fallthru
      _
    // Predicated region
    $region34: #{tpu_custom_call.1} parent=1 // pred_check
      _
    $region35: #{tpu_custom_call.1} parent=1 // pred_check_branch
      %36 = sbr.rel (0) target = $region37
    $region36: #{tpu_custom_call.1} parent=1 // pred_region
      _
    $region37: #{tpu_custom_call.1} parent=1 // pred_fallthru
      _
    // Predicated region
    $region38: #{tpu_custom_call.1} parent=1 // pred_check
      _
    $region39: #{tpu_custom_call.1} parent=1 // pred_check_branch
      %38 = sbr.rel (0) target = $region41
    $region40: #{tpu_custom_call.1} parent=1 // pred_region
      _
    $region41: #{tpu_custom_call.1} parent=1 // pred_fallthru
      _
    // Predicated region
    $region42: #{tpu_custom_call.1} parent=1 // pred_check
      _
    $region43: #{tpu_custom_call.1} parent=1 // pred_check_branch
      %40 = sbr.rel (0) target = $region45
    $region44: #{tpu_custom_call.1} parent=1 // pred_region
      _
    $region45: #{tpu_custom_call.1} parent=1 // pred_fallthru
      _
    %v41 = vld [vmem:[%s0] sm:$0xff]
    %v42 = vld [vmem:[%s0 + $0x8] sm:$0xff]
    %v43 = vld [vmem:[%s0 + $0x10] sm:$0xff]
    %v44 = vld [vmem:[%s0 + $0x18] sm:$0xff]
    %v45 = vld [vmem:[%s0 + $0x20] sm:$0xff]
    %v46 = vld [vmem:[%s0 + $0x28] sm:$0xff]
    %v47 = vld [vmem:[%s0 + $0x30] sm:$0xff]
    %v48 = vld [vmem:[%s0 + $0x38] sm:$0xff]
    %v49 = vld [vmem:[%s0 + $0x40] sm:$0xff]
    %v50 = vld [vmem:[%s0 + $0x48] sm:$0xff]
    %v51 = vld [vmem:[%s0 + $0x50] sm:$0xff]
    %v52 = vld [vmem:[%s0 + $0x58] sm:$0xff]
    %v53 = vld [vmem:[%s0 + $0x60] sm:$0xff]
    %v54 = vld [vmem:[%s0 + $0x68] sm:$0xff]
    %v55 = vld [vmem:[%s0 + $0x70] sm:$0xff]
    %v56 = vld [vmem:[%s0 + $0x78] sm:$0xff]
    %v57 = vld [vmem:[%s0 + $0x80] sm:$0xff]
    %v58 = vld [vmem:[%s0 + $0x88] sm:$0xff]
    %v59 = vld [vmem:[%s0 + $0x90] sm:$0xff]
    %v60 = vld [vmem:[%s0 + $0x98] sm:$0xff]
    %v61 = vld [vmem:[%s0 + $0xa0] sm:$0xff]
    %v62 = vld [vmem:[%s0 + $0xa8] sm:$0xff]
    %v63 = vld [vmem:[%s0 + $0xb0] sm:$0xff]
    %v64 = vld [vmem:[%s0 + $0xb8] sm:$0xff]
    %v65 = vld [vmem:[%s0 + $0xc0] sm:$0xff]
    %v66 = vld [vmem:[%s0 + $0xc8] sm:$0xff]
    %v67 = vld [vmem:[%s0 + $0xd0] sm:$0xff]
    %v68 = vld [vmem:[%s0 + $0xd8] sm:$0xff]
    %v69 = vld [vmem:[%s0 + $0xe0] sm:$0xff]
    %v70 = vld [vmem:[%s0 + $0xe8] sm:$0xff]
    %v71 = vld [vmem:[%s0 + $0xf0] sm:$0xff]
    %v72 = vld [vmem:[%s0 + $0xf8] sm:$0xff]
    %v73 = vld [vmem:[%s1] sm:$0xff]
    %v74 = vld [vmem:[%s1 + $0x8] sm:$0xff]
    %v75 = vld [vmem:[%s1 + $0x10] sm:$0xff]
    %v76 = vld [vmem:[%s1 + $0x18] sm:$0xff]
    %v77 = vld [vmem:[%s1 + $0x20] sm:$0xff]
    %v78 = vld [vmem:[%s1 + $0x28] sm:$0xff]
    %v79 = vld [vmem:[%s1 + $0x30] sm:$0xff]
    %v80 = vld [vmem:[%s1 + $0x38] sm:$0xff]
    %v81 = vld [vmem:[%s1 + $0x40] sm:$0xff]
    %v82 = vld [vmem:[%s1 + $0x48] sm:$0xff]
    %v83 = vld [vmem:[%s1 + $0x50] sm:$0xff]
    %v84 = vld [vmem:[%s1 + $0x58] sm:$0xff]
    %v85 = vld [vmem:[%s1 + $0x60] sm:$0xff]
    %v86 = vld [vmem:[%s1 + $0x68] sm:$0xff]
    %v87 = vld [vmem:[%s1 + $0x70] sm:$0xff]
    %v88 = vld [vmem:[%s1 + $0x78] sm:$0xff]
    %v89 = vld [vmem:[%s1 + $0x80] sm:$0xff]
    %v90 = vld [vmem:[%s1 + $0x88] sm:$0xff]
    %v91 = vld [vmem:[%s1 + $0x90] sm:$0xff]
    %v92 = vld [vmem:[%s1 + $0x98] sm:$0xff]
    %v93 = vld [vmem:[%s2] sm:$0xff]
    %v94 = vld [vmem:[%s2 + $0x8] sm:$0xff]
    %v95 = vld [vmem:[%s2 + $0x10] sm:$0xff]
    %v96 = vld [vmem:[%s2 + $0x18] sm:$0xff]
    %v97 = vld [vmem:[%s2 + $0x20] sm:$0xff]
    %v98 = vld [vmem:[%s2 + $0x28] sm:$0xff]
    %v99 = vld [vmem:[%s2 + $0x30] sm:$0xff]
    %v100 = vld [vmem:[%s2 + $0x38] sm:$0xff]
    %v101 = vld [vmem:[%s2 + $0x40] sm:$0xff]
    %v102 = vld [vmem:[%s2 + $0x48] sm:$0xff]
    %v103 = vld [vmem:[%s2 + $0x50] sm:$0xff]
    %v104 = vld [vmem:[%s2 + $0x58] sm:$0xff]
    %v105 = vld [vmem:[%s2 + $0x60] sm:$0xff]
    %v106 = vld [vmem:[%s2 + $0x68] sm:$0xff]
    %v107 = vld [vmem:[%s2 + $0x70] sm:$0xff]
    %v108 = vld [vmem:[%s2 + $0x78] sm:$0xff]
    %v109 = vld [vmem:[%s2 + $0x80] sm:$0xff]
    %v110 = vld [vmem:[%s2 + $0x88] sm:$0xff]
    %v111 = vld [vmem:[%s2 + $0x90] sm:$0xff]
    %v112 = vld [vmem:[%s2 + $0x98] sm:$0xff]
    %114 = vset.pattern.permute.xlu0 0
    %115 = vperm.xlu0 %114, %v93
    %v116 = vpop.permute.xlu0 %115
    %119 = vset.pattern.permute.xlu0 0
    %120 = vperm.xlu0 %119, %v94
    %v121 = vpop.permute.xlu0 %120
    %124 = vset.pattern.permute.xlu0 0
    %125 = vperm.xlu0 %124, %v95
    %v126 = vpop.permute.xlu0 %125
    %129 = vset.pattern.permute.xlu0 0
    %130 = vperm.xlu0 %129, %v96
    %v131 = vpop.permute.xlu0 %130
    %134 = vset.pattern.permute.xlu0 0
    %135 = vperm.xlu0 %134, %v97
    %v136 = vpop.permute.xlu0 %135
    %139 = vset.pattern.permute.xlu0 0
    %140 = vperm.xlu0 %139, %v98
    %v141 = vpop.permute.xlu0 %140
    %144 = vset.pattern.permute.xlu0 0
    %145 = vperm.xlu0 %144, %v99
    %v146 = vpop.permute.xlu0 %145
    %149 = vset.pattern.permute.xlu0 0
    %150 = vperm.xlu0 %149, %v100
    %v151 = vpop.permute.xlu0 %150
    %154 = vset.pattern.permute.xlu0 0
    %155 = vperm.xlu0 %154, %v101
    %v156 = vpop.permute.xlu0 %155
    %159 = vset.pattern.permute.xlu0 0
    %160 = vperm.xlu0 %159, %v102
    %v161 = vpop.permute.xlu0 %160
    %164 = vset.pattern.permute.xlu0 0
    %165 = vperm.xlu0 %164, %v103
    %v166 = vpop.permute.xlu0 %165
    %169 = vset.pattern.permute.xlu0 0
    %170 = vperm.xlu0 %169, %v104
    %v171 = vpop.permute.xlu0 %170
    %174 = vset.pattern.permute.xlu0 0
    %175 = vperm.xlu0 %174, %v105
    %v176 = vpop.permute.xlu0 %175
    %179 = vset.pattern.permute.xlu0 0
    %180 = vperm.xlu0 %179, %v106
    %v181 = vpop.permute.xlu0 %180
    %184 = vset.pattern.permute.xlu0 0
    %185 = vperm.xlu0 %184, %v107
    %v186 = vpop.permute.xlu0 %185
    %189 = vset.pattern.permute.xlu0 0
    %190 = vperm.xlu0 %189, %v108
    %v191 = vpop.permute.xlu0 %190
    %194 = vset.pattern.permute.xlu0 0
    %195 = vperm.xlu0 %194, %v109
    %v196 = vpop.permute.xlu0 %195
    %199 = vset.pattern.permute.xlu0 0
    %200 = vperm.xlu0 %199, %v110
    %v201 = vpop.permute.xlu0 %200
    %204 = vset.pattern.permute.xlu0 0
    %205 = vperm.xlu0 %204, %v111
    %v206 = vpop.permute.xlu0 %205
    %209 = vset.pattern.permute.xlu0 0
    %210 = vperm.xlu0 %209, %v112
    %v211 = vpop.permute.xlu0 %210
    %vm213 = vcmask 80896
    %v215 = vsel %vm213, %v73, 0
    %v218 = vsel %vm213, %v74, 0
    %v221 = vsel %vm213, %v75, 0
    %v224 = vsel %vm213, %v76, 0
    %v227 = vsel %vm213, %v77, 0
    %v230 = vsel %vm213, %v78, 0
    %v233 = vsel %vm213, %v79, 0
    %v236 = vsel %vm213, %v80, 0
    %v239 = vsel %vm213, %v81, 0
    %v242 = vsel %vm213, %v82, 0
    %v245 = vsel %vm213, %v83, 0
    %v248 = vsel %vm213, %v84, 0
    %v251 = vsel %vm213, %v85, 0
    %v254 = vsel %vm213, %v86, 0
    %v257 = vsel %vm213, %v87, 0
    %v260 = vsel %vm213, %v88, 0
    %v263 = vsel %vm213, %v89, 0
    %v266 = vsel %vm213, %v90, 0
    %v269 = vsel %vm213, %v91, 0
    %v272 = vsel %vm213, %v92, 0
    %v275 = vsel %vm213, %v41, 0
    %v278 = vsel %vm213, %v42, 0
    %v281 = vsel %vm213, %v43, 0
    %v284 = vsel %vm213, %v44, 0
    %v287 = vsel %vm213, %v45, 0
    %v290 = vsel %vm213, %v46, 0
    %v293 = vsel %vm213, %v47, 0
    %v296 = vsel %vm213, %v48, 0
    %v299 = vsel %vm213, %v49, 0
    %v302 = vsel %vm213, %v50, 0
    %v305 = vsel %vm213, %v51, 0
    %v308 = vsel %vm213, %v52, 0
    %v311 = vsel %vm213, %v53, 0
    %v314 = vsel %vm213, %v54, 0
    %v317 = vsel %vm213, %v55, 0
    %v320 = vsel %vm213, %v56, 0
    %v323 = vsel %vm213, %v57, 0
    %v326 = vsel %vm213, %v58, 0
    %v329 = vsel %vm213, %v59, 0
    %v332 = vsel %vm213, %v60, 0
    %v335 = vsel %vm213, %v61, 0
    %v338 = vsel %vm213, %v62, 0
    %v341 = vsel %vm213, %v63, 0
    %v344 = vsel %vm213, %v64, 0
    %v347 = vsel %vm213, %v65, 0
    %v350 = vsel %vm213, %v66, 0
    %v353 = vsel %vm213, %v67, 0
    %v356 = vsel %vm213, %v68, 0
    %v359 = vsel %vm213, %v69, 0
    %v362 = vsel %vm213, %v70, 0
    %v365 = vsel %vm213, %v71, 0
    %v368 = vsel %vm213, %v72, 0
    %370 = vmatprep.subr.mxu0 0.0
    %371 = vmatpush1.xpose.msra.mxu0 %v275
    %372 = vmatprep.subr.mxu0 0.0
    %373 = vmatpush1.xpose.msra.mxu0 %v278
    %374 = vmatprep.subr.mxu0 0.0
    %375 = vmatpush1.xpose.msra.mxu0 %v281
    %376 = vmatprep.subr.mxu0 0.0
    %377 = vmatpush1.xpose.msra.mxu0 %v284
    %378 = vmatprep.subr.mxu0 0.0
    %379 = vmatpush1.xpose.msra.mxu0 %v287
    %380 = vmatprep.subr.mxu0 0.0
    %381 = vmatpush1.xpose.msra.mxu0 %v290
    %382 = vmatprep.subr.mxu0 0.0
    %383 = vmatpush1.xpose.msra.mxu0 %v293
    %384 = vmatprep.subr.mxu0 0.0
    %385 = vmatpush1.xpose.msra.mxu0 %v296
    %386 = vmatprep.subr.mxu0 0.0
    %387 = vmatpush1.xpose.msra.mxu0 %v299
    %388 = vmatprep.subr.mxu0 0.0
    %389 = vmatpush1.xpose.msra.mxu0 %v302
    %390 = vmatprep.subr.mxu0 0.0
    %391 = vmatpush1.xpose.msra.mxu0 %v305
    %392 = vmatprep.subr.mxu0 0.0
    %393 = vmatpush1.xpose.msra.mxu0 %v308
    %394 = vmatprep.subr.mxu0 0.0
    %395 = vmatpush1.xpose.msra.mxu0 %v311
    %396 = vmatprep.subr.mxu0 0.0
    %397 = vmatpush1.xpose.msra.mxu0 %v314
    %398 = vmatprep.subr.mxu0 0.0
    %399 = vmatpush1.xpose.msra.mxu0 %v317
    %400 = vmatprep.subr.mxu0 0.0
    %401 = vmatpush1.xpose.msra.mxu0 %v320
    %402 = vmatprep.subr.mxu0 0.0
    %403 = vmatpush1.xpose.msra.mxu0 %v323
    %404 = vmatprep.subr.mxu0 0.0
    %405 = vmatpush1.xpose.msra.mxu0 %v326
    %406 = vmatprep.subr.mxu0 0.0
    %407 = vmatpush1.xpose.msra.mxu0 %v329
    %408 = vmatprep.subr.mxu0 0.0
    %409 = vmatpush1.xpose.msra.mxu0 %v332
    %410 = vmatprep.subr.mxu0 0.0
    %411 = vmatpush1.xpose.msra.mxu0 %v335
    %412 = vmatprep.subr.mxu0 0.0
    %413 = vmatpush1.xpose.msra.mxu0 %v338
    %414 = vmatprep.subr.mxu0 0.0
    %415 = vmatpush1.xpose.msra.mxu0 %v341
    %416 = vmatprep.subr.mxu0 0.0
    %417 = vmatpush1.xpose.msra.mxu0 %v344
    %418 = vmatprep.subr.mxu0 0.0
    %419 = vmatpush1.xpose.msra.mxu0 %v347
    %420 = vmatprep.subr.mxu0 0.0
    %421 = vmatpush1.xpose.msra.mxu0 %v350
    %422 = vmatprep.subr.mxu0 0.0
    %423 = vmatpush1.xpose.msra.mxu0 %v353
    %424 = vmatprep.subr.mxu0 0.0
    %425 = vmatpush1.xpose.msra.mxu0 %v356
    %426 = vmatprep.subr.mxu0 0.0
    %427 = vmatpush1.xpose.msra.mxu0 %v359
    %428 = vmatprep.subr.mxu0 0.0
    %429 = vmatpush1.xpose.msra.mxu0 %v362
    %430 = vmatprep.subr.mxu0 0.0
    %431 = vmatpush1.xpose.msra.mxu0 %v365
    %432 = vmatprep.subr.mxu0 0.0
    %433 = vmatpush1.xpose.msra.mxu0 %v368
    %434 = vmatprep.mubr.f32.mxu0 0.0
    %435 = vmatmul.mubr.f32.gmra.mrb[0].mxu0 %v215
    %v436 = vpop.f32.mrb[0].mxu0
    %v437 = vadd.f32 %v116, %v436
    %v438 = vpop.f32.mrb[0].mxu0
    %v439 = vadd.f32 %v116, %v438
    %440 = vmatprep.mubr.f32.mxu0 0.0
    %441 = vmatmul.mubr.f32.gmra.mrb[0].mxu0 %v218
    %v442 = vpop.f32.mrb[0].mxu0
    %v443 = vadd.f32 %v121, %v442
    %v444 = vpop.f32.mrb[0].mxu0
    %v445 = vadd.f32 %v121, %v444
    %446 = vmatprep.mubr.f32.mxu0 0.0
    %447 = vmatmul.mubr.f32.gmra.mrb[0].mxu0 %v221
    %v448 = vpop.f32.mrb[0].mxu0
    %v449 = vadd.f32 %v126, %v448
    %v450 = vpop.f32.mrb[0].mxu0
    %v451 = vadd.f32 %v126, %v450
    %452 = vmatprep.mubr.f32.mxu0 0.0
    %453 = vmatmul.mubr.f32.gmra.mrb[0].mxu0 %v224
    %v454 = vpop.f32.mrb[0].mxu0
    %v455 = vadd.f32 %v131, %v454
    %v456 = vpop.f32.mrb[0].mxu0
    %v457 = vadd.f32 %v131, %v456
    %458 = vmatprep.mubr.f32.mxu0 0.0
    %459 = vmatmul.mubr.f32.gmra.mrb[0].mxu0 %v227
    %v460 = vpop.f32.mrb[0].mxu0
    %v461 = vadd.f32 %v136, %v460
    %v462 = vpop.f32.mrb[0].mxu0
    %v463 = vadd.f32 %v136, %v462
    %464 = vmatprep.mubr.f32.mxu0 0.0
    %465 = vmatmul.mubr.f32.gmra.mrb[0].mxu0 %v230
    %v466 = vpop.f32.mrb[0].mxu0
    %v467 = vadd.f32 %v141, %v466
    %v468 = vpop.f32.mrb[0].mxu0
    %v469 = vadd.f32 %v141, %v468
    %470 = vmatprep.mubr.f32.mxu0 0.0
    %471 = vmatmul.mubr.f32.gmra.mrb[0].mxu0 %v233
    %v472 = vpop.f32.mrb[0].mxu0
    %v473 = vadd.f32 %v146, %v472
    %v474 = vpop.f32.mrb[0].mxu0
    %v475 = vadd.f32 %v146, %v474
    %476 = vmatprep.mubr.f32.mxu0 0.0
    %477 = vmatmul.mubr.f32.gmra.mrb[0].mxu0 %v236
    %v478 = vpop.f32.mrb[0].mxu0
    %v479 = vadd.f32 %v151, %v478
    %v480 = vpop.f32.mrb[0].mxu0
    %v481 = vadd.f32 %v151, %v480
    %482 = vmatprep.mubr.f32.mxu0 0.0
    %483 = vmatmul.mubr.f32.gmra.mrb[0].mxu0 %v239
    %v484 = vpop.f32.mrb[0].mxu0
    %v485 = vadd.f32 %v156, %v484
    %v486 = vpop.f32.mrb[0].mxu0
    %v487 = vadd.f32 %v156, %v486
    %488 = vmatprep.mubr.f32.mxu0 0.0
    %489 = vmatmul.mubr.f32.gmra.mrb[0].mxu0 %v242
    %v490 = vpop.f32.mrb[0].mxu0
    %v491 = vadd.f32 %v161, %v490
    %v492 = vpop.f32.mrb[0].mxu0
    %v493 = vadd.f32 %v161, %v492
    %494 = vmatprep.mubr.f32.mxu0 0.0
    %495 = vmatmul.mubr.f32.gmra.mrb[0].mxu0 %v245
    %v496 = vpop.f32.mrb[0].mxu0
    %v497 = vadd.f32 %v166, %v496
    %v498 = vpop.f32.mrb[0].mxu0
    %v499 = vadd.f32 %v166, %v498
    %500 = vmatprep.mubr.f32.mxu0 0.0
    %501 = vmatmul.mubr.f32.gmra.mrb[0].mxu0 %v248
    %v502 = vpop.f32.mrb[0].mxu0
    %v503 = vadd.f32 %v171, %v502
    %v504 = vpop.f32.mrb[0].mxu0
    %v505 = vadd.f32 %v171, %v504
    %506 = vmatprep.mubr.f32.mxu0 0.0
    %507 = vmatmul.mubr.f32.gmra.mrb[0].mxu0 %v251
    %v508 = vpop.f32.mrb[0].mxu0
    %v509 = vadd.f32 %v176, %v508
    %v510 = vpop.f32.mrb[0].mxu0
    %v511 = vadd.f32 %v176, %v510
    %512 = vmatprep.mubr.f32.mxu0 0.0
    %513 = vmatmul.mubr.f32.gmra.mrb[0].mxu0 %v254
    %v514 = vpop.f32.mrb[0].mxu0
    %v515 = vadd.f32 %v181, %v514
    %v516 = vpop.f32.mrb[0].mxu0
    %v517 = vadd.f32 %v181, %v516
    %518 = vmatprep.mubr.f32.mxu0 0.0
    %519 = vmatmul.mubr.f32.gmra.mrb[0].mxu0 %v257
    %v520 = vpop.f32.mrb[0].mxu0
    %v521 = vadd.f32 %v186, %v520
    %v522 = vpop.f32.mrb[0].mxu0
    %v523 = vadd.f32 %v186, %v522
    %524 = vmatprep.mubr.f32.mxu0 0.0
    %525 = vmatmul.mubr.f32.gmra.mrb[0].mxu0 %v260
    %v526 = vpop.f32.mrb[0].mxu0
    %v527 = vadd.f32 %v191, %v526
    %v528 = vpop.f32.mrb[0].mxu0
    %v529 = vadd.f32 %v191, %v528
    %530 = vmatprep.mubr.f32.mxu0 0.0
    %531 = vmatmul.mubr.f32.gmra.mrb[0].mxu0 %v263
    %v532 = vpop.f32.mrb[0].mxu0
    %v533 = vadd.f32 %v196, %v532
    %v534 = vpop.f32.mrb[0].mxu0
    %v535 = vadd.f32 %v196, %v534
    %536 = vmatprep.mubr.f32.mxu0 0.0
    %537 = vmatmul.mubr.f32.gmra.mrb[0].mxu0 %v266
    %v538 = vpop.f32.mrb[0].mxu0
    %v539 = vadd.f32 %v201, %v538
    %v540 = vpop.f32.mrb[0].mxu0
    %v541 = vadd.f32 %v201, %v540
    %542 = vmatprep.mubr.f32.mxu0 0.0
    %543 = vmatmul.mubr.f32.gmra.mrb[0].mxu0 %v269
    %v544 = vpop.f32.mrb[0].mxu0
    %v545 = vadd.f32 %v206, %v544
    %v546 = vpop.f32.mrb[0].mxu0
    %v547 = vadd.f32 %v206, %v546
    %548 = vmatprep.mubr.f32.mxu0 0.0
    %549 = vmatmul.mubr.f32.gmra.mrb[0].mxu0 %v272
    %v550 = vpop.f32.mrb[0].mxu0
    %v551 = vadd.f32 %v211, %v550
    %v552 = vpop.f32.mrb[0].mxu0
    %v553 = vadd.f32 %v211, %v552
    %554 = vdwg.mxu0
    %v555 = vmax.f32 %v437, 0.0
    %v556 = vmax.f32 %v439, 0.0
    %v557 = vmax.f32 %v443, 0.0
    %v558 = vmax.f32 %v445, 0.0
    %v559 = vmax.f32 %v449, 0.0
    %v560 = vmax.f32 %v451, 0.0
    %v561 = vmax.f32 %v455, 0.0
    %v562 = vmax.f32 %v457, 0.0
    %v563 = vmax.f32 %v461, 0.0
    %v564 = vmax.f32 %v463, 0.0
    %v565 = vmax.f32 %v467, 0.0
    %v566 = vmax.f32 %v469, 0.0
    %v567 = vmax.f32 %v473, 0.0
    %v568 = vmax.f32 %v475, 0.0
    %v569 = vmax.f32 %v479, 0.0
    %v570 = vmax.f32 %v481, 0.0
    %v571 = vmax.f32 %v485, 0.0
    %v572 = vmax.f32 %v487, 0.0
    %v573 = vmax.f32 %v491, 0.0
    %v574 = vmax.f32 %v493, 0.0
    %v575 = vmax.f32 %v497, 0.0
    %v576 = vmax.f32 %v499, 0.0
    %v577 = vmax.f32 %v503, 0.0
    %v578 = vmax.f32 %v505, 0.0
    %v579 = vmax.f32 %v509, 0.0
    %v580 = vmax.f32 %v511, 0.0
    %v581 = vmax.f32 %v515, 0.0
    %v582 = vmax.f32 %v517, 0.0
    %v583 = vmax.f32 %v521, 0.0
    %v584 = vmax.f32 %v523, 0.0
    %v585 = vmax.f32 %v527, 0.0
    %v586 = vmax.f32 %v529, 0.0
    %v587 = vmax.f32 %v533, 0.0
    %v588 = vmax.f32 %v535, 0.0
    %v589 = vmax.f32 %v539, 0.0
    %v590 = vmax.f32 %v541, 0.0
    %v591 = vmax.f32 %v545, 0.0
    %v592 = vmax.f32 %v547, 0.0
    %v593 = vmax.f32 %v551, 0.0
    %v594 = vmax.f32 %v553, 0.0
    %v595 = vld [vmem:[%s3] sm:$0xff]
    %v596 = vld [vmem:[%s3 + $0x8] sm:$0xff]
    %v597 = vld [vmem:[%s3 + $0x10] sm:$0xff]
    %v598 = vld [vmem:[%s3 + $0x18] sm:$0xff]
    %v599 = vld [vmem:[%s3 + $0x20] sm:$0xff]
    %v600 = vld [vmem:[%s3 + $0x28] sm:$0xff]
    %v601 = vld [vmem:[%s3 + $0x30] sm:$0xff]
    %v602 = vld [vmem:[%s3 + $0x38] sm:$0xff]
    %v603 = vld [vmem:[%s3 + $0x40] sm:$0xff]
    %v604 = vld [vmem:[%s3 + $0x48] sm:$0xff]
    %v605 = vld [vmem:[%s3 + $0x50] sm:$0xff]
    %v606 = vld [vmem:[%s3 + $0x58] sm:$0xff]
    %v607 = vld [vmem:[%s3 + $0x60] sm:$0xff]
    %v608 = vld [vmem:[%s3 + $0x68] sm:$0xff]
    %v609 = vld [vmem:[%s3 + $0x70] sm:$0xff]
    %v610 = vld [vmem:[%s3 + $0x78] sm:$0xff]
    %v611 = vld [vmem:[%s3 + $0x80] sm:$0xff]
    %v612 = vld [vmem:[%s3 + $0x88] sm:$0xff]
    %v613 = vld [vmem:[%s3 + $0x90] sm:$0xff]
    %v614 = vld [vmem:[%s3 + $0x98] sm:$0xff]
    %v615 = vld [vmem:[%s3 + $0xa0] sm:$0xff]
    %v616 = vld [vmem:[%s3 + $0xa8] sm:$0xff]
    %v617 = vld [vmem:[%s3 + $0xb0] sm:$0xff]
    %v618 = vld [vmem:[%s3 + $0xb8] sm:$0xff]
    %v619 = vld [vmem:[%s3 + $0xc0] sm:$0xff]
    %v620 = vld [vmem:[%s3 + $0xc8] sm:$0xff]
    %v621 = vld [vmem:[%s3 + $0xd0] sm:$0xff]
    %v622 = vld [vmem:[%s3 + $0xd8] sm:$0xff]
    %v623 = vld [vmem:[%s3 + $0xe0] sm:$0xff]
    %v624 = vld [vmem:[%s3 + $0xe8] sm:$0xff]
    %v625 = vld [vmem:[%s3 + $0xf0] sm:$0xff]
    %v626 = vld [vmem:[%s3 + $0xf8] sm:$0xff]
    %v627 = vld [vmem:[%s3 + $0x100] sm:$0xff]
    %v628 = vld [vmem:[%s3 + $0x108] sm:$0xff]
    %v629 = vld [vmem:[%s3 + $0x110] sm:$0xff]
    %v630 = vld [vmem:[%s3 + $0x118] sm:$0xff]
    %v631 = vld [vmem:[%s3 + $0x120] sm:$0xff]
    %v632 = vld [vmem:[%s3 + $0x128] sm:$0xff]
    %v633 = vld [vmem:[%s3 + $0x130] sm:$0xff]
    %v634 = vld [vmem:[%s3 + $0x138] sm:$0xff]
    %v635 = vld [vmem:[%s3 + $0x140] sm:$0xff]
    %v636 = vld [vmem:[%s3 + $0x148] sm:$0xff]
    %v637 = vld [vmem:[%s3 + $0x150] sm:$0xff]
    %v638 = vld [vmem:[%s3 + $0x158] sm:$0xff]
    %v639 = vld [vmem:[%s3 + $0x160] sm:$0xff]
    %v640 = vld [vmem:[%s3 + $0x168] sm:$0xff]
    %v641 = vld [vmem:[%s3 + $0x170] sm:$0xff]
    %v642 = vld [vmem:[%s3 + $0x178] sm:$0xff]
    %v643 = vld [vmem:[%s3 + $0x180] sm:$0xff]
    %v644 = vld [vmem:[%s3 + $0x188] sm:$0xff]
    %v645 = vld [vmem:[%s3 + $0x190] sm:$0xff]
    %v646 = vld [vmem:[%s3 + $0x198] sm:$0xff]
    %v647 = vld [vmem:[%s3 + $0x1a0] sm:$0xff]
    %v648 = vld [vmem:[%s3 + $0x1a8] sm:$0xff]
    %v649 = vld [vmem:[%s3 + $0x1b0] sm:$0xff]
    %v650 = vld [vmem:[%s3 + $0x1b8] sm:$0xff]
    %v651 = vld [vmem:[%s3 + $0x1c0] sm:$0xff]
    %v652 = vld [vmem:[%s3 + $0x1c8] sm:$0xff]
    %v653 = vld [vmem:[%s3 + $0x1d0] sm:$0xff]
    %v654 = vld [vmem:[%s3 + $0x1d8] sm:$0xff]
    %v655 = vld [vmem:[%s3 + $0x1e0] sm:$0xff]
    %v656 = vld [vmem:[%s3 + $0x1e8] sm:$0xff]
    %v657 = vld [vmem:[%s3 + $0x1f0] sm:$0xff]
    %v658 = vld [vmem:[%s3 + $0x1f8] sm:$0xff]
    %v659 = vld [vmem:[%s3 + $0x200] sm:$0xff]
    %v660 = vld [vmem:[%s3 + $0x208] sm:$0xff]
    %v661 = vld [vmem:[%s3 + $0x210] sm:$0xff]
    %v662 = vld [vmem:[%s3 + $0x218] sm:$0xff]
    %v663 = vld [vmem:[%s3 + $0x220] sm:$0xff]
    %v664 = vld [vmem:[%s3 + $0x228] sm:$0xff]
    %v665 = vld [vmem:[%s3 + $0x230] sm:$0xff]
    %v666 = vld [vmem:[%s3 + $0x238] sm:$0xff]
    %v667 = vld [vmem:[%s3 + $0x240] sm:$0xff]
    %v668 = vld [vmem:[%s3 + $0x248] sm:$0xff]
    %v669 = vld [vmem:[%s3 + $0x250] sm:$0xff]
    %v670 = vld [vmem:[%s3 + $0x258] sm:$0xff]
    %v671 = vld [vmem:[%s3 + $0x260] sm:$0xff]
    %v672 = vld [vmem:[%s3 + $0x268] sm:$0xff]
    %v673 = vld [vmem:[%s3 + $0x270] sm:$0xff]
    %v674 = vld [vmem:[%s3 + $0x278] sm:$0xff]
    %v675 = vld [vmem:[%s4] sm:$0xff]
    %v676 = vld [vmem:[%s4 + $0x8] sm:$0xff]
    %v677 = vld [vmem:[%s4 + $0x10] sm:$0xff]
    %v678 = vld [vmem:[%s4 + $0x18] sm:$0xff]
    %v679 = vld [vmem:[%s4 + $0x20] sm:$0xff]
    %v680 = vld [vmem:[%s4 + $0x28] sm:$0xff]
    %v681 = vld [vmem:[%s4 + $0x30] sm:$0xff]
    %v682 = vld [vmem:[%s4 + $0x38] sm:$0xff]
    %v683 = vld [vmem:[%s4 + $0x40] sm:$0xff]
    %v684 = vld [vmem:[%s4 + $0x48] sm:$0xff]
    %v685 = vld [vmem:[%s4 + $0x50] sm:$0xff]
    %v686 = vld [vmem:[%s4 + $0x58] sm:$0xff]
    %v687 = vld [vmem:[%s4 + $0x60] sm:$0xff]
    %v688 = vld [vmem:[%s4 + $0x68] sm:$0xff]
    %v689 = vld [vmem:[%s4 + $0x70] sm:$0xff]
    %v690 = vld [vmem:[%s4 + $0x78] sm:$0xff]
    %v691 = vld [vmem:[%s4 + $0x80] sm:$0xff]
    %v692 = vld [vmem:[%s4 + $0x88] sm:$0xff]
    %v693 = vld [vmem:[%s4 + $0x90] sm:$0xff]
    %v694 = vld [vmem:[%s4 + $0x98] sm:$0xff]
    %v695 = vld [vmem:[%s4 + $0xa0] sm:$0xff]
    %v696 = vld [vmem:[%s4 + $0xa8] sm:$0xff]
    %v697 = vld [vmem:[%s4 + $0xb0] sm:$0xff]
    %v698 = vld [vmem:[%s4 + $0xb8] sm:$0xff]
    %v699 = vld [vmem:[%s4 + $0xc0] sm:$0xff]
    %v700 = vld [vmem:[%s4 + $0xc8] sm:$0xff]
    %v701 = vld [vmem:[%s4 + $0xd0] sm:$0xff]
    %v702 = vld [vmem:[%s4 + $0xd8] sm:$0xff]
    %v703 = vld [vmem:[%s4 + $0xe0] sm:$0xff]
    %v704 = vld [vmem:[%s4 + $0xe8] sm:$0xff]
    %v705 = vld [vmem:[%s4 + $0xf0] sm:$0xff]
    %v706 = vld [vmem:[%s4 + $0xf8] sm:$0xff]
    %v707 = vld [vmem:[%s4 + $0x100] sm:$0xff]
    %v708 = vld [vmem:[%s4 + $0x108] sm:$0xff]
    %v709 = vld [vmem:[%s4 + $0x110] sm:$0xff]
    %v710 = vld [vmem:[%s4 + $0x118] sm:$0xff]
    %v711 = vld [vmem:[%s4 + $0x120] sm:$0xff]
    %v712 = vld [vmem:[%s4 + $0x128] sm:$0xff]
    %v713 = vld [vmem:[%s4 + $0x130] sm:$0xff]
    %v714 = vld [vmem:[%s4 + $0x138] sm:$0xff]
    %716 = vset.pattern.permute.xlu0 0
    %717 = vperm.xlu0 %716, %v675
    %v718 = vpop.permute.xlu0 %717
    %721 = vset.pattern.permute.xlu0 0
    %722 = vperm.xlu0 %721, %v676
    %v723 = vpop.permute.xlu0 %722
    %726 = vset.pattern.permute.xlu0 0
    %727 = vperm.xlu0 %726, %v677
    %v728 = vpop.permute.xlu0 %727
    %731 = vset.pattern.permute.xlu0 0
    %732 = vperm.xlu0 %731, %v678
    %v733 = vpop.permute.xlu0 %732
    %736 = vset.pattern.permute.xlu0 0
    %737 = vperm.xlu0 %736, %v679
    %v738 = vpop.permute.xlu0 %737
    %741 = vset.pattern.permute.xlu0 0
    %742 = vperm.xlu0 %741, %v680
    %v743 = vpop.permute.xlu0 %742
    %746 = vset.pattern.permute.xlu0 0
    %747 = vperm.xlu0 %746, %v681
    %v748 = vpop.permute.xlu0 %747
    %751 = vset.pattern.permute.xlu0 0
    %752 = vperm.xlu0 %751, %v682
    %v753 = vpop.permute.xlu0 %752
    %756 = vset.pattern.permute.xlu0 0
    %757 = vperm.xlu0 %756, %v683
    %v758 = vpop.permute.xlu0 %757
    %761 = vset.pattern.permute.xlu0 0
    %762 = vperm.xlu0 %761, %v684
    %v763 = vpop.permute.xlu0 %762
    %766 = vset.pattern.permute.xlu0 0
    %767 = vperm.xlu0 %766, %v685
    %v768 = vpop.permute.xlu0 %767
    %771 = vset.pattern.permute.xlu0 0
    %772 = vperm.xlu0 %771, %v686
    %v773 = vpop.permute.xlu0 %772
    %776 = vset.pattern.permute.xlu0 0
    %777 = vperm.xlu0 %776, %v687
    %v778 = vpop.permute.xlu0 %777
    %781 = vset.pattern.permute.xlu0 0
    %782 = vperm.xlu0 %781, %v688
    %v783 = vpop.permute.xlu0 %782
    %786 = vset.pattern.permute.xlu0 0
    %787 = vperm.xlu0 %786, %v689
    %v788 = vpop.permute.xlu0 %787
    %791 = vset.pattern.permute.xlu0 0
    %792 = vperm.xlu0 %791, %v690
    %v793 = vpop.permute.xlu0 %792
    %796 = vset.pattern.permute.xlu0 0
    %797 = vperm.xlu0 %796, %v691
    %v798 = vpop.permute.xlu0 %797
    %801 = vset.pattern.permute.xlu0 0
    %802 = vperm.xlu0 %801, %v692
    %v803 = vpop.permute.xlu0 %802
    %806 = vset.pattern.permute.xlu0 0
    %807 = vperm.xlu0 %806, %v693
    %v808 = vpop.permute.xlu0 %807
    %811 = vset.pattern.permute.xlu0 0
    %812 = vperm.xlu0 %811, %v694
    %v813 = vpop.permute.xlu0 %812
    %816 = vset.pattern.permute.xlu0 0
    %817 = vperm.xlu0 %816, %v695
    %v818 = vpop.permute.xlu0 %817
    %821 = vset.pattern.permute.xlu0 0
    %822 = vperm.xlu0 %821, %v696
    %v823 = vpop.permute.xlu0 %822
    %826 = vset.pattern.permute.xlu0 0
    %827 = vperm.xlu0 %826, %v697
    %v828 = vpop.permute.xlu0 %827
    %831 = vset.pattern.permute.xlu0 0
    %832 = vperm.xlu0 %831, %v698
    %v833 = vpop.permute.xlu0 %832
    %836 = vset.pattern.permute.xlu0 0
    %837 = vperm.xlu0 %836, %v699
    %v838 = vpop.permute.xlu0 %837
    %841 = vset.pattern.permute.xlu0 0
    %842 = vperm.xlu0 %841, %v700
    %v843 = vpop.permute.xlu0 %842
    %846 = vset.pattern.permute.xlu0 0
    %847 = vperm.xlu0 %846, %v701
    %v848 = vpop.permute.xlu0 %847
    %851 = vset.pattern.permute.xlu0 0
    %852 = vperm.xlu0 %851, %v702
    %v853 = vpop.permute.xlu0 %852
    %856 = vset.pattern.permute.xlu0 0
    %857 = vperm.xlu0 %856, %v703
    %v858 = vpop.permute.xlu0 %857
    %861 = vset.pattern.permute.xlu0 0
    %862 = vperm.xlu0 %861, %v704
    %v863 = vpop.permute.xlu0 %862
    %866 = vset.pattern.permute.xlu0 0
    %867 = vperm.xlu0 %866, %v705
    %v868 = vpop.permute.xlu0 %867
    %871 = vset.pattern.permute.xlu0 0
    %872 = vperm.xlu0 %871, %v706
    %v873 = vpop.permute.xlu0 %872
    %876 = vset.pattern.permute.xlu0 0
    %877 = vperm.xlu0 %876, %v707
    %v878 = vpop.permute.xlu0 %877
    %881 = vset.pattern.permute.xlu0 0
    %882 = vperm.xlu0 %881, %v708
    %v883 = vpop.permute.xlu0 %882
    %886 = vset.pattern.permute.xlu0 0
    %887 = vperm.xlu0 %886, %v709
    %v888 = vpop.permute.xlu0 %887
    %891 = vset.pattern.permute.xlu0 0
    %892 = vperm.xlu0 %891, %v710
    %v893 = vpop.permute.xlu0 %892
    %896 = vset.pattern.permute.xlu0 0
    %897 = vperm.xlu0 %896, %v711
    %v898 = vpop.permute.xlu0 %897
    %901 = vset.pattern.permute.xlu0 0
    %902 = vperm.xlu0 %901, %v712
    %v903 = vpop.permute.xlu0 %902
    %906 = vset.pattern.permute.xlu0 0
    %907 = vperm.xlu0 %906, %v713
    %v908 = vpop.permute.xlu0 %907
    %911 = vset.pattern.permute.xlu0 0
    %912 = vperm.xlu0 %911, %v714
    %v913 = vpop.permute.xlu0 %912
    %vm915 = vcmask 261120
    %v917 = vsel %vm915, %v596, 0
    %v920 = vsel %vm915, %v598, 0
    %v923 = vsel %vm915, %v600, 0
    %v926 = vsel %vm915, %v602, 0
    %v929 = vsel %vm915, %v604, 0
    %v932 = vsel %vm915, %v606, 0
    %v935 = vsel %vm915, %v608, 0
    %v938 = vsel %vm915, %v610, 0
    %v941 = vsel %vm915, %v612, 0
    %v944 = vsel %vm915, %v614, 0
    %v947 = vsel %vm915, %v616, 0
    %v950 = vsel %vm915, %v618, 0
    %v953 = vsel %vm915, %v620, 0
    %v956 = vsel %vm915, %v622, 0
    %v959 = vsel %vm915, %v624, 0
    %v962 = vsel %vm915, %v626, 0
    %v965 = vsel %vm915, %v628, 0
    %v968 = vsel %vm915, %v630, 0
    %v971 = vsel %vm915, %v632, 0
    %v974 = vsel %vm915, %v634, 0
    %v977 = vsel %vm915, %v636, 0
    %v980 = vsel %vm915, %v638, 0
    %v983 = vsel %vm915, %v640, 0
    %v986 = vsel %vm915, %v642, 0
    %v989 = vsel %vm915, %v644, 0
    %v992 = vsel %vm915, %v646, 0
    %v995 = vsel %vm915, %v648, 0
    %v998 = vsel %vm915, %v650, 0
    %v1001 = vsel %vm915, %v652, 0
    %v1004 = vsel %vm915, %v654, 0
    %v1007 = vsel %vm915, %v656, 0
    %v1010 = vsel %vm915, %v658, 0
    %v1013 = vsel %vm915, %v660, 0
    %v1016 = vsel %vm915, %v662, 0
    %v1019 = vsel %vm915, %v664, 0
    %v1022 = vsel %vm915, %v666, 0
    %v1025 = vsel %vm915, %v668, 0
    %v1028 = vsel %vm915, %v670, 0
    %v1031 = vsel %vm915, %v672, 0
    %v1034 = vsel %vm915, %v674, 0
    %1036 = vmatprep.subr.mxu0 %v556
    %1037 = vmatpush1.msra.mxu0 %v555
    %1038 = vmatprep.subr.mxu0 %v558
    %1039 = vmatpush1.msra.mxu0 %v557
    %1040 = vmatprep.subr.mxu0 %v560
    %1041 = vmatpush1.msra.mxu0 %v559
    %1042 = vmatprep.subr.mxu0 %v562
    %1043 = vmatpush1.msra.mxu0 %v561
    %1044 = vmatprep.subr.mxu0 %v564
    %1045 = vmatpush1.msra.mxu0 %v563
    %1046 = vmatprep.subr.mxu0 %v566
    %1047 = vmatpush1.msra.mxu0 %v565
    %1048 = vmatprep.subr.mxu0 %v568
    %1049 = vmatpush1.msra.mxu0 %v567
    %1050 = vmatprep.subr.mxu0 %v570
    %1051 = vmatpush1.msra.mxu0 %v569
    %1052 = vmatprep.subr.mxu0 %v572
    %1053 = vmatpush1.msra.mxu0 %v571
    %1054 = vmatprep.subr.mxu0 %v574
    %1055 = vmatpush1.msra.mxu0 %v573
    %1056 = vmatprep.subr.mxu0 %v576
    %1057 = vmatpush1.msra.mxu0 %v575
    %1058 = vmatprep.subr.mxu0 %v578
    %1059 = vmatpush1.msra.mxu0 %v577
    %1060 = vmatprep.subr.mxu0 %v580
    %1061 = vmatpush1.msra.mxu0 %v579
    %1062 = vmatprep.subr.mxu0 %v582
    %1063 = vmatpush1.msra.mxu0 %v581
    %1064 = vmatprep.subr.mxu0 %v584
    %1065 = vmatpush1.msra.mxu0 %v583
    %1066 = vmatprep.subr.mxu0 %v586
    %1067 = vmatpush1.msra.mxu0 %v585
    %1068 = vmatprep.subr.mxu0 %v588
    %1069 = vmatpush1.msra.mxu0 %v587
    %1070 = vmatprep.subr.mxu0 %v590
    %1071 = vmatpush1.msra.mxu0 %v589
    %1072 = vmatprep.subr.mxu0 %v592
    %1073 = vmatpush1.msra.mxu0 %v591
    %1074 = vmatprep.subr.mxu0 %v594
    %1075 = vmatpush1.msra.mxu0 %v593
    %1076 = vmatprep.subr.mxu0 0.0
    %1077 = vmatpush1.msra.mxu0 0.0
    %1078 = vmatprep.subr.mxu0 0.0
    %1079 = vmatpush1.msra.mxu0 0.0
    %1080 = vmatprep.subr.mxu0 0.0
    %1081 = vmatpush1.msra.mxu0 0.0
    %1082 = vmatprep.subr.mxu0 0.0
    %1083 = vmatpush1.msra.mxu0 0.0
    %1084 = vmatprep.subr.mxu0 0.0
    %1085 = vmatpush1.msra.mxu0 0.0
    %1086 = vmatprep.subr.mxu0 0.0
    %1087 = vmatpush1.msra.mxu0 0.0
    %1088 = vmatprep.subr.mxu0 0.0
    %1089 = vmatpush1.msra.mxu0 0.0
    %1090 = vmatprep.subr.mxu0 0.0
    %1091 = vmatpush1.msra.mxu0 0.0
    %1092 = vmatprep.subr.mxu0 0.0
    %1093 = vmatpush1.msra.mxu0 0.0
    %1094 = vmatprep.subr.mxu0 0.0
    %1095 = vmatpush1.msra.mxu0 0.0
    %1096 = vmatprep.subr.mxu0 0.0
    %1097 = vmatpush1.msra.mxu0 0.0
    %1098 = vmatprep.subr.mxu0 0.0
    %1099 = vmatpush1.msra.mxu0 0.0
    %1100 = vmatprep.mubr.f32.mxu0 %v917
    %1101 = vmatmul.mubr.f32.gmra.mrb[0].mxu0 %v595
    %v1102 = vpop.f32.mrb[0].mxu0
    %v1103 = vadd.f32 %v718, %v1102
    %v1104 = vpop.f32.mrb[0].mxu0
    %v1105 = vadd.f32 %v718, %v1104
    %1106 = vmatprep.mubr.f32.mxu0 %v920
    %1107 = vmatmul.mubr.f32.gmra.mrb[0].mxu0 %v597
    %v1108 = vpop.f32.mrb[0].mxu0
    %v1109 = vadd.f32 %v723, %v1108
    %v1110 = vpop.f32.mrb[0].mxu0
    %v1111 = vadd.f32 %v723, %v1110
    %1112 = vmatprep.mubr.f32.mxu0 %v923
    %1113 = vmatmul.mubr.f32.gmra.mrb[0].mxu0 %v599
    %v1114 = vpop.f32.mrb[0].mxu0
    %v1115 = vadd.f32 %v728, %v1114
    %v1116 = vpop.f32.mrb[0].mxu0
    %v1117 = vadd.f32 %v728, %v1116
    %1118 = vmatprep.mubr.f32.mxu0 %v926
    %1119 = vmatmul.mubr.f32.gmra.mrb[0].mxu0 %v601
    %v1120 = vpop.f32.mrb[0].mxu0
    %v1121 = vadd.f32 %v733, %v1120
    %v1122 = vpop.f32.mrb[0].mxu0
    %v1123 = vadd.f32 %v733, %v1122
    %1124 = vmatprep.mubr.f32.mxu0 %v929
    %1125 = vmatmul.mubr.f32.gmra.mrb[0].mxu0 %v603
    %v1126 = vpop.f32.mrb[0].mxu0
    %v1127 = vadd.f32 %v738, %v1126
    %v1128 = vpop.f32.mrb[0].mxu0
    %v1129 = vadd.f32 %v738, %v1128
    %1130 = vmatprep.mubr.f32.mxu0 %v932
    %1131 = vmatmul.mubr.f32.gmra.mrb[0].mxu0 %v605
    %v1132 = vpop.f32.mrb[0].mxu0
    %v1133 = vadd.f32 %v743, %v1132
    %v1134 = vpop.f32.mrb[0].mxu0
    %v1135 = vadd.f32 %v743, %v1134
    %1136 = vmatprep.mubr.f32.mxu0 %v935
    %1137 = vmatmul.mubr.f32.gmra.mrb[0].mxu0 %v607
    %v1138 = vpop.f32.mrb[0].mxu0
    %v1139 = vadd.f32 %v748, %v1138
    %v1140 = vpop.f32.mrb[0].mxu0
    %v1141 = vadd.f32 %v748, %v1140
    %1142 = vmatprep.mubr.f32.mxu0 %v938
    %1143 = vmatmul.mubr.f32.gmra.mrb[0].mxu0 %v609
    %v1144 = vpop.f32.mrb[0].mxu0
    %v1145 = vadd.f32 %v753, %v1144
    %v1146 = vpop.f32.mrb[0].mxu0
    %v1147 = vadd.f32 %v753, %v1146
    %1148 = vmatprep.mubr.f32.mxu0 %v941
    %1149 = vmatmul.mubr.f32.gmra.mrb[0].mxu0 %v611
    %v1150 = vpop.f32.mrb[0].mxu0
    %v1151 = vadd.f32 %v758, %v1150
    %v1152 = vpop.f32.mrb[0].mxu0
    %v1153 = vadd.f32 %v758, %v1152
    %1154 = vmatprep.mubr.f32.mxu0 %v944
    %1155 = vmatmul.mubr.f32.gmra.mrb[0].mxu0 %v613
    %v1156 = vpop.f32.mrb[0].mxu0
    %v1157 = vadd.f32 %v763, %v1156
    %v1158 = vpop.f32.mrb[0].mxu0
    %v1159 = vadd.f32 %v763, %v1158
    %1160 = vmatprep.mubr.f32.mxu0 %v947
    %1161 = vmatmul.mubr.f32.gmra.mrb[0].mxu0 %v615
    %v1162 = vpop.f32.mrb[0].mxu0
    %v1163 = vadd.f32 %v768, %v1162
    %v1164 = vpop.f32.mrb[0].mxu0
    %v1165 = vadd.f32 %v768, %v1164
    %1166 = vmatprep.mubr.f32.mxu0 %v950
    %1167 = vmatmul.mubr.f32.gmra.mrb[0].mxu0 %v617
    %v1168 = vpop.f32.mrb[0].mxu0
    %v1169 = vadd.f32 %v773, %v1168
    %v1170 = vpop.f32.mrb[0].mxu0
    %v1171 = vadd.f32 %v773, %v1170
    %1172 = vmatprep.mubr.f32.mxu0 %v953
    %1173 = vmatmul.mubr.f32.gmra.mrb[0].mxu0 %v619
    %v1174 = vpop.f32.mrb[0].mxu0
    %v1175 = vadd.f32 %v778, %v1174
    %v1176 = vpop.f32.mrb[0].mxu0
    %v1177 = vadd.f32 %v778, %v1176
    %1178 = vmatprep.mubr.f32.mxu0 %v956
    %1179 = vmatmul.mubr.f32.gmra.mrb[0].mxu0 %v621
    %v1180 = vpop.f32.mrb[0].mxu0
    %v1181 = vadd.f32 %v783, %v1180
    %v1182 = vpop.f32.mrb[0].mxu0
    %v1183 = vadd.f32 %v783, %v1182
    %1184 = vmatprep.mubr.f32.mxu0 %v959
    %1185 = vmatmul.mubr.f32.gmra.mrb[0].mxu0 %v623
    %v1186 = vpop.f32.mrb[0].mxu0
    %v1187 = vadd.f32 %v788, %v1186
    %v1188 = vpop.f32.mrb[0].mxu0
    %v1189 = vadd.f32 %v788, %v1188
    %1190 = vmatprep.mubr.f32.mxu0 %v962
    %1191 = vmatmul.mubr.f32.gmra.mrb[0].mxu0 %v625
    %v1192 = vpop.f32.mrb[0].mxu0
    %v1193 = vadd.f32 %v793, %v1192
    %v1194 = vpop.f32.mrb[0].mxu0
    %v1195 = vadd.f32 %v793, %v1194
    %1196 = vmatprep.mubr.f32.mxu0 %v965
    %1197 = vmatmul.mubr.f32.gmra.mrb[0].mxu0 %v627
    %v1198 = vpop.f32.mrb[0].mxu0
    %v1199 = vadd.f32 %v798, %v1198
    %v1200 = vpop.f32.mrb[0].mxu0
    %v1201 = vadd.f32 %v798, %v1200
    %1202 = vmatprep.mubr.f32.mxu0 %v968
    %1203 = vmatmul.mubr.f32.gmra.mrb[0].mxu0 %v629
    %v1204 = vpop.f32.mrb[0].mxu0
    %v1205 = vadd.f32 %v803, %v1204
    %v1206 = vpop.f32.mrb[0].mxu0
    %v1207 = vadd.f32 %v803, %v1206
    %1208 = vmatprep.mubr.f32.mxu0 %v971
    %1209 = vmatmul.mubr.f32.gmra.mrb[0].mxu0 %v631
    %v1210 = vpop.f32.mrb[0].mxu0
    %v1211 = vadd.f32 %v808, %v1210
    %v1212 = vpop.f32.mrb[0].mxu0
    %v1213 = vadd.f32 %v808, %v1212
    %1214 = vmatprep.mubr.f32.mxu0 %v974
    %1215 = vmatmul.mubr.f32.gmra.mrb[0].mxu0 %v633
    %v1216 = vpop.f32.mrb[0].mxu0
    %v1217 = vadd.f32 %v813, %v1216
    %v1218 = vpop.f32.mrb[0].mxu0
    %v1219 = vadd.f32 %v813, %v1218
    %1220 = vmatprep.mubr.f32.mxu0 %v977
    %1221 = vmatmul.mubr.f32.gmra.mrb[0].mxu0 %v635
    %v1222 = vpop.f32.mrb[0].mxu0
    %v1223 = vadd.f32 %v818, %v1222
    %v1224 = vpop.f32.mrb[0].mxu0
    %v1225 = vadd.f32 %v818, %v1224
    %1226 = vmatprep.mubr.f32.mxu0 %v980
    %1227 = vmatmul.mubr.f32.gmra.mrb[0].mxu0 %v637
    %v1228 = vpop.f32.mrb[0].mxu0
    %v1229 = vadd.f32 %v823, %v1228
    %v1230 = vpop.f32.mrb[0].mxu0
    %v1231 = vadd.f32 %v823, %v1230
    %1232 = vmatprep.mubr.f32.mxu0 %v983
    %1233 = vmatmul.mubr.f32.gmra.mrb[0].mxu0 %v639
    %v1234 = vpop.f32.mrb[0].mxu0
    %v1235 = vadd.f32 %v828, %v1234
    %v1236 = vpop.f32.mrb[0].mxu0
    %v1237 = vadd.f32 %v828, %v1236
    %1238 = vmatprep.mubr.f32.mxu0 %v986
    %1239 = vmatmul.mubr.f32.gmra.mrb[0].mxu0 %v641
    %v1240 = vpop.f32.mrb[0].mxu0
    %v1241 = vadd.f32 %v833, %v1240
    %v1242 = vpop.f32.mrb[0].mxu0
    %v1243 = vadd.f32 %v833, %v1242
    %1244 = vmatprep.mubr.f32.mxu0 %v989
    %1245 = vmatmul.mubr.f32.gmra.mrb[0].mxu0 %v643
    %v1246 = vpop.f32.mrb[0].mxu0
    %v1247 = vadd.f32 %v838, %v1246
    %v1248 = vpop.f32.mrb[0].mxu0
    %v1249 = vadd.f32 %v838, %v1248
    %1250 = vmatprep.mubr.f32.mxu0 %v992
    %1251 = vmatmul.mubr.f32.gmra.mrb[0].mxu0 %v645
    %v1252 = vpop.f32.mrb[0].mxu0
    %v1253 = vadd.f32 %v843, %v1252
    %v1254 = vpop.f32.mrb[0].mxu0
    %v1255 = vadd.f32 %v843, %v1254
    %1256 = vmatprep.mubr.f32.mxu0 %v995
    %1257 = vmatmul.mubr.f32.gmra.mrb[0].mxu0 %v647
    %v1258 = vpop.f32.mrb[0].mxu0
    %v1259 = vadd.f32 %v848, %v1258
    %v1260 = vpop.f32.mrb[0].mxu0
    %v1261 = vadd.f32 %v848, %v1260
    %1262 = vmatprep.mubr.f32.mxu0 %v998
    %1263 = vmatmul.mubr.f32.gmra.mrb[0].mxu0 %v649
    %v1264 = vpop.f32.mrb[0].mxu0
    %v1265 = vadd.f32 %v853, %v1264
    %v1266 = vpop.f32.mrb[0].mxu0
    %v1267 = vadd.f32 %v853, %v1266
    %1268 = vmatprep.mubr.f32.mxu0 %v1001
    %1269 = vmatmul.mubr.f32.gmra.mrb[0].mxu0 %v651
    %v1270 = vpop.f32.mrb[0].mxu0
    %v1271 = vadd.f32 %v858, %v1270
    %v1272 = vpop.f32.mrb[0].mxu0
    %v1273 = vadd.f32 %v858, %v1272
    %1274 = vmatprep.mubr.f32.mxu0 %v1004
    %1275 = vmatmul.mubr.f32.gmra.mrb[0].mxu0 %v653
    %v1276 = vpop.f32.mrb[0].mxu0
    %v1277 = vadd.f32 %v863, %v1276
    %v1278 = vpop.f32.mrb[0].mxu0
    %v1279 = vadd.f32 %v863, %v1278
    %1280 = vmatprep.mubr.f32.mxu0 %v1007
    %1281 = vmatmul.mubr.f32.gmra.mrb[0].mxu0 %v655
    %v1282 = vpop.f32.mrb[0].mxu0
    %v1283 = vadd.f32 %v868, %v1282
    %v1284 = vpop.f32.mrb[0].mxu0
    %v1285 = vadd.f32 %v868, %v1284
    %1286 = vmatprep.mubr.f32.mxu0 %v1010
    %1287 = vmatmul.mubr.f32.gmra.mrb[0].mxu0 %v657
    %v1288 = vpop.f32.mrb[0].mxu0
    %v1289 = vadd.f32 %v873, %v1288
    %v1290 = vpop.f32.mrb[0].mxu0
    %v1291 = vadd.f32 %v873, %v1290
    %1292 = vmatprep.mubr.f32.mxu0 %v1013
    %1293 = vmatmul.mubr.f32.gmra.mrb[0].mxu0 %v659
    %v1294 = vpop.f32.mrb[0].mxu0
    %v1295 = vadd.f32 %v878, %v1294
    %v1296 = vpop.f32.mrb[0].mxu0
    %v1297 = vadd.f32 %v878, %v1296
    %1298 = vmatprep.mubr.f32.mxu0 %v1016
    %1299 = vmatmul.mubr.f32.gmra.mrb[0].mxu0 %v661
    %v1300 = vpop.f32.mrb[0].mxu0
    %v1301 = vadd.f32 %v883, %v1300
    %v1302 = vpop.f32.mrb[0].mxu0
    %v1303 = vadd.f32 %v883, %v1302
    %1304 = vmatprep.mubr.f32.mxu0 %v1019
    %1305 = vmatmul.mubr.f32.gmra.mrb[0].mxu0 %v663
    %v1306 = vpop.f32.mrb[0].mxu0
    %v1307 = vadd.f32 %v888, %v1306
    %v1308 = vpop.f32.mrb[0].mxu0
    %v1309 = vadd.f32 %v888, %v1308
    %1310 = vmatprep.mubr.f32.mxu0 %v1022
    %1311 = vmatmul.mubr.f32.gmra.mrb[0].mxu0 %v665
    %v1312 = vpop.f32.mrb[0].mxu0
    %v1313 = vadd.f32 %v893, %v1312
    %v1314 = vpop.f32.mrb[0].mxu0
    %v1315 = vadd.f32 %v893, %v1314
    %1316 = vmatprep.mubr.f32.mxu0 %v1025
    %1317 = vmatmul.mubr.f32.gmra.mrb[0].mxu0 %v667
    %v1318 = vpop.f32.mrb[0].mxu0
    %v1319 = vadd.f32 %v898, %v1318
    %v1320 = vpop.f32.mrb[0].mxu0
    %v1321 = vadd.f32 %v898, %v1320
    %1322 = vmatprep.mubr.f32.mxu0 %v1028
    %1323 = vmatmul.mubr.f32.gmra.mrb[0].mxu0 %v669
    %v1324 = vpop.f32.mrb[0].mxu0
    %v1325 = vadd.f32 %v903, %v1324
    %v1326 = vpop.f32.mrb[0].mxu0
    %v1327 = vadd.f32 %v903, %v1326
    %1328 = vmatprep.mubr.f32.mxu0 %v1031
    %1329 = vmatmul.mubr.f32.gmra.mrb[0].mxu0 %v671
    %v1330 = vpop.f32.mrb[0].mxu0
    %v1331 = vadd.f32 %v908, %v1330
    %v1332 = vpop.f32.mrb[0].mxu0
    %v1333 = vadd.f32 %v908, %v1332
    %1334 = vmatprep.mubr.f32.mxu0 %v1034
    %1335 = vmatmul.mubr.f32.gmra.mrb[0].mxu0 %v673
    %v1336 = vpop.f32.mrb[0].mxu0
    %v1337 = vadd.f32 %v913, %v1336
    %v1338 = vpop.f32.mrb[0].mxu0
    %v1339 = vadd.f32 %v913, %v1338
    %1340 = vdwg.mxu0
    %v1341 = vmax.f32 %v1103, 0.0
    %v1342 = vmax.f32 %v1105, 0.0
    %v1343 = vmax.f32 %v1109, 0.0
    %v1344 = vmax.f32 %v1111, 0.0
    %v1345 = vmax.f32 %v1115, 0.0
    %v1346 = vmax.f32 %v1117, 0.0
    %v1347 = vmax.f32 %v1121, 0.0
    %v1348 = vmax.f32 %v1123, 0.0
    %v1349 = vmax.f32 %v1127, 0.0
    %v1350 = vmax.f32 %v1129, 0.0
    %v1351 = vmax.f32 %v1133, 0.0
    %v1352 = vmax.f32 %v1135, 0.0
    %v1353 = vmax.f32 %v1139, 0.0
    %v1354 = vmax.f32 %v1141, 0.0
    %v1355 = vmax.f32 %v1145, 0.0
    %v1356 = vmax.f32 %v1147, 0.0
    %v1357 = vmax.f32 %v1151, 0.0
    %v1358 = vmax.f32 %v1153, 0.0
    %v1359 = vmax.f32 %v1157, 0.0
    %v1360 = vmax.f32 %v1159, 0.0
    %v1361 = vmax.f32 %v1163, 0.0
    %v1362 = vmax.f32 %v1165, 0.0
    %v1363 = vmax.f32 %v1169, 0.0
    %v1364 = vmax.f32 %v1171, 0.0
    %v1365 = vmax.f32 %v1175, 0.0
    %v1366 = vmax.f32 %v1177, 0.0
    %v1367 = vmax.f32 %v1181, 0.0
    %v1368 = vmax.f32 %v1183, 0.0
    %v1369 = vmax.f32 %v1187, 0.0
    %v1370 = vmax.f32 %v1189, 0.0
    %v1371 = vmax.f32 %v1193, 0.0
    %v1372 = vmax.f32 %v1195, 0.0
    %v1373 = vmax.f32 %v1199, 0.0
    %v1374 = vmax.f32 %v1201, 0.0
    %v1375 = vmax.f32 %v1205, 0.0
    %v1376 = vmax.f32 %v1207, 0.0
    %v1377 = vmax.f32 %v1211, 0.0
    %v1378 = vmax.f32 %v1213, 0.0
    %v1379 = vmax.f32 %v1217, 0.0
    %v1380 = vmax.f32 %v1219, 0.0
    %v1381 = vmax.f32 %v1223, 0.0
    %v1382 = vmax.f32 %v1225, 0.0
    %v1383 = vmax.f32 %v1229, 0.0
    %v1384 = vmax.f32 %v1231, 0.0
    %v1385 = vmax.f32 %v1235, 0.0
    %v1386 = vmax.f32 %v1237, 0.0
    %v1387 = vmax.f32 %v1241, 0.0
    %v1388 = vmax.f32 %v1243, 0.0
    %v1389 = vmax.f32 %v1247, 0.0
    %v1390 = vmax.f32 %v1249, 0.0
    %v1391 = vmax.f32 %v1253, 0.0
    %v1392 = vmax.f32 %v1255, 0.0
    %v1393 = vmax.f32 %v1259, 0.0
    %v1394 = vmax.f32 %v1261, 0.0
    %v1395 = vmax.f32 %v1265, 0.0
    %v1396 = vmax.f32 %v1267, 0.0
    %v1397 = vmax.f32 %v1271, 0.0
    %v1398 = vmax.f32 %v1273, 0.0
    %v1399 = vmax.f32 %v1277, 0.0
    %v1400 = vmax.f32 %v1279, 0.0
    %v1401 = vmax.f32 %v1283, 0.0
    %v1402 = vmax.f32 %v1285, 0.0
    %v1403 = vmax.f32 %v1289, 0.0
    %v1404 = vmax.f32 %v1291, 0.0
    %v1405 = vmax.f32 %v1295, 0.0
    %v1406 = vmax.f32 %v1297, 0.0
    %v1407 = vmax.f32 %v1301, 0.0
    %v1408 = vmax.f32 %v1303, 0.0
    %v1409 = vmax.f32 %v1307, 0.0
    %v1410 = vmax.f32 %v1309, 0.0
    %v1411 = vmax.f32 %v1313, 0.0
    %v1412 = vmax.f32 %v1315, 0.0
    %v1413 = vmax.f32 %v1319, 0.0
    %v1414 = vmax.f32 %v1321, 0.0
    %v1415 = vmax.f32 %v1325, 0.0
    %v1416 = vmax.f32 %v1327, 0.0
    %v1417 = vmax.f32 %v1331, 0.0
    %v1418 = vmax.f32 %v1333, 0.0
    %v1419 = vmax.f32 %v1337, 0.0
    %v1420 = vmax.f32 %v1339, 0.0
    %v1421 = vld [vmem:[%s5] sm:$0xff]
    %v1422 = vld [vmem:[%s5 + $0x8] sm:$0xff]
    %v1423 = vld [vmem:[%s5 + $0x10] sm:$0xff]
    %v1424 = vld [vmem:[%s5 + $0x18] sm:$0xff]
    %v1425 = vld [vmem:[%s5 + $0x20] sm:$0xff]
    %v1426 = vld [vmem:[%s5 + $0x28] sm:$0xff]
    %v1427 = vld [vmem:[%s5 + $0x30] sm:$0xff]
    %v1428 = vld [vmem:[%s5 + $0x38] sm:$0xff]
    %v1429 = vld [vmem:[%s5 + $0x40] sm:$0xff]
    %v1430 = vld [vmem:[%s5 + $0x48] sm:$0xff]
    %v1431 = vld [vmem:[%s5 + $0x50] sm:$0xff]
    %v1432 = vld [vmem:[%s5 + $0x58] sm:$0xff]
    %v1433 = vld [vmem:[%s5 + $0x60] sm:$0xff]
    %v1434 = vld [vmem:[%s5 + $0x68] sm:$0xff]
    %v1435 = vld [vmem:[%s5 + $0x70] sm:$0xff]
    %v1436 = vld [vmem:[%s5 + $0x78] sm:$0xff]
    %v1437 = vld [vmem:[%s5 + $0x80] sm:$0xff]
    %v1438 = vld [vmem:[%s5 + $0x88] sm:$0xff]
    %v1439 = vld [vmem:[%s5 + $0x90] sm:$0xff]
    %v1440 = vld [vmem:[%s5 + $0x98] sm:$0xff]
    %v1441 = vld [vmem:[%s5 + $0xa0] sm:$0xff]
    %v1442 = vld [vmem:[%s5 + $0xa8] sm:$0xff]
    %v1443 = vld [vmem:[%s5 + $0xb0] sm:$0xff]
    %v1444 = vld [vmem:[%s5 + $0xb8] sm:$0xff]
    %v1445 = vld [vmem:[%s5 + $0xc0] sm:$0xff]
    %v1446 = vld [vmem:[%s5 + $0xc8] sm:$0xff]
    %v1447 = vld [vmem:[%s5 + $0xd0] sm:$0xff]
    %v1448 = vld [vmem:[%s5 + $0xd8] sm:$0xff]
    %v1449 = vld [vmem:[%s5 + $0xe0] sm:$0xff]
    %v1450 = vld [vmem:[%s5 + $0xe8] sm:$0xff]
    %v1451 = vld [vmem:[%s5 + $0xf0] sm:$0xff]
    %v1452 = vld [vmem:[%s5 + $0xf8] sm:$0xff]
    %v1453 = vld [vmem:[%s5 + $0x100] sm:$0xff]
    %v1454 = vld [vmem:[%s5 + $0x108] sm:$0xff]
    %v1455 = vld [vmem:[%s5 + $0x110] sm:$0xff]
    %v1456 = vld [vmem:[%s5 + $0x118] sm:$0xff]
    %v1457 = vld [vmem:[%s5 + $0x120] sm:$0xff]
    %v1458 = vld [vmem:[%s5 + $0x128] sm:$0xff]
    %v1459 = vld [vmem:[%s5 + $0x130] sm:$0xff]
    %v1460 = vld [vmem:[%s5 + $0x138] sm:$0xff]
    %v1461 = vld [vmem:[%s5 + $0x140] sm:$0xff]
    %v1462 = vld [vmem:[%s5 + $0x148] sm:$0xff]
    %v1463 = vld [vmem:[%s5 + $0x150] sm:$0xff]
    %v1464 = vld [vmem:[%s5 + $0x158] sm:$0xff]
    %v1465 = vld [vmem:[%s5 + $0x160] sm:$0xff]
    %v1466 = vld [vmem:[%s5 + $0x168] sm:$0xff]
    %v1467 = vld [vmem:[%s5 + $0x170] sm:$0xff]
    %v1468 = vld [vmem:[%s5 + $0x178] sm:$0xff]
    %v1469 = vld [vmem:[%s5 + $0x180] sm:$0xff]
    %v1470 = vld [vmem:[%s5 + $0x188] sm:$0xff]
    %v1471 = vld [vmem:[%s5 + $0x190] sm:$0xff]
    %v1472 = vld [vmem:[%s5 + $0x198] sm:$0xff]
    %v1473 = vld [vmem:[%s5 + $0x1a0] sm:$0xff]
    %v1474 = vld [vmem:[%s5 + $0x1a8] sm:$0xff]
    %v1475 = vld [vmem:[%s5 + $0x1b0] sm:$0xff]
    %v1476 = vld [vmem:[%s5 + $0x1b8] sm:$0xff]
    %v1477 = vld [vmem:[%s5 + $0x1c0] sm:$0xff]
    %v1478 = vld [vmem:[%s5 + $0x1c8] sm:$0xff]
    %v1479 = vld [vmem:[%s5 + $0x1d0] sm:$0xff]
    %v1480 = vld [vmem:[%s5 + $0x1d8] sm:$0xff]
    %v1481 = vld [vmem:[%s5 + $0x1e0] sm:$0xff]
    %v1482 = vld [vmem:[%s5 + $0x1e8] sm:$0xff]
    %v1483 = vld [vmem:[%s5 + $0x1f0] sm:$0xff]
    %v1484 = vld [vmem:[%s5 + $0x1f8] sm:$0xff]
    %v1485 = vld [vmem:[%s5 + $0x200] sm:$0xff]
    %v1486 = vld [vmem:[%s5 + $0x208] sm:$0xff]
    %v1487 = vld [vmem:[%s5 + $0x210] sm:$0xff]
    %v1488 = vld [vmem:[%s5 + $0x218] sm:$0xff]
    %v1489 = vld [vmem:[%s5 + $0x220] sm:$0xff]
    %v1490 = vld [vmem:[%s5 + $0x228] sm:$0xff]
    %v1491 = vld [vmem:[%s5 + $0x230] sm:$0xff]
    %v1492 = vld [vmem:[%s5 + $0x238] sm:$0xff]
    %v1493 = vld [vmem:[%s5 + $0x240] sm:$0xff]
    %v1494 = vld [vmem:[%s5 + $0x248] sm:$0xff]
    %v1495 = vld [vmem:[%s5 + $0x250] sm:$0xff]
    %v1496 = vld [vmem:[%s5 + $0x258] sm:$0xff]
    %v1497 = vld [vmem:[%s5 + $0x260] sm:$0xff]
    %v1498 = vld [vmem:[%s5 + $0x268] sm:$0xff]
    %v1499 = vld [vmem:[%s5 + $0x270] sm:$0xff]
    %v1500 = vld [vmem:[%s5 + $0x278] sm:$0xff]
    %v1501 = vld [vmem:[%s5 + $0x280] sm:$0xff]
    %v1502 = vld [vmem:[%s5 + $0x288] sm:$0xff]
    %v1503 = vld [vmem:[%s5 + $0x290] sm:$0xff]
    %v1504 = vld [vmem:[%s5 + $0x298] sm:$0xff]
    %v1505 = vld [vmem:[%s5 + $0x2a0] sm:$0xff]
    %v1506 = vld [vmem:[%s5 + $0x2a8] sm:$0xff]
    %v1507 = vld [vmem:[%s5 + $0x2b0] sm:$0xff]
    %v1508 = vld [vmem:[%s5 + $0x2b8] sm:$0xff]
    %v1509 = vld [vmem:[%s5 + $0x2c0] sm:$0xff]
    %v1510 = vld [vmem:[%s5 + $0x2c8] sm:$0xff]
    %v1511 = vld [vmem:[%s5 + $0x2d0] sm:$0xff]
    %v1512 = vld [vmem:[%s5 + $0x2d8] sm:$0xff]
    %v1513 = vld [vmem:[%s5 + $0x2e0] sm:$0xff]
    %v1514 = vld [vmem:[%s5 + $0x2e8] sm:$0xff]
    %v1515 = vld [vmem:[%s5 + $0x2f0] sm:$0xff]
    %v1516 = vld [vmem:[%s5 + $0x2f8] sm:$0xff]
    %v1517 = vld [vmem:[%s5 + $0x300] sm:$0xff]
    %v1518 = vld [vmem:[%s5 + $0x308] sm:$0xff]
    %v1519 = vld [vmem:[%s5 + $0x310] sm:$0xff]
    %v1520 = vld [vmem:[%s5 + $0x318] sm:$0xff]
    %v1521 = vld [vmem:[%s5 + $0x320] sm:$0xff]
    %v1522 = vld [vmem:[%s5 + $0x328] sm:$0xff]
    %v1523 = vld [vmem:[%s5 + $0x330] sm:$0xff]
    %v1524 = vld [vmem:[%s5 + $0x338] sm:$0xff]
    %v1525 = vld [vmem:[%s5 + $0x340] sm:$0xff]
    %v1526 = vld [vmem:[%s5 + $0x348] sm:$0xff]
    %v1527 = vld [vmem:[%s5 + $0x350] sm:$0xff]
    %v1528 = vld [vmem:[%s5 + $0x358] sm:$0xff]
    %v1529 = vld [vmem:[%s5 + $0x360] sm:$0xff]
    %v1530 = vld [vmem:[%s5 + $0x368] sm:$0xff]
    %v1531 = vld [vmem:[%s5 + $0x370] sm:$0xff]
    %v1532 = vld [vmem:[%s5 + $0x378] sm:$0xff]
    %v1533 = vld [vmem:[%s5 + $0x380] sm:$0xff]
    %v1534 = vld [vmem:[%s5 + $0x388] sm:$0xff]
    %v1535 = vld [vmem:[%s5 + $0x390] sm:$0xff]
    %v1536 = vld [vmem:[%s5 + $0x398] sm:$0xff]
    %v1537 = vld [vmem:[%s5 + $0x3a0] sm:$0xff]
    %v1538 = vld [vmem:[%s5 + $0x3a8] sm:$0xff]
    %v1539 = vld [vmem:[%s5 + $0x3b0] sm:$0xff]
    %v1540 = vld [vmem:[%s5 + $0x3b8] sm:$0xff]
    %v1541 = vld [vmem:[%s5 + $0x3c0] sm:$0xff]
    %v1542 = vld [vmem:[%s5 + $0x3c8] sm:$0xff]
    %v1543 = vld [vmem:[%s5 + $0x3d0] sm:$0xff]
    %v1544 = vld [vmem:[%s5 + $0x3d8] sm:$0xff]
    %v1545 = vld [vmem:[%s5 + $0x3e0] sm:$0xff]
    %v1546 = vld [vmem:[%s5 + $0x3e8] sm:$0xff]
    %v1547 = vld [vmem:[%s5 + $0x3f0] sm:$0xff]
    %v1548 = vld [vmem:[%s5 + $0x3f8] sm:$0xff]
    %v1549 = vld [vmem:[%s5 + $0x400] sm:$0xff]
    %v1550 = vld [vmem:[%s5 + $0x408] sm:$0xff]
    %v1551 = vld [vmem:[%s5 + $0x410] sm:$0xff]
    %v1552 = vld [vmem:[%s5 + $0x418] sm:$0xff]
    %v1553 = vld [vmem:[%s5 + $0x420] sm:$0xff]
    %v1554 = vld [vmem:[%s5 + $0x428] sm:$0xff]
    %v1555 = vld [vmem:[%s5 + $0x430] sm:$0xff]
    %v1556 = vld [vmem:[%s5 + $0x438] sm:$0xff]
    %v1557 = vld [vmem:[%s5 + $0x440] sm:$0xff]
    %v1558 = vld [vmem:[%s5 + $0x448] sm:$0xff]
    %v1559 = vld [vmem:[%s5 + $0x450] sm:$0xff]
    %v1560 = vld [vmem:[%s5 + $0x458] sm:$0xff]
    %v1561 = vld [vmem:[%s5 + $0x460] sm:$0xff]
    %v1562 = vld [vmem:[%s5 + $0x468] sm:$0xff]
    %v1563 = vld [vmem:[%s5 + $0x470] sm:$0xff]
    %v1564 = vld [vmem:[%s5 + $0x478] sm:$0xff]
    %v1565 = vld [vmem:[%s5 + $0x480] sm:$0xff]
    %v1566 = vld [vmem:[%s5 + $0x488] sm:$0xff]
    %v1567 = vld [vmem:[%s5 + $0x490] sm:$0xff]
    %v1568 = vld [vmem:[%s5 + $0x498] sm:$0xff]
    %v1569 = vld [vmem:[%s5 + $0x4a0] sm:$0xff]
    %v1570 = vld [vmem:[%s5 + $0x4a8] sm:$0xff]
    %v1571 = vld [vmem:[%s5 + $0x4b0] sm:$0xff]
    %v1572 = vld [vmem:[%s5 + $0x4b8] sm:$0xff]
    %v1573 = vld [vmem:[%s5 + $0x4c0] sm:$0xff]
    %v1574 = vld [vmem:[%s5 + $0x4c8] sm:$0xff]
    %v1575 = vld [vmem:[%s5 + $0x4d0] sm:$0xff]
    %v1576 = vld [vmem:[%s5 + $0x4d8] sm:$0xff]
    %v1577 = vld [vmem:[%s5 + $0x4e0] sm:$0xff]
    %v1578 = vld [vmem:[%s5 + $0x4e8] sm:$0xff]
    %v1579 = vld [vmem:[%s5 + $0x4f0] sm:$0xff]
    %v1580 = vld [vmem:[%s5 + $0x4f8] sm:$0xff]
    %v1581 = vld [vmem:[%s5 + $0x500] sm:$0xff]
    %v1582 = vld [vmem:[%s5 + $0x508] sm:$0xff]
    %v1583 = vld [vmem:[%s5 + $0x510] sm:$0xff]
    %v1584 = vld [vmem:[%s5 + $0x518] sm:$0xff]
    %v1585 = vld [vmem:[%s5 + $0x520] sm:$0xff]
    %v1586 = vld [vmem:[%s5 + $0x528] sm:$0xff]
    %v1587 = vld [vmem:[%s5 + $0x530] sm:$0xff]
    %v1588 = vld [vmem:[%s5 + $0x538] sm:$0xff]
    %v1589 = vld [vmem:[%s5 + $0x540] sm:$0xff]
    %v1590 = vld [vmem:[%s5 + $0x548] sm:$0xff]
    %v1591 = vld [vmem:[%s5 + $0x550] sm:$0xff]
    %v1592 = vld [vmem:[%s5 + $0x558] sm:$0xff]
    %v1593 = vld [vmem:[%s5 + $0x560] sm:$0xff]
    %v1594 = vld [vmem:[%s5 + $0x568] sm:$0xff]
    %v1595 = vld [vmem:[%s5 + $0x570] sm:$0xff]
    %v1596 = vld [vmem:[%s5 + $0x578] sm:$0xff]
    %v1597 = vld [vmem:[%s5 + $0x580] sm:$0xff]
    %v1598 = vld [vmem:[%s5 + $0x588] sm:$0xff]
    %v1599 = vld [vmem:[%s5 + $0x590] sm:$0xff]
    %v1600 = vld [vmem:[%s5 + $0x598] sm:$0xff]
    %v1601 = vld [vmem:[%s5 + $0x5a0] sm:$0xff]
    %v1602 = vld [vmem:[%s5 + $0x5a8] sm:$0xff]
    %v1603 = vld [vmem:[%s5 + $0x5b0] sm:$0xff]
    %v1604 = vld [vmem:[%s5 + $0x5b8] sm:$0xff]
    %v1605 = vld [vmem:[%s5 + $0x5c0] sm:$0xff]
    %v1606 = vld [vmem:[%s5 + $0x5c8] sm:$0xff]
    %v1607 = vld [vmem:[%s5 + $0x5d0] sm:$0xff]
    %v1608 = vld [vmem:[%s5 + $0x5d8] sm:$0xff]
    %v1609 = vld [vmem:[%s5 + $0x5e0] sm:$0xff]
    %v1610 = vld [vmem:[%s5 + $0x5e8] sm:$0xff]
    %v1611 = vld [vmem:[%s5 + $0x5f0] sm:$0xff]
    %v1612 = vld [vmem:[%s5 + $0x5f8] sm:$0xff]
    %v1613 = vld [vmem:[%s5 + $0x600] sm:$0xff]
    %v1614 = vld [vmem:[%s5 + $0x608] sm:$0xff]
    %v1615 = vld [vmem:[%s5 + $0x610] sm:$0xff]
    %v1616 = vld [vmem:[%s5 + $0x618] sm:$0xff]
    %v1617 = vld [vmem:[%s5 + $0x620] sm:$0xff]
    %v1618 = vld [vmem:[%s5 + $0x628] sm:$0xff]
    %v1619 = vld [vmem:[%s5 + $0x630] sm:$0xff]
    %v1620 = vld [vmem:[%s5 + $0x638] sm:$0xff]
    %v1621 = vld [vmem:[%s5 + $0x640] sm:$0xff]
    %v1622 = vld [vmem:[%s5 + $0x648] sm:$0xff]
    %v1623 = vld [vmem:[%s5 + $0x650] sm:$0xff]
    %v1624 = vld [vmem:[%s5 + $0x658] sm:$0xff]
    %v1625 = vld [vmem:[%s5 + $0x660] sm:$0xff]
    %v1626 = vld [vmem:[%s5 + $0x668] sm:$0xff]
    %v1627 = vld [vmem:[%s5 + $0x670] sm:$0xff]
    %v1628 = vld [vmem:[%s5 + $0x678] sm:$0xff]
    %v1629 = vld [vmem:[%s5 + $0x680] sm:$0xff]
    %v1630 = vld [vmem:[%s5 + $0x688] sm:$0xff]
    %v1631 = vld [vmem:[%s5 + $0x690] sm:$0xff]
    %v1632 = vld [vmem:[%s5 + $0x698] sm:$0xff]
    %v1633 = vld [vmem:[%s5 + $0x6a0] sm:$0xff]
    %v1634 = vld [vmem:[%s5 + $0x6a8] sm:$0xff]
    %v1635 = vld [vmem:[%s5 + $0x6b0] sm:$0xff]
    %v1636 = vld [vmem:[%s5 + $0x6b8] sm:$0xff]
    %v1637 = vld [vmem:[%s5 + $0x6c0] sm:$0xff]
    %v1638 = vld [vmem:[%s5 + $0x6c8] sm:$0xff]
    %v1639 = vld [vmem:[%s5 + $0x6d0] sm:$0xff]
    %v1640 = vld [vmem:[%s5 + $0x6d8] sm:$0xff]
    %v1641 = vld [vmem:[%s5 + $0x6e0] sm:$0xff]
    %v1642 = vld [vmem:[%s5 + $0x6e8] sm:$0xff]
    %v1643 = vld [vmem:[%s5 + $0x6f0] sm:$0xff]
    %v1644 = vld [vmem:[%s5 + $0x6f8] sm:$0xff]
    %v1645 = vld [vmem:[%s5 + $0x700] sm:$0xff]
    %v1646 = vld [vmem:[%s5 + $0x708] sm:$0xff]
    %v1647 = vld [vmem:[%s5 + $0x710] sm:$0xff]
    %v1648 = vld [vmem:[%s5 + $0x718] sm:$0xff]
    %v1649 = vld [vmem:[%s5 + $0x720] sm:$0xff]
    %v1650 = vld [vmem:[%s5 + $0x728] sm:$0xff]
    %v1651 = vld [vmem:[%s5 + $0x730] sm:$0xff]
    %v1652 = vld [vmem:[%s5 + $0x738] sm:$0xff]
    %v1653 = vld [vmem:[%s5 + $0x740] sm:$0xff]
    %v1654 = vld [vmem:[%s5 + $0x748] sm:$0xff]
    %v1655 = vld [vmem:[%s5 + $0x750] sm:$0xff]
    %v1656 = vld [vmem:[%s5 + $0x758] sm:$0xff]
    %v1657 = vld [vmem:[%s5 + $0x760] sm:$0xff]
    %v1658 = vld [vmem:[%s5 + $0x768] sm:$0xff]
    %v1659 = vld [vmem:[%s5 + $0x770] sm:$0xff]
    %v1660 = vld [vmem:[%s5 + $0x778] sm:$0xff]
    %v1661 = vld [vmem:[%s6] sm:$0xff]
    %v1662 = vld [vmem:[%s6 + $0x8] sm:$0xff]
    %v1663 = vld [vmem:[%s6 + $0x10] sm:$0xff]
    %v1664 = vld [vmem:[%s6 + $0x18] sm:$0xff]
    %v1665 = vld [vmem:[%s6 + $0x20] sm:$0xff]
    %v1666 = vld [vmem:[%s6 + $0x28] sm:$0xff]
    %v1667 = vld [vmem:[%s6 + $0x30] sm:$0xff]
    %v1668 = vld [vmem:[%s6 + $0x38] sm:$0xff]
    %v1669 = vld [vmem:[%s6 + $0x40] sm:$0xff]
    %v1670 = vld [vmem:[%s6 + $0x48] sm:$0xff]
    %v1671 = vld [vmem:[%s6 + $0x50] sm:$0xff]
    %v1672 = vld [vmem:[%s6 + $0x58] sm:$0xff]
    %v1673 = vld [vmem:[%s6 + $0x60] sm:$0xff]
    %v1674 = vld [vmem:[%s6 + $0x68] sm:$0xff]
    %v1675 = vld [vmem:[%s6 + $0x70] sm:$0xff]
    %v1676 = vld [vmem:[%s6 + $0x78] sm:$0xff]
    %v1677 = vld [vmem:[%s6 + $0x80] sm:$0xff]
    %v1678 = vld [vmem:[%s6 + $0x88] sm:$0xff]
    %v1679 = vld [vmem:[%s6 + $0x90] sm:$0xff]
    %v1680 = vld [vmem:[%s6 + $0x98] sm:$0xff]
    %v1681 = vld [vmem:[%s6 + $0xa0] sm:$0xff]
    %v1682 = vld [vmem:[%s6 + $0xa8] sm:$0xff]
    %v1683 = vld [vmem:[%s6 + $0xb0] sm:$0xff]
    %v1684 = vld [vmem:[%s6 + $0xb8] sm:$0xff]
    %v1685 = vld [vmem:[%s6 + $0xc0] sm:$0xff]
    %v1686 = vld [vmem:[%s6 + $0xc8] sm:$0xff]
    %v1687 = vld [vmem:[%s6 + $0xd0] sm:$0xff]
    %v1688 = vld [vmem:[%s6 + $0xd8] sm:$0xff]
    %v1689 = vld [vmem:[%s6 + $0xe0] sm:$0xff]
    %v1690 = vld [vmem:[%s6 + $0xe8] sm:$0xff]
    %v1691 = vld [vmem:[%s6 + $0xf0] sm:$0xff]
    %v1692 = vld [vmem:[%s6 + $0xf8] sm:$0xff]
    %v1693 = vld [vmem:[%s6 + $0x100] sm:$0xff]
    %v1694 = vld [vmem:[%s6 + $0x108] sm:$0xff]
    %v1695 = vld [vmem:[%s6 + $0x110] sm:$0xff]
    %v1696 = vld [vmem:[%s6 + $0x118] sm:$0xff]
    %v1697 = vld [vmem:[%s6 + $0x120] sm:$0xff]
    %v1698 = vld [vmem:[%s6 + $0x128] sm:$0xff]
    %v1699 = vld [vmem:[%s6 + $0x130] sm:$0xff]
    %v1700 = vld [vmem:[%s6 + $0x138] sm:$0xff]
    %v1701 = vld [vmem:[%s6 + $0x140] sm:$0xff]
    %v1702 = vld [vmem:[%s6 + $0x148] sm:$0xff]
    %v1703 = vld [vmem:[%s6 + $0x150] sm:$0xff]
    %v1704 = vld [vmem:[%s6 + $0x158] sm:$0xff]
    %v1705 = vld [vmem:[%s6 + $0x160] sm:$0xff]
    %v1706 = vld [vmem:[%s6 + $0x168] sm:$0xff]
    %v1707 = vld [vmem:[%s6 + $0x170] sm:$0xff]
    %v1708 = vld [vmem:[%s6 + $0x178] sm:$0xff]
    %v1709 = vld [vmem:[%s6 + $0x180] sm:$0xff]
    %v1710 = vld [vmem:[%s6 + $0x188] sm:$0xff]
    %v1711 = vld [vmem:[%s6 + $0x190] sm:$0xff]
    %v1712 = vld [vmem:[%s6 + $0x198] sm:$0xff]
    %v1713 = vld [vmem:[%s6 + $0x1a0] sm:$0xff]
    %v1714 = vld [vmem:[%s6 + $0x1a8] sm:$0xff]
    %v1715 = vld [vmem:[%s6 + $0x1b0] sm:$0xff]
    %v1716 = vld [vmem:[%s6 + $0x1b8] sm:$0xff]
    %v1717 = vld [vmem:[%s6 + $0x1c0] sm:$0xff]
    %v1718 = vld [vmem:[%s6 + $0x1c8] sm:$0xff]
    %v1719 = vld [vmem:[%s6 + $0x1d0] sm:$0xff]
    %v1720 = vld [vmem:[%s6 + $0x1d8] sm:$0xff]
    %v1721 = vld [vmem:[%s6 + $0x1e0] sm:$0xff]
    %v1722 = vld [vmem:[%s6 + $0x1e8] sm:$0xff]
    %v1723 = vld [vmem:[%s6 + $0x1f0] sm:$0xff]
    %v1724 = vld [vmem:[%s6 + $0x1f8] sm:$0xff]
    %v1725 = vld [vmem:[%s6 + $0x200] sm:$0xff]
    %v1726 = vld [vmem:[%s6 + $0x208] sm:$0xff]
    %v1727 = vld [vmem:[%s6 + $0x210] sm:$0xff]
    %v1728 = vld [vmem:[%s6 + $0x218] sm:$0xff]
    %v1729 = vld [vmem:[%s6 + $0x220] sm:$0xff]
    %v1730 = vld [vmem:[%s6 + $0x228] sm:$0xff]
    %v1731 = vld [vmem:[%s6 + $0x230] sm:$0xff]
    %v1732 = vld [vmem:[%s6 + $0x238] sm:$0xff]
    %v1733 = vld [vmem:[%s6 + $0x240] sm:$0xff]
    %v1734 = vld [vmem:[%s6 + $0x248] sm:$0xff]
    %v1735 = vld [vmem:[%s6 + $0x250] sm:$0xff]
    %v1736 = vld [vmem:[%s6 + $0x258] sm:$0xff]
    %v1737 = vld [vmem:[%s6 + $0x260] sm:$0xff]
    %v1738 = vld [vmem:[%s6 + $0x268] sm:$0xff]
    %v1739 = vld [vmem:[%s6 + $0x270] sm:$0xff]
    %v1740 = vld [vmem:[%s6 + $0x278] sm:$0xff]
    %1742 = vset.pattern.permute.xlu0 0
    %1743 = vperm.xlu0 %1742, %v1661
    %v1744 = vpop.permute.xlu0 %1743
    %1747 = vset.pattern.permute.xlu0 0
    %1748 = vperm.xlu0 %1747, %v1662
    %v1749 = vpop.permute.xlu0 %1748
    %1752 = vset.pattern.permute.xlu0 0
    %1753 = vperm.xlu0 %1752, %v1663
    %v1754 = vpop.permute.xlu0 %1753
    %1757 = vset.pattern.permute.xlu0 0
    %1758 = vperm.xlu0 %1757, %v1664
    %v1759 = vpop.permute.xlu0 %1758
    %1762 = vset.pattern.permute.xlu0 0
    %1763 = vperm.xlu0 %1762, %v1665
    %v1764 = vpop.permute.xlu0 %1763
    %1767 = vset.pattern.permute.xlu0 0
    %1768 = vperm.xlu0 %1767, %v1666
    %v1769 = vpop.permute.xlu0 %1768
    %1772 = vset.pattern.permute.xlu0 0
    %1773 = vperm.xlu0 %1772, %v1667
    %v1774 = vpop.permute.xlu0 %1773
    %1777 = vset.pattern.permute.xlu0 0
    %1778 = vperm.xlu0 %1777, %v1668
    %v1779 = vpop.permute.xlu0 %1778
    %1782 = vset.pattern.permute.xlu0 0
    %1783 = vperm.xlu0 %1782, %v1669
    %v1784 = vpop.permute.xlu0 %1783
    %1787 = vset.pattern.permute.xlu0 0
    %1788 = vperm.xlu0 %1787, %v1670
    %v1789 = vpop.permute.xlu0 %1788
    %1792 = vset.pattern.permute.xlu0 0
    %1793 = vperm.xlu0 %1792, %v1671
    %v1794 = vpop.permute.xlu0 %1793
    %1797 = vset.pattern.permute.xlu0 0
    %1798 = vperm.xlu0 %1797, %v1672
    %v1799 = vpop.permute.xlu0 %1798
    %1802 = vset.pattern.permute.xlu0 0
    %1803 = vperm.xlu0 %1802, %v1673
    %v1804 = vpop.permute.xlu0 %1803
    %1807 = vset.pattern.permute.xlu0 0
    %1808 = vperm.xlu0 %1807, %v1674
    %v1809 = vpop.permute.xlu0 %1808
    %1812 = vset.pattern.permute.xlu0 0
    %1813 = vperm.xlu0 %1812, %v1675
    %v1814 = vpop.permute.xlu0 %1813
    %1817 = vset.pattern.permute.xlu0 0
    %1818 = vperm.xlu0 %1817, %v1676
    %v1819 = vpop.permute.xlu0 %1818
    %1822 = vset.pattern.permute.xlu0 0
    %1823 = vperm.xlu0 %1822, %v1677
    %v1824 = vpop.permute.xlu0 %1823
    %1827 = vset.pattern.permute.xlu0 0
    %1828 = vperm.xlu0 %1827, %v1678
    %v1829 = vpop.permute.xlu0 %1828
    %1832 = vset.pattern.permute.xlu0 0
    %1833 = vperm.xlu0 %1832, %v1679
    %v1834 = vpop.permute.xlu0 %1833
    %1837 = vset.pattern.permute.xlu0 0
    %1838 = vperm.xlu0 %1837, %v1680
    %v1839 = vpop.permute.xlu0 %1838
    %1842 = vset.pattern.permute.xlu0 0
    %1843 = vperm.xlu0 %1842, %v1681
    %v1844 = vpop.permute.xlu0 %1843
    %1847 = vset.pattern.permute.xlu0 0
    %1848 = vperm.xlu0 %1847, %v1682
    %v1849 = vpop.permute.xlu0 %1848
    %1852 = vset.pattern.permute.xlu0 0
    %1853 = vperm.xlu0 %1852, %v1683
    %v1854 = vpop.permute.xlu0 %1853
    %1857 = vset.pattern.permute.xlu0 0
    %1858 = vperm.xlu0 %1857, %v1684
    %v1859 = vpop.permute.xlu0 %1858
    %1862 = vset.pattern.permute.xlu0 0
    %1863 = vperm.xlu0 %1862, %v1685
    %v1864 = vpop.permute.xlu0 %1863
    %1867 = vset.pattern.permute.xlu0 0
    %1868 = vperm.xlu0 %1867, %v1686
    %v1869 = vpop.permute.xlu0 %1868
    %1872 = vset.pattern.permute.xlu0 0
    %1873 = vperm.xlu0 %1872, %v1687
    %v1874 = vpop.permute.xlu0 %1873
    %1877 = vset.pattern.permute.xlu0 0
    %1878 = vperm.xlu0 %1877, %v1688
    %v1879 = vpop.permute.xlu0 %1878
    %1882 = vset.pattern.permute.xlu0 0
    %1883 = vperm.xlu0 %1882, %v1689
    %v1884 = vpop.permute.xlu0 %1883
    %1887 = vset.pattern.permute.xlu0 0
    %1888 = vperm.xlu0 %1887, %v1690
    %v1889 = vpop.permute.xlu0 %1888
    %1892 = vset.pattern.permute.xlu0 0
    %1893 = vperm.xlu0 %1892, %v1691
    %v1894 = vpop.permute.xlu0 %1893
    %1897 = vset.pattern.permute.xlu0 0
    %1898 = vperm.xlu0 %1897, %v1692
    %v1899 = vpop.permute.xlu0 %1898
    %1902 = vset.pattern.permute.xlu0 0
    %1903 = vperm.xlu0 %1902, %v1693
    %v1904 = vpop.permute.xlu0 %1903
    %1907 = vset.pattern.permute.xlu0 0
    %1908 = vperm.xlu0 %1907, %v1694
    %v1909 = vpop.permute.xlu0 %1908
    %1912 = vset.pattern.permute.xlu0 0
    %1913 = vperm.xlu0 %1912, %v1695
    %v1914 = vpop.permute.xlu0 %1913
    %1917 = vset.pattern.permute.xlu0 0
    %1918 = vperm.xlu0 %1917, %v1696
    %v1919 = vpop.permute.xlu0 %1918
    %1922 = vset.pattern.permute.xlu0 0
    %1923 = vperm.xlu0 %1922, %v1697
    %v1924 = vpop.permute.xlu0 %1923
    %1927 = vset.pattern.permute.xlu0 0
    %1928 = vperm.xlu0 %1927, %v1698
    %v1929 = vpop.permute.xlu0 %1928
    %1932 = vset.pattern.permute.xlu0 0
    %1933 = vperm.xlu0 %1932, %v1699
    %v1934 = vpop.permute.xlu0 %1933
    %1937 = vset.pattern.permute.xlu0 0
    %1938 = vperm.xlu0 %1937, %v1700
    %v1939 = vpop.permute.xlu0 %1938
    %1942 = vset.pattern.permute.xlu0 0
    %1943 = vperm.xlu0 %1942, %v1701
    %v1944 = vpop.permute.xlu0 %1943
    %1947 = vset.pattern.permute.xlu0 0
    %1948 = vperm.xlu0 %1947, %v1702
    %v1949 = vpop.permute.xlu0 %1948
    %1952 = vset.pattern.permute.xlu0 0
    %1953 = vperm.xlu0 %1952, %v1703
    %v1954 = vpop.permute.xlu0 %1953
    %1957 = vset.pattern.permute.xlu0 0
    %1958 = vperm.xlu0 %1957, %v1704
    %v1959 = vpop.permute.xlu0 %1958
    %1962 = vset.pattern.permute.xlu0 0
    %1963 = vperm.xlu0 %1962, %v1705
    %v1964 = vpop.permute.xlu0 %1963
    %1967 = vset.pattern.permute.xlu0 0
    %1968 = vperm.xlu0 %1967, %v1706
    %v1969 = vpop.permute.xlu0 %1968
    %1972 = vset.pattern.permute.xlu0 0
    %1973 = vperm.xlu0 %1972, %v1707
    %v1974 = vpop.permute.xlu0 %1973
    %1977 = vset.pattern.permute.xlu0 0
    %1978 = vperm.xlu0 %1977, %v1708
    %v1979 = vpop.permute.xlu0 %1978
    %1982 = vset.pattern.permute.xlu0 0
    %1983 = vperm.xlu0 %1982, %v1709
    %v1984 = vpop.permute.xlu0 %1983
    %1987 = vset.pattern.permute.xlu0 0
    %1988 = vperm.xlu0 %1987, %v1710
    %v1989 = vpop.permute.xlu0 %1988
    %1992 = vset.pattern.permute.xlu0 0
    %1993 = vperm.xlu0 %1992, %v1711
    %v1994 = vpop.permute.xlu0 %1993
    %1997 = vset.pattern.permute.xlu0 0
    %1998 = vperm.xlu0 %1997, %v1712
    %v1999 = vpop.permute.xlu0 %1998
    %2002 = vset.pattern.permute.xlu0 0
    %2003 = vperm.xlu0 %2002, %v1713
    %v2004 = vpop.permute.xlu0 %2003
    %2007 = vset.pattern.permute.xlu0 0
    %2008 = vperm.xlu0 %2007, %v1714
    %v2009 = vpop.permute.xlu0 %2008
    %2012 = vset.pattern.permute.xlu0 0
    %2013 = vperm.xlu0 %2012, %v1715
    %v2014 = vpop.permute.xlu0 %2013
    %2017 = vset.pattern.permute.xlu0 0
    %2018 = vperm.xlu0 %2017, %v1716
    %v2019 = vpop.permute.xlu0 %2018
    %2022 = vset.pattern.permute.xlu0 0
    %2023 = vperm.xlu0 %2022, %v1717
    %v2024 = vpop.permute.xlu0 %2023
    %2027 = vset.pattern.permute.xlu0 0
    %2028 = vperm.xlu0 %2027, %v1718
    %v2029 = vpop.permute.xlu0 %2028
    %2032 = vset.pattern.permute.xlu0 0
    %2033 = vperm.xlu0 %2032, %v1719
    %v2034 = vpop.permute.xlu0 %2033
    %2037 = vset.pattern.permute.xlu0 0
    %2038 = vperm.xlu0 %2037, %v1720
    %v2039 = vpop.permute.xlu0 %2038
    %2042 = vset.pattern.permute.xlu0 0
    %2043 = vperm.xlu0 %2042, %v1721
    %v2044 = vpop.permute.xlu0 %2043
    %2047 = vset.pattern.permute.xlu0 0
    %2048 = vperm.xlu0 %2047, %v1722
    %v2049 = vpop.permute.xlu0 %2048
    %2052 = vset.pattern.permute.xlu0 0
    %2053 = vperm.xlu0 %2052, %v1723
    %v2054 = vpop.permute.xlu0 %2053
    %2057 = vset.pattern.permute.xlu0 0
    %2058 = vperm.xlu0 %2057, %v1724
    %v2059 = vpop.permute.xlu0 %2058
    %2062 = vset.pattern.permute.xlu0 0
    %2063 = vperm.xlu0 %2062, %v1725
    %v2064 = vpop.permute.xlu0 %2063
    %2067 = vset.pattern.permute.xlu0 0
    %2068 = vperm.xlu0 %2067, %v1726
    %v2069 = vpop.permute.xlu0 %2068
    %2072 = vset.pattern.permute.xlu0 0
    %2073 = vperm.xlu0 %2072, %v1727
    %v2074 = vpop.permute.xlu0 %2073
    %2077 = vset.pattern.permute.xlu0 0
    %2078 = vperm.xlu0 %2077, %v1728
    %v2079 = vpop.permute.xlu0 %2078
    %2082 = vset.pattern.permute.xlu0 0
    %2083 = vperm.xlu0 %2082, %v1729
    %v2084 = vpop.permute.xlu0 %2083
    %2087 = vset.pattern.permute.xlu0 0
    %2088 = vperm.xlu0 %2087, %v1730
    %v2089 = vpop.permute.xlu0 %2088
    %2092 = vset.pattern.permute.xlu0 0
    %2093 = vperm.xlu0 %2092, %v1731
    %v2094 = vpop.permute.xlu0 %2093
    %2097 = vset.pattern.permute.xlu0 0
    %2098 = vperm.xlu0 %2097, %v1732
    %v2099 = vpop.permute.xlu0 %2098
    %2102 = vset.pattern.permute.xlu0 0
    %2103 = vperm.xlu0 %2102, %v1733
    %v2104 = vpop.permute.xlu0 %2103
    %2107 = vset.pattern.permute.xlu0 0
    %2108 = vperm.xlu0 %2107, %v1734
    %v2109 = vpop.permute.xlu0 %2108
    %2112 = vset.pattern.permute.xlu0 0
    %2113 = vperm.xlu0 %2112, %v1735
    %v2114 = vpop.permute.xlu0 %2113
    %2117 = vset.pattern.permute.xlu0 0
    %2118 = vperm.xlu0 %2117, %v1736
    %v2119 = vpop.permute.xlu0 %2118
    %2122 = vset.pattern.permute.xlu0 0
    %2123 = vperm.xlu0 %2122, %v1737
    %v2124 = vpop.permute.xlu0 %2123
    %2127 = vset.pattern.permute.xlu0 0
    %2128 = vperm.xlu0 %2127, %v1738
    %v2129 = vpop.permute.xlu0 %2128
    %2132 = vset.pattern.permute.xlu0 0
    %2133 = vperm.xlu0 %2132, %v1739
    %v2134 = vpop.permute.xlu0 %2133
    %2137 = vset.pattern.permute.xlu0 0
    %2138 = vperm.xlu0 %2137, %v1740
    %v2139 = vpop.permute.xlu0 %2138
    %vm2141 = vcmask 523264
    %v2143 = vsel %vm2141, %v1423, 0
    %v2146 = vsel %vm2141, %v1426, 0
    %v2149 = vsel %vm2141, %v1429, 0
    %v2152 = vsel %vm2141, %v1432, 0
    %v2155 = vsel %vm2141, %v1435, 0
    %v2158 = vsel %vm2141, %v1438, 0
    %v2161 = vsel %vm2141, %v1441, 0
    %v2164 = vsel %vm2141, %v1444, 0
    %v2167 = vsel %vm2141, %v1447, 0
    %v2170 = vsel %vm2141, %v1450, 0
    %v2173 = vsel %vm2141, %v1453, 0
    %v2176 = vsel %vm2141, %v1456, 0
    %v2179 = vsel %vm2141, %v1459, 0
    %v2182 = vsel %vm2141, %v1462, 0
    %v2185 = vsel %vm2141, %v1465, 0
    %v2188 = vsel %vm2141, %v1468, 0
    %v2191 = vsel %vm2141, %v1471, 0
    %v2194 = vsel %vm2141, %v1474, 0
    %v2197 = vsel %vm2141, %v1477, 0
    %v2200 = vsel %vm2141, %v1480, 0
    %v2203 = vsel %vm2141, %v1483, 0
    %v2206 = vsel %vm2141, %v1486, 0
    %v2209 = vsel %vm2141, %v1489, 0
    %v2212 = vsel %vm2141, %v1492, 0
    %v2215 = vsel %vm2141, %v1495, 0
    %v2218 = vsel %vm2141, %v1498, 0
    %v2221 = vsel %vm2141, %v1501, 0
    %v2224 = vsel %vm2141, %v1504, 0
    %v2227 = vsel %vm2141, %v1507, 0
    %v2230 = vsel %vm2141, %v1510, 0
    %v2233 = vsel %vm2141, %v1513, 0
    %v2236 = vsel %vm2141, %v1516, 0
    %v2239 = vsel %vm2141, %v1519, 0
    %v2242 = vsel %vm2141, %v1522, 0
    %v2245 = vsel %vm2141, %v1525, 0
    %v2248 = vsel %vm2141, %v1528, 0
    %v2251 = vsel %vm2141, %v1531, 0
    %v2254 = vsel %vm2141, %v1534, 0
    %v2257 = vsel %vm2141, %v1537, 0
    %v2260 = vsel %vm2141, %v1540, 0
    %v2263 = vsel %vm2141, %v1543, 0
    %v2266 = vsel %vm2141, %v1546, 0
    %v2269 = vsel %vm2141, %v1549, 0
    %v2272 = vsel %vm2141, %v1552, 0
    %v2275 = vsel %vm2141, %v1555, 0
    %v2278 = vsel %vm2141, %v1558, 0
    %v2281 = vsel %vm2141, %v1561, 0
    %v2284 = vsel %vm2141, %v1564, 0
    %v2287 = vsel %vm2141, %v1567, 0
    %v2290 = vsel %vm2141, %v1570, 0
    %v2293 = vsel %vm2141, %v1573, 0
    %v2296 = vsel %vm2141, %v1576, 0
    %v2299 = vsel %vm2141, %v1579, 0
    %v2302 = vsel %vm2141, %v1582, 0
    %v2305 = vsel %vm2141, %v1585, 0
    %v2308 = vsel %vm2141, %v1588, 0
    %v2311 = vsel %vm2141, %v1591, 0
    %v2314 = vsel %vm2141, %v1594, 0
    %v2317 = vsel %vm2141, %v1597, 0
    %v2320 = vsel %vm2141, %v1600, 0
    %v2323 = vsel %vm2141, %v1603, 0
    %v2326 = vsel %vm2141, %v1606, 0
    %v2329 = vsel %vm2141, %v1609, 0
    %v2332 = vsel %vm2141, %v1612, 0
    %v2335 = vsel %vm2141, %v1615, 0
    %v2338 = vsel %vm2141, %v1618, 0
    %v2341 = vsel %vm2141, %v1621, 0
    %v2344 = vsel %vm2141, %v1624, 0
    %v2347 = vsel %vm2141, %v1627, 0
    %v2350 = vsel %vm2141, %v1630, 0
    %v2353 = vsel %vm2141, %v1633, 0
    %v2356 = vsel %vm2141, %v1636, 0
    %v2359 = vsel %vm2141, %v1639, 0
    %v2362 = vsel %vm2141, %v1642, 0
    %v2365 = vsel %vm2141, %v1645, 0
    %v2368 = vsel %vm2141, %v1648, 0
    %v2371 = vsel %vm2141, %v1651, 0
    %v2374 = vsel %vm2141, %v1654, 0
    %v2377 = vsel %vm2141, %v1657, 0
    %v2380 = vsel %vm2141, %v1660, 0
    %2382 = vmatprep.subr.mxu0 %v1342
    %2383 = vmatpush1.msra.mxu0 %v1341
    %2384 = vmatprep.subr.mxu0 %v1344
    %2385 = vmatpush1.msra.mxu0 %v1343
    %2386 = vmatprep.subr.mxu0 %v1346
    %2387 = vmatpush1.msra.mxu0 %v1345
    %2388 = vmatprep.subr.mxu0 %v1348
    %2389 = vmatpush1.msra.mxu0 %v1347
    %2390 = vmatprep.subr.mxu0 %v1350
    %2391 = vmatpush1.msra.mxu0 %v1349
    %2392 = vmatprep.subr.mxu0 %v1352
    %2393 = vmatpush1.msra.mxu0 %v1351
    %2394 = vmatprep.subr.mxu0 %v1354
    %2395 = vmatpush1.msra.mxu0 %v1353
    %2396 = vmatprep.subr.mxu0 %v1356
    %2397 = vmatpush1.msra.mxu0 %v1355
    %2398 = vmatprep.subr.mxu0 %v1358
    %2399 = vmatpush1.msra.mxu0 %v1357
    %2400 = vmatprep.subr.mxu0 %v1360
    %2401 = vmatpush1.msra.mxu0 %v1359
    %2402 = vmatprep.subr.mxu0 %v1362
    %2403 = vmatpush1.msra.mxu0 %v1361
    %2404 = vmatprep.subr.mxu0 %v1364
    %2405 = vmatpush1.msra.mxu0 %v1363
    %2406 = vmatprep.subr.mxu0 %v1366
    %2407 = vmatpush1.msra.mxu0 %v1365
    %2408 = vmatprep.subr.mxu0 %v1368
    %2409 = vmatpush1.msra.mxu0 %v1367
    %2410 = vmatprep.subr.mxu0 %v1370
    %2411 = vmatpush1.msra.mxu0 %v1369
    %2412 = vmatprep.subr.mxu0 %v1372
    %2413 = vmatpush1.msra.mxu0 %v1371
    %2414 = vmatprep.subr.mxu0 %v1374
    %2415 = vmatpush1.msra.mxu0 %v1373
    %2416 = vmatprep.subr.mxu0 %v1376
    %2417 = vmatpush1.msra.mxu0 %v1375
    %2418 = vmatprep.subr.mxu0 %v1378
    %2419 = vmatpush1.msra.mxu0 %v1377
    %2420 = vmatprep.subr.mxu0 %v1380
    %2421 = vmatpush1.msra.mxu0 %v1379
    %2422 = vmatprep.subr.mxu0 %v1382
    %2423 = vmatpush1.msra.mxu0 %v1381
    %2424 = vmatprep.subr.mxu0 %v1384
    %2425 = vmatpush1.msra.mxu0 %v1383
    %2426 = vmatprep.subr.mxu0 %v1386
    %2427 = vmatpush1.msra.mxu0 %v1385
    %2428 = vmatprep.subr.mxu0 %v1388
    %2429 = vmatpush1.msra.mxu0 %v1387
    %2430 = vmatprep.subr.mxu0 %v1390
    %2431 = vmatpush1.msra.mxu0 %v1389
    %2432 = vmatprep.subr.mxu0 %v1392
    %2433 = vmatpush1.msra.mxu0 %v1391
    %2434 = vmatprep.subr.mxu0 %v1394
    %2435 = vmatpush1.msra.mxu0 %v1393
    %2436 = vmatprep.subr.mxu0 %v1396
    %2437 = vmatpush1.msra.mxu0 %v1395
    %2438 = vmatprep.subr.mxu0 %v1398
    %2439 = vmatpush1.msra.mxu0 %v1397
    %2440 = vmatprep.subr.mxu0 %v1400
    %2441 = vmatpush1.msra.mxu0 %v1399
    %2442 = vmatprep.subr.mxu0 %v1402
    %2443 = vmatpush1.msra.mxu0 %v1401
    %2444 = vmatprep.subr.mxu0 %v1404
    %2445 = vmatpush1.msra.mxu0 %v1403
    %2446 = vmatprep.mubr.f32.mxu0 %v1422
    %2447 = vmatmul.mubr.f32.gmra.mrb[0].mxu0 %v1421
    %v2448 = vpop.f32.mrb[0].mxu0
    %v2449 = vadd.f32 %v1744, %v2448
    %v2450 = vpop.f32.mrb[0].mxu0
    %v2451 = vadd.f32 %v1744, %v2450
    %2452 = vmatprep.mubr.f32.mxu0 %v1425
    %2453 = vmatmul.mubr.f32.gmra.mrb[0].mxu0 %v1424
    %v2454 = vpop.f32.mrb[0].mxu0
    %v2455 = vadd.f32 %v1749, %v2454
    %v2456 = vpop.f32.mrb[0].mxu0
    %v2457 = vadd.f32 %v1749, %v2456
    %2458 = vmatprep.mubr.f32.mxu0 %v1428
    %2459 = vmatmul.mubr.f32.gmra.mrb[0].mxu0 %v1427
    %v2460 = vpop.f32.mrb[0].mxu0
    %v2461 = vadd.f32 %v1754, %v2460
    %v2462 = vpop.f32.mrb[0].mxu0
    %v2463 = vadd.f32 %v1754, %v2462
    %2464 = vmatprep.mubr.f32.mxu0 %v1431
    %2465 = vmatmul.mubr.f32.gmra.mrb[0].mxu0 %v1430
    %v2466 = vpop.f32.mrb[0].mxu0
    %v2467 = vadd.f32 %v1759, %v2466
    %v2468 = vpop.f32.mrb[0].mxu0
    %v2469 = vadd.f32 %v1759, %v2468
    %2470 = vmatprep.mubr.f32.mxu0 %v1434
    %2471 = vmatmul.mubr.f32.gmra.mrb[0].mxu0 %v1433
    %v2472 = vpop.f32.mrb[0].mxu0
    %v2473 = vadd.f32 %v1764, %v2472
    %v2474 = vpop.f32.mrb[0].mxu0
    %v2475 = vadd.f32 %v1764, %v2474
    %2476 = vmatprep.mubr.f32.mxu0 %v1437
    %2477 = vmatmul.mubr.f32.gmra.mrb[0].mxu0 %v1436
    %v2478 = vpop.f32.mrb[0].mxu0
    %v2479 = vadd.f32 %v1769, %v2478
    %v2480 = vpop.f32.mrb[0].mxu0
    %v2481 = vadd.f32 %v1769, %v2480
    %2482 = vmatprep.mubr.f32.mxu0 %v1440
    %2483 = vmatmul.mubr.f32.gmra.mrb[0].mxu0 %v1439
    %v2484 = vpop.f32.mrb[0].mxu0
    %v2485 = vadd.f32 %v1774, %v2484
    %v2486 = vpop.f32.mrb[0].mxu0
    %v2487 = vadd.f32 %v1774, %v2486
    %2488 = vmatprep.mubr.f32.mxu0 %v1443
    %2489 = vmatmul.mubr.f32.gmra.mrb[0].mxu0 %v1442
    %v2490 = vpop.f32.mrb[0].mxu0
    %v2491 = vadd.f32 %v1779, %v2490
    %v2492 = vpop.f32.mrb[0].mxu0
    %v2493 = vadd.f32 %v1779, %v2492
    %2494 = vmatprep.mubr.f32.mxu0 %v1446
    %2495 = vmatmul.mubr.f32.gmra.mrb[0].mxu0 %v1445
    %v2496 = vpop.f32.mrb[0].mxu0
    %v2497 = vadd.f32 %v1784, %v2496
    %v2498 = vpop.f32.mrb[0].mxu0
    %v2499 = vadd.f32 %v1784, %v2498
    %2500 = vmatprep.mubr.f32.mxu0 %v1449
    %2501 = vmatmul.mubr.f32.gmra.mrb[0].mxu0 %v1448
    %v2502 = vpop.f32.mrb[0].mxu0
    %v2503 = vadd.f32 %v1789, %v2502
    %v2504 = vpop.f32.mrb[0].mxu0
    %v2505 = vadd.f32 %v1789, %v2504
    %2506 = vmatprep.mubr.f32.mxu0 %v1452
    %2507 = vmatmul.mubr.f32.gmra.mrb[0].mxu0 %v1451
    %v2508 = vpop.f32.mrb[0].mxu0
    %v2509 = vadd.f32 %v1794, %v2508
    %v2510 = vpop.f32.mrb[0].mxu0
    %v2511 = vadd.f32 %v1794, %v2510
    %2512 = vmatprep.mubr.f32.mxu0 %v1455
    %2513 = vmatmul.mubr.f32.gmra.mrb[0].mxu0 %v1454
    %v2514 = vpop.f32.mrb[0].mxu0
    %v2515 = vadd.f32 %v1799, %v2514
    %v2516 = vpop.f32.mrb[0].mxu0
    %v2517 = vadd.f32 %v1799, %v2516
    %2518 = vmatprep.mubr.f32.mxu0 %v1458
    %2519 = vmatmul.mubr.f32.gmra.mrb[0].mxu0 %v1457
    %v2520 = vpop.f32.mrb[0].mxu0
    %v2521 = vadd.f32 %v1804, %v2520
    %v2522 = vpop.f32.mrb[0].mxu0
    %v2523 = vadd.f32 %v1804, %v2522
    %2524 = vmatprep.mubr.f32.mxu0 %v1461
    %2525 = vmatmul.mubr.f32.gmra.mrb[0].mxu0 %v1460
    %v2526 = vpop.f32.mrb[0].mxu0
    %v2527 = vadd.f32 %v1809, %v2526
    %v2528 = vpop.f32.mrb[0].mxu0
    %v2529 = vadd.f32 %v1809, %v2528
    %2530 = vmatprep.mubr.f32.mxu0 %v1464
    %2531 = vmatmul.mubr.f32.gmra.mrb[0].mxu0 %v1463
    %v2532 = vpop.f32.mrb[0].mxu0
    %v2533 = vadd.f32 %v1814, %v2532
    %v2534 = vpop.f32.mrb[0].mxu0
    %v2535 = vadd.f32 %v1814, %v2534
    %2536 = vmatprep.mubr.f32.mxu0 %v1467
    %2537 = vmatmul.mubr.f32.gmra.mrb[0].mxu0 %v1466
    %v2538 = vpop.f32.mrb[0].mxu0
    %v2539 = vadd.f32 %v1819, %v2538
    %v2540 = vpop.f32.mrb[0].mxu0
    %v2541 = vadd.f32 %v1819, %v2540
    %2542 = vmatprep.mubr.f32.mxu0 %v1470
    %2543 = vmatmul.mubr.f32.gmra.mrb[0].mxu0 %v1469
    %v2544 = vpop.f32.mrb[0].mxu0
    %v2545 = vadd.f32 %v1824, %v2544
    %v2546 = vpop.f32.mrb[0].mxu0
    %v2547 = vadd.f32 %v1824, %v2546
    %2548 = vmatprep.mubr.f32.mxu0 %v1473
    %2549 = vmatmul.mubr.f32.gmra.mrb[0].mxu0 %v1472
    %v2550 = vpop.f32.mrb[0].mxu0
    %v2551 = vadd.f32 %v1829, %v2550
    %v2552 = vpop.f32.mrb[0].mxu0
    %v2553 = vadd.f32 %v1829, %v2552
    %2554 = vmatprep.mubr.f32.mxu0 %v1476
    %2555 = vmatmul.mubr.f32.gmra.mrb[0].mxu0 %v1475
    %v2556 = vpop.f32.mrb[0].mxu0
    %v2557 = vadd.f32 %v1834, %v2556
    %v2558 = vpop.f32.mrb[0].mxu0
    %v2559 = vadd.f32 %v1834, %v2558
    %2560 = vmatprep.mubr.f32.mxu0 %v1479
    %2561 = vmatmul.mubr.f32.gmra.mrb[0].mxu0 %v1478
    %v2562 = vpop.f32.mrb[0].mxu0
    %v2563 = vadd.f32 %v1839, %v2562
    %v2564 = vpop.f32.mrb[0].mxu0
    %v2565 = vadd.f32 %v1839, %v2564
    %2566 = vmatprep.mubr.f32.mxu0 %v1482
    %2567 = vmatmul.mubr.f32.gmra.mrb[0].mxu0 %v1481
    %v2568 = vpop.f32.mrb[0].mxu0
    %v2569 = vadd.f32 %v1844, %v2568
    %v2570 = vpop.f32.mrb[0].mxu0
    %v2571 = vadd.f32 %v1844, %v2570
    %2572 = vmatprep.mubr.f32.mxu0 %v1485
    %2573 = vmatmul.mubr.f32.gmra.mrb[0].mxu0 %v1484
    %v2574 = vpop.f32.mrb[0].mxu0
    %v2575 = vadd.f32 %v1849, %v2574
    %v2576 = vpop.f32.mrb[0].mxu0
    %v2577 = vadd.f32 %v1849, %v2576
    %2578 = vmatprep.mubr.f32.mxu0 %v1488
    %2579 = vmatmul.mubr.f32.gmra.mrb[0].mxu0 %v1487
    %v2580 = vpop.f32.mrb[0].mxu0
    %v2581 = vadd.f32 %v1854, %v2580
    %v2582 = vpop.f32.mrb[0].mxu0
    %v2583 = vadd.f32 %v1854, %v2582
    %2584 = vmatprep.mubr.f32.mxu0 %v1491
    %2585 = vmatmul.mubr.f32.gmra.mrb[0].mxu0 %v1490
    %v2586 = vpop.f32.mrb[0].mxu0
    %v2587 = vadd.f32 %v1859, %v2586
    %v2588 = vpop.f32.mrb[0].mxu0
    %v2589 = vadd.f32 %v1859, %v2588
    %2590 = vmatprep.mubr.f32.mxu0 %v1494
    %2591 = vmatmul.mubr.f32.gmra.mrb[0].mxu0 %v1493
    %v2592 = vpop.f32.mrb[0].mxu0
    %v2593 = vadd.f32 %v1864, %v2592
    %v2594 = vpop.f32.mrb[0].mxu0
    %v2595 = vadd.f32 %v1864, %v2594
    %2596 = vmatprep.mubr.f32.mxu0 %v1497
    %2597 = vmatmul.mubr.f32.gmra.mrb[0].mxu0 %v1496
    %v2598 = vpop.f32.mrb[0].mxu0
    %v2599 = vadd.f32 %v1869, %v2598
    %v2600 = vpop.f32.mrb[0].mxu0
    %v2601 = vadd.f32 %v1869, %v2600
    %2602 = vmatprep.mubr.f32.mxu0 %v1500
    %2603 = vmatmul.mubr.f32.gmra.mrb[0].mxu0 %v1499
    %v2604 = vpop.f32.mrb[0].mxu0
    %v2605 = vadd.f32 %v1874, %v2604
    %v2606 = vpop.f32.mrb[0].mxu0
    %v2607 = vadd.f32 %v1874, %v2606
    %2608 = vmatprep.mubr.f32.mxu0 %v1503
    %2609 = vmatmul.mubr.f32.gmra.mrb[0].mxu0 %v1502
    %v2610 = vpop.f32.mrb[0].mxu0
    %v2611 = vadd.f32 %v1879, %v2610
    %v2612 = vpop.f32.mrb[0].mxu0
    %v2613 = vadd.f32 %v1879, %v2612
    %2614 = vmatprep.mubr.f32.mxu0 %v1506
    %2615 = vmatmul.mubr.f32.gmra.mrb[0].mxu0 %v1505
    %v2616 = vpop.f32.mrb[0].mxu0
    %v2617 = vadd.f32 %v1884, %v2616
    %v2618 = vpop.f32.mrb[0].mxu0
    %v2619 = vadd.f32 %v1884, %v2618
    %2620 = vmatprep.mubr.f32.mxu0 %v1509
    %2621 = vmatmul.mubr.f32.gmra.mrb[0].mxu0 %v1508
    %v2622 = vpop.f32.mrb[0].mxu0
    %v2623 = vadd.f32 %v1889, %v2622
    %v2624 = vpop.f32.mrb[0].mxu0
    %v2625 = vadd.f32 %v1889, %v2624
    %2626 = vmatprep.mubr.f32.mxu0 %v1512
    %2627 = vmatmul.mubr.f32.gmra.mrb[0].mxu0 %v1511
    %v2628 = vpop.f32.mrb[0].mxu0
    %v2629 = vadd.f32 %v1894, %v2628
    %v2630 = vpop.f32.mrb[0].mxu0
    %v2631 = vadd.f32 %v1894, %v2630
    %2632 = vmatprep.mubr.f32.mxu0 %v1515
    %2633 = vmatmul.mubr.f32.gmra.mrb[0].mxu0 %v1514
    %v2634 = vpop.f32.mrb[0].mxu0
    %v2635 = vadd.f32 %v1899, %v2634
    %v2636 = vpop.f32.mrb[0].mxu0
    %v2637 = vadd.f32 %v1899, %v2636
    %2638 = vmatprep.mubr.f32.mxu0 %v1518
    %2639 = vmatmul.mubr.f32.gmra.mrb[0].mxu0 %v1517
    %v2640 = vpop.f32.mrb[0].mxu0
    %v2641 = vadd.f32 %v1904, %v2640
    %v2642 = vpop.f32.mrb[0].mxu0
    %v2643 = vadd.f32 %v1904, %v2642
    %2644 = vmatprep.mubr.f32.mxu0 %v1521
    %2645 = vmatmul.mubr.f32.gmra.mrb[0].mxu0 %v1520
    %v2646 = vpop.f32.mrb[0].mxu0
    %v2647 = vadd.f32 %v1909, %v2646
    %v2648 = vpop.f32.mrb[0].mxu0
    %v2649 = vadd.f32 %v1909, %v2648
    %2650 = vmatprep.mubr.f32.mxu0 %v1524
    %2651 = vmatmul.mubr.f32.gmra.mrb[0].mxu0 %v1523
    %v2652 = vpop.f32.mrb[0].mxu0
    %v2653 = vadd.f32 %v1914, %v2652
    %v2654 = vpop.f32.mrb[0].mxu0
    %v2655 = vadd.f32 %v1914, %v2654
    %2656 = vmatprep.mubr.f32.mxu0 %v1527
    %2657 = vmatmul.mubr.f32.gmra.mrb[0].mxu0 %v1526
    %v2658 = vpop.f32.mrb[0].mxu0
    %v2659 = vadd.f32 %v1919, %v2658
    %v2660 = vpop.f32.mrb[0].mxu0
    %v2661 = vadd.f32 %v1919, %v2660
    %2662 = vmatprep.mubr.f32.mxu0 %v1530
    %2663 = vmatmul.mubr.f32.gmra.mrb[0].mxu0 %v1529
    %v2664 = vpop.f32.mrb[0].mxu0
    %v2665 = vadd.f32 %v1924, %v2664
    %v2666 = vpop.f32.mrb[0].mxu0
    %v2667 = vadd.f32 %v1924, %v2666
    %2668 = vmatprep.mubr.f32.mxu0 %v1533
    %2669 = vmatmul.mubr.f32.gmra.mrb[0].mxu0 %v1532
    %v2670 = vpop.f32.mrb[0].mxu0
    %v2671 = vadd.f32 %v1929, %v2670
    %v2672 = vpop.f32.mrb[0].mxu0
    %v2673 = vadd.f32 %v1929, %v2672
    %2674 = vmatprep.mubr.f32.mxu0 %v1536
    %2675 = vmatmul.mubr.f32.gmra.mrb[0].mxu0 %v1535
    %v2676 = vpop.f32.mrb[0].mxu0
    %v2677 = vadd.f32 %v1934, %v2676
    %v2678 = vpop.f32.mrb[0].mxu0
    %v2679 = vadd.f32 %v1934, %v2678
    %2680 = vmatprep.mubr.f32.mxu0 %v1539
    %2681 = vmatmul.mubr.f32.gmra.mrb[0].mxu0 %v1538
    %v2682 = vpop.f32.mrb[0].mxu0
    %v2683 = vadd.f32 %v1939, %v2682
    %v2684 = vpop.f32.mrb[0].mxu0
    %v2685 = vadd.f32 %v1939, %v2684
    %2686 = vmatprep.mubr.f32.mxu0 %v1542
    %2687 = vmatmul.mubr.f32.gmra.mrb[0].mxu0 %v1541
    %v2688 = vpop.f32.mrb[0].mxu0
    %v2689 = vadd.f32 %v1944, %v2688
    %v2690 = vpop.f32.mrb[0].mxu0
    %v2691 = vadd.f32 %v1944, %v2690
    %2692 = vmatprep.mubr.f32.mxu0 %v1545
    %2693 = vmatmul.mubr.f32.gmra.mrb[0].mxu0 %v1544
    %v2694 = vpop.f32.mrb[0].mxu0
    %v2695 = vadd.f32 %v1949, %v2694
    %v2696 = vpop.f32.mrb[0].mxu0
    %v2697 = vadd.f32 %v1949, %v2696
    %2698 = vmatprep.mubr.f32.mxu0 %v1548
    %2699 = vmatmul.mubr.f32.gmra.mrb[0].mxu0 %v1547
    %v2700 = vpop.f32.mrb[0].mxu0
    %v2701 = vadd.f32 %v1954, %v2700
    %v2702 = vpop.f32.mrb[0].mxu0
    %v2703 = vadd.f32 %v1954, %v2702
    %2704 = vmatprep.mubr.f32.mxu0 %v1551
    %2705 = vmatmul.mubr.f32.gmra.mrb[0].mxu0 %v1550
    %v2706 = vpop.f32.mrb[0].mxu0
    %v2707 = vadd.f32 %v1959, %v2706
    %v2708 = vpop.f32.mrb[0].mxu0
    %v2709 = vadd.f32 %v1959, %v2708
    %2710 = vmatprep.mubr.f32.mxu0 %v1554
    %2711 = vmatmul.mubr.f32.gmra.mrb[0].mxu0 %v1553
    %v2712 = vpop.f32.mrb[0].mxu0
    %v2713 = vadd.f32 %v1964, %v2712
    %v2714 = vpop.f32.mrb[0].mxu0
    %v2715 = vadd.f32 %v1964, %v2714
    %2716 = vmatprep.mubr.f32.mxu0 %v1557
    %2717 = vmatmul.mubr.f32.gmra.mrb[0].mxu0 %v1556
    %v2718 = vpop.f32.mrb[0].mxu0
    %v2719 = vadd.f32 %v1969, %v2718
    %v2720 = vpop.f32.mrb[0].mxu0
    %v2721 = vadd.f32 %v1969, %v2720
    %2722 = vmatprep.mubr.f32.mxu0 %v1560
    %2723 = vmatmul.mubr.f32.gmra.mrb[0].mxu0 %v1559
    %v2724 = vpop.f32.mrb[0].mxu0
    %v2725 = vadd.f32 %v1974, %v2724
    %v2726 = vpop.f32.mrb[0].mxu0
    %v2727 = vadd.f32 %v1974, %v2726
    %2728 = vmatprep.mubr.f32.mxu0 %v1563
    %2729 = vmatmul.mubr.f32.gmra.mrb[0].mxu0 %v1562
    %v2730 = vpop.f32.mrb[0].mxu0
    %v2731 = vadd.f32 %v1979, %v2730
    %v2732 = vpop.f32.mrb[0].mxu0
    %v2733 = vadd.f32 %v1979, %v2732
    %2734 = vmatprep.mubr.f32.mxu0 %v1566
    %2735 = vmatmul.mubr.f32.gmra.mrb[0].mxu0 %v1565
    %v2736 = vpop.f32.mrb[0].mxu0
    %v2737 = vadd.f32 %v1984, %v2736
    %v2738 = vpop.f32.mrb[0].mxu0
    %v2739 = vadd.f32 %v1984, %v2738
    %2740 = vmatprep.mubr.f32.mxu0 %v1569
    %2741 = vmatmul.mubr.f32.gmra.mrb[0].mxu0 %v1568
    %v2742 = vpop.f32.mrb[0].mxu0
    %v2743 = vadd.f32 %v1989, %v2742
    %v2744 = vpop.f32.mrb[0].mxu0
    %v2745 = vadd.f32 %v1989, %v2744
    %2746 = vmatprep.mubr.f32.mxu0 %v1572
    %2747 = vmatmul.mubr.f32.gmra.mrb[0].mxu0 %v1571
    %v2748 = vpop.f32.mrb[0].mxu0
    %v2749 = vadd.f32 %v1994, %v2748
    %v2750 = vpop.f32.mrb[0].mxu0
    %v2751 = vadd.f32 %v1994, %v2750
    %2752 = vmatprep.mubr.f32.mxu0 %v1575
    %2753 = vmatmul.mubr.f32.gmra.mrb[0].mxu0 %v1574
    %v2754 = vpop.f32.mrb[0].mxu0
    %v2755 = vadd.f32 %v1999, %v2754
    %v2756 = vpop.f32.mrb[0].mxu0
    %v2757 = vadd.f32 %v1999, %v2756
    %2758 = vmatprep.mubr.f32.mxu0 %v1578
    %2759 = vmatmul.mubr.f32.gmra.mrb[0].mxu0 %v1577
    %v2760 = vpop.f32.mrb[0].mxu0
    %v2761 = vadd.f32 %v2004, %v2760
    %v2762 = vpop.f32.mrb[0].mxu0
    %v2763 = vadd.f32 %v2004, %v2762
    %2764 = vmatprep.mubr.f32.mxu0 %v1581
    %2765 = vmatmul.mubr.f32.gmra.mrb[0].mxu0 %v1580
    %v2766 = vpop.f32.mrb[0].mxu0
    %v2767 = vadd.f32 %v2009, %v2766
    %v2768 = vpop.f32.mrb[0].mxu0
    %v2769 = vadd.f32 %v2009, %v2768
    %2770 = vmatprep.mubr.f32.mxu0 %v1584
    %2771 = vmatmul.mubr.f32.gmra.mrb[0].mxu0 %v1583
    %v2772 = vpop.f32.mrb[0].mxu0
    %v2773 = vadd.f32 %v2014, %v2772
    %v2774 = vpop.f32.mrb[0].mxu0
    %v2775 = vadd.f32 %v2014, %v2774
    %2776 = vmatprep.mubr.f32.mxu0 %v1587
    %2777 = vmatmul.mubr.f32.gmra.mrb[0].mxu0 %v1586
    %v2778 = vpop.f32.mrb[0].mxu0
    %v2779 = vadd.f32 %v2019, %v2778
    %v2780 = vpop.f32.mrb[0].mxu0
    %v2781 = vadd.f32 %v2019, %v2780
    %2782 = vmatprep.mubr.f32.mxu0 %v1590
    %2783 = vmatmul.mubr.f32.gmra.mrb[0].mxu0 %v1589
    %v2784 = vpop.f32.mrb[0].mxu0
    %v2785 = vadd.f32 %v2024, %v2784
    %v2786 = vpop.f32.mrb[0].mxu0
    %v2787 = vadd.f32 %v2024, %v2786
    %2788 = vmatprep.mubr.f32.mxu0 %v1593
    %2789 = vmatmul.mubr.f32.gmra.mrb[0].mxu0 %v1592
    %v2790 = vpop.f32.mrb[0].mxu0
    %v2791 = vadd.f32 %v2029, %v2790
    %v2792 = vpop.f32.mrb[0].mxu0
    %v2793 = vadd.f32 %v2029, %v2792
    %2794 = vmatprep.mubr.f32.mxu0 %v1596
    %2795 = vmatmul.mubr.f32.gmra.mrb[0].mxu0 %v1595
    %v2796 = vpop.f32.mrb[0].mxu0
    %v2797 = vadd.f32 %v2034, %v2796
    %v2798 = vpop.f32.mrb[0].mxu0
    %v2799 = vadd.f32 %v2034, %v2798
    %2800 = vmatprep.mubr.f32.mxu0 %v1599
    %2801 = vmatmul.mubr.f32.gmra.mrb[0].mxu0 %v1598
    %v2802 = vpop.f32.mrb[0].mxu0
    %v2803 = vadd.f32 %v2039, %v2802
    %v2804 = vpop.f32.mrb[0].mxu0
    %v2805 = vadd.f32 %v2039, %v2804
    %2806 = vmatprep.mubr.f32.mxu0 %v1602
    %2807 = vmatmul.mubr.f32.gmra.mrb[0].mxu0 %v1601
    %v2808 = vpop.f32.mrb[0].mxu0
    %v2809 = vadd.f32 %v2044, %v2808
    %v2810 = vpop.f32.mrb[0].mxu0
    %v2811 = vadd.f32 %v2044, %v2810
    %2812 = vmatprep.mubr.f32.mxu0 %v1605
    %2813 = vmatmul.mubr.f32.gmra.mrb[0].mxu0 %v1604
    %v2814 = vpop.f32.mrb[0].mxu0
    %v2815 = vadd.f32 %v2049, %v2814
    %v2816 = vpop.f32.mrb[0].mxu0
    %v2817 = vadd.f32 %v2049, %v2816
    %2818 = vmatprep.mubr.f32.mxu0 %v1608
    %2819 = vmatmul.mubr.f32.gmra.mrb[0].mxu0 %v1607
    %v2820 = vpop.f32.mrb[0].mxu0
    %v2821 = vadd.f32 %v2054, %v2820
    %v2822 = vpop.f32.mrb[0].mxu0
    %v2823 = vadd.f32 %v2054, %v2822
    %2824 = vmatprep.mubr.f32.mxu0 %v1611
    %2825 = vmatmul.mubr.f32.gmra.mrb[0].mxu0 %v1610
    %v2826 = vpop.f32.mrb[0].mxu0
    %v2827 = vadd.f32 %v2059, %v2826
    %v2828 = vpop.f32.mrb[0].mxu0
    %v2829 = vadd.f32 %v2059, %v2828
    %2830 = vmatprep.mubr.f32.mxu0 %v1614
    %2831 = vmatmul.mubr.f32.gmra.mrb[0].mxu0 %v1613
    %v2832 = vpop.f32.mrb[0].mxu0
    %v2833 = vadd.f32 %v2064, %v2832
    %v2834 = vpop.f32.mrb[0].mxu0
    %v2835 = vadd.f32 %v2064, %v2834
    %2836 = vmatprep.mubr.f32.mxu0 %v1617
    %2837 = vmatmul.mubr.f32.gmra.mrb[0].mxu0 %v1616
    %v2838 = vpop.f32.mrb[0].mxu0
    %v2839 = vadd.f32 %v2069, %v2838
    %v2840 = vpop.f32.mrb[0].mxu0
    %v2841 = vadd.f32 %v2069, %v2840
    %2842 = vmatprep.mubr.f32.mxu0 %v1620
    %2843 = vmatmul.mubr.f32.gmra.mrb[0].mxu0 %v1619
    %v2844 = vpop.f32.mrb[0].mxu0
    %v2845 = vadd.f32 %v2074, %v2844
    %v2846 = vpop.f32.mrb[0].mxu0
    %v2847 = vadd.f32 %v2074, %v2846
    %2848 = vmatprep.mubr.f32.mxu0 %v1623
    %2849 = vmatmul.mubr.f32.gmra.mrb[0].mxu0 %v1622
    %v2850 = vpop.f32.mrb[0].mxu0
    %v2851 = vadd.f32 %v2079, %v2850
    %v2852 = vpop.f32.mrb[0].mxu0
    %v2853 = vadd.f32 %v2079, %v2852
    %2854 = vmatprep.mubr.f32.mxu0 %v1626
    %2855 = vmatmul.mubr.f32.gmra.mrb[0].mxu0 %v1625
    %v2856 = vpop.f32.mrb[0].mxu0
    %v2857 = vadd.f32 %v2084, %v2856
    %v2858 = vpop.f32.mrb[0].mxu0
    %v2859 = vadd.f32 %v2084, %v2858
    %2860 = vmatprep.mubr.f32.mxu0 %v1629
    %2861 = vmatmul.mubr.f32.gmra.mrb[0].mxu0 %v1628
    %v2862 = vpop.f32.mrb[0].mxu0
    %v2863 = vadd.f32 %v2089, %v2862
    %v2864 = vpop.f32.mrb[0].mxu0
    %v2865 = vadd.f32 %v2089, %v2864
    %2866 = vmatprep.mubr.f32.mxu0 %v1632
    %2867 = vmatmul.mubr.f32.gmra.mrb[0].mxu0 %v1631
    %v2868 = vpop.f32.mrb[0].mxu0
    %v2869 = vadd.f32 %v2094, %v2868
    %v2870 = vpop.f32.mrb[0].mxu0
    %v2871 = vadd.f32 %v2094, %v2870
    %2872 = vmatprep.mubr.f32.mxu0 %v1635
    %2873 = vmatmul.mubr.f32.gmra.mrb[0].mxu0 %v1634
    %v2874 = vpop.f32.mrb[0].mxu0
    %v2875 = vadd.f32 %v2099, %v2874
    %v2876 = vpop.f32.mrb[0].mxu0
    %v2877 = vadd.f32 %v2099, %v2876
    %2878 = vmatprep.mubr.f32.mxu0 %v1638
    %2879 = vmatmul.mubr.f32.gmra.mrb[0].mxu0 %v1637
    %v2880 = vpop.f32.mrb[0].mxu0
    %v2881 = vadd.f32 %v2104, %v2880
    %v2882 = vpop.f32.mrb[0].mxu0
    %v2883 = vadd.f32 %v2104, %v2882
    %2884 = vmatprep.mubr.f32.mxu0 %v1641
    %2885 = vmatmul.mubr.f32.gmra.mrb[0].mxu0 %v1640
    %v2886 = vpop.f32.mrb[0].mxu0
    %v2887 = vadd.f32 %v2109, %v2886
    %v2888 = vpop.f32.mrb[0].mxu0
    %v2889 = vadd.f32 %v2109, %v2888
    %2890 = vmatprep.mubr.f32.mxu0 %v1644
    %2891 = vmatmul.mubr.f32.gmra.mrb[0].mxu0 %v1643
    %v2892 = vpop.f32.mrb[0].mxu0
    %v2893 = vadd.f32 %v2114, %v2892
    %v2894 = vpop.f32.mrb[0].mxu0
    %v2895 = vadd.f32 %v2114, %v2894
    %2896 = vmatprep.mubr.f32.mxu0 %v1647
    %2897 = vmatmul.mubr.f32.gmra.mrb[0].mxu0 %v1646
    %v2898 = vpop.f32.mrb[0].mxu0
    %v2899 = vadd.f32 %v2119, %v2898
    %v2900 = vpop.f32.mrb[0].mxu0
    %v2901 = vadd.f32 %v2119, %v2900
    %2902 = vmatprep.mubr.f32.mxu0 %v1650
    %2903 = vmatmul.mubr.f32.gmra.mrb[0].mxu0 %v1649
    %v2904 = vpop.f32.mrb[0].mxu0
    %v2905 = vadd.f32 %v2124, %v2904
    %v2906 = vpop.f32.mrb[0].mxu0
    %v2907 = vadd.f32 %v2124, %v2906
    %2908 = vmatprep.mubr.f32.mxu0 %v1653
    %2909 = vmatmul.mubr.f32.gmra.mrb[0].mxu0 %v1652
    %v2910 = vpop.f32.mrb[0].mxu0
    %v2911 = vadd.f32 %v2129, %v2910
    %v2912 = vpop.f32.mrb[0].mxu0
    %v2913 = vadd.f32 %v2129, %v2912
    %2914 = vmatprep.mubr.f32.mxu0 %v1656
    %2915 = vmatmul.mubr.f32.gmra.mrb[0].mxu0 %v1655
    %v2916 = vpop.f32.mrb[0].mxu0
    %v2917 = vadd.f32 %v2134, %v2916
    %v2918 = vpop.f32.mrb[0].mxu0
    %v2919 = vadd.f32 %v2134, %v2918
    %2920 = vmatprep.mubr.f32.mxu0 %v1659
    %2921 = vmatmul.mubr.f32.gmra.mrb[0].mxu0 %v1658
    %v2922 = vpop.f32.mrb[0].mxu0
    %v2923 = vadd.f32 %v2139, %v2922
    %v2924 = vpop.f32.mrb[0].mxu0
    %v2925 = vadd.f32 %v2139, %v2924
    %2926 = vdwg.mxu0
    %2927 = vmatprep.subr.mxu0 %v1406
    %2928 = vmatpush1.msra.mxu0 %v1405
    %2929 = vmatprep.subr.mxu0 %v1408
    %2930 = vmatpush1.msra.mxu0 %v1407
    %2931 = vmatprep.subr.mxu0 %v1410
    %2932 = vmatpush1.msra.mxu0 %v1409
    %2933 = vmatprep.subr.mxu0 %v1412
    %2934 = vmatpush1.msra.mxu0 %v1411
    %2935 = vmatprep.subr.mxu0 %v1414
    %2936 = vmatpush1.msra.mxu0 %v1413
    %2937 = vmatprep.subr.mxu0 %v1416
    %2938 = vmatpush1.msra.mxu0 %v1415
    %2939 = vmatprep.subr.mxu0 %v1418
    %2940 = vmatpush1.msra.mxu0 %v1417
    %2941 = vmatprep.subr.mxu0 %v1420
    %2942 = vmatpush1.msra.mxu0 %v1419
    %2943 = vmatprep.subr.mxu0 0.0
    %2944 = vmatpush1.msra.mxu0 0.0
    %2945 = vmatprep.subr.mxu0 0.0
    %2946 = vmatpush1.msra.mxu0 0.0
    %2947 = vmatprep.subr.mxu0 0.0
    %2948 = vmatpush1.msra.mxu0 0.0
    %2949 = vmatprep.subr.mxu0 0.0
    %2950 = vmatpush1.msra.mxu0 0.0
    %2951 = vmatprep.subr.mxu0 0.0
    %2952 = vmatpush1.msra.mxu0 0.0
    %2953 = vmatprep.subr.mxu0 0.0
    %2954 = vmatpush1.msra.mxu0 0.0
    %2955 = vmatprep.subr.mxu0 0.0
    %2956 = vmatpush1.msra.mxu0 0.0
    %2957 = vmatprep.subr.mxu0 0.0
    %2958 = vmatpush1.msra.mxu0 0.0
    %2959 = vmatprep.subr.mxu0 0.0
    %2960 = vmatpush1.msra.mxu0 0.0
    %2961 = vmatprep.subr.mxu0 0.0
    %2962 = vmatpush1.msra.mxu0 0.0
    %2963 = vmatprep.subr.mxu0 0.0
    %2964 = vmatpush1.msra.mxu0 0.0
    %2965 = vmatprep.subr.mxu0 0.0
    %2966 = vmatpush1.msra.mxu0 0.0
    %2967 = vmatprep.subr.mxu0 0.0
    %2968 = vmatpush1.msra.mxu0 0.0
    %2969 = vmatprep.subr.mxu0 0.0
    %2970 = vmatpush1.msra.mxu0 0.0
    %2971 = vmatprep.subr.mxu0 0.0
    %2972 = vmatpush1.msra.mxu0 0.0
    %2973 = vmatprep.subr.mxu0 0.0
    %2974 = vmatpush1.msra.mxu0 0.0
    %2975 = vmatprep.subr.mxu0 0.0
    %2976 = vmatpush1.msra.mxu0 0.0
    %2977 = vmatprep.subr.mxu0 0.0
    %2978 = vmatpush1.msra.mxu0 0.0
    %2979 = vmatprep.subr.mxu0 0.0
    %2980 = vmatpush1.msra.mxu0 0.0
    %2981 = vmatprep.subr.mxu0 0.0
    %2982 = vmatpush1.msra.mxu0 0.0
    %2983 = vmatprep.subr.mxu0 0.0
    %2984 = vmatpush1.msra.mxu0 0.0
    %2985 = vmatprep.subr.mxu0 0.0
    %2986 = vmatpush1.msra.mxu0 0.0
    %2987 = vmatprep.subr.mxu0 0.0
    %2988 = vmatpush1.msra.mxu0 0.0
    %2989 = vmatprep.subr.mxu0 0.0
    %2990 = vmatpush1.msra.mxu0 0.0
    %2991 = vmatprep.mubr.f32.mxu0 0.0
    %2992 = vmatmul.mubr.f32.gmra.mrb[0].mxu0 %v2143
    %v2993 = vpop.f32.mrb[0].mxu0
    %v2994 = vadd.f32 %v2449, %v2993
    %v2995 = vpop.f32.mrb[0].mxu0
    %v2996 = vadd.f32 %v2451, %v2995
    %2997 = vmatprep.mubr.f32.mxu0 0.0
    %2998 = vmatmul.mubr.f32.gmra.mrb[0].mxu0 %v2146
    %v2999 = vpop.f32.mrb[0].mxu0
    %v3000 = vadd.f32 %v2455, %v2999
    %v3001 = vpop.f32.mrb[0].mxu0
    %v3002 = vadd.f32 %v2457, %v3001
    %3003 = vmatprep.mubr.f32.mxu0 0.0
    %3004 = vmatmul.mubr.f32.gmra.mrb[0].mxu0 %v2149
    %v3005 = vpop.f32.mrb[0].mxu0
    %v3006 = vadd.f32 %v2461, %v3005
    %v3007 = vpop.f32.mrb[0].mxu0
    %v3008 = vadd.f32 %v2463, %v3007
    %3009 = vmatprep.mubr.f32.mxu0 0.0
    %3010 = vmatmul.mubr.f32.gmra.mrb[0].mxu0 %v2152
    %v3011 = vpop.f32.mrb[0].mxu0
    %v3012 = vadd.f32 %v2467, %v3011
    %v3013 = vpop.f32.mrb[0].mxu0
    %v3014 = vadd.f32 %v2469, %v3013
    %3015 = vmatprep.mubr.f32.mxu0 0.0
    %3016 = vmatmul.mubr.f32.gmra.mrb[0].mxu0 %v2155
    %v3017 = vpop.f32.mrb[0].mxu0
    %v3018 = vadd.f32 %v2473, %v3017
    %v3019 = vpop.f32.mrb[0].mxu0
    %v3020 = vadd.f32 %v2475, %v3019
    %3021 = vmatprep.mubr.f32.mxu0 0.0
    %3022 = vmatmul.mubr.f32.gmra.mrb[0].mxu0 %v2158
    %v3023 = vpop.f32.mrb[0].mxu0
    %v3024 = vadd.f32 %v2479, %v3023
    %v3025 = vpop.f32.mrb[0].mxu0
    %v3026 = vadd.f32 %v2481, %v3025
    %3027 = vmatprep.mubr.f32.mxu0 0.0
    %3028 = vmatmul.mubr.f32.gmra.mrb[0].mxu0 %v2161
    %v3029 = vpop.f32.mrb[0].mxu0
    %v3030 = vadd.f32 %v2485, %v3029
    %v3031 = vpop.f32.mrb[0].mxu0
    %v3032 = vadd.f32 %v2487, %v3031
    %3033 = vmatprep.mubr.f32.mxu0 0.0
    %3034 = vmatmul.mubr.f32.gmra.mrb[0].mxu0 %v2164
    %v3035 = vpop.f32.mrb[0].mxu0
    %v3036 = vadd.f32 %v2491, %v3035
    %v3037 = vpop.f32.mrb[0].mxu0
    %v3038 = vadd.f32 %v2493, %v3037
    %3039 = vmatprep.mubr.f32.mxu0 0.0
    %3040 = vmatmul.mubr.f32.gmra.mrb[0].mxu0 %v2167
    %v3041 = vpop.f32.mrb[0].mxu0
    %v3042 = vadd.f32 %v2497, %v3041
    %v3043 = vpop.f32.mrb[0].mxu0
    %v3044 = vadd.f32 %v2499, %v3043
    %3045 = vmatprep.mubr.f32.mxu0 0.0
    %3046 = vmatmul.mubr.f32.gmra.mrb[0].mxu0 %v2170
    %v3047 = vpop.f32.mrb[0].mxu0
    %v3048 = vadd.f32 %v2503, %v3047
    %v3049 = vpop.f32.mrb[0].mxu0
    %v3050 = vadd.f32 %v2505, %v3049
    %3051 = vmatprep.mubr.f32.mxu0 0.0
    %3052 = vmatmul.mubr.f32.gmra.mrb[0].mxu0 %v2173
    %v3053 = vpop.f32.mrb[0].mxu0
    %v3054 = vadd.f32 %v2509, %v3053
    %v3055 = vpop.f32.mrb[0].mxu0
    %v3056 = vadd.f32 %v2511, %v3055
    %3057 = vmatprep.mubr.f32.mxu0 0.0
    %3058 = vmatmul.mubr.f32.gmra.mrb[0].mxu0 %v2176
    %v3059 = vpop.f32.mrb[0].mxu0
    %v3060 = vadd.f32 %v2515, %v3059
    %v3061 = vpop.f32.mrb[0].mxu0
    %v3062 = vadd.f32 %v2517, %v3061
    %3063 = vmatprep.mubr.f32.mxu0 0.0
    %3064 = vmatmul.mubr.f32.gmra.mrb[0].mxu0 %v2179
    %v3065 = vpop.f32.mrb[0].mxu0
    %v3066 = vadd.f32 %v2521, %v3065
    %v3067 = vpop.f32.mrb[0].mxu0
    %v3068 = vadd.f32 %v2523, %v3067
    %3069 = vmatprep.mubr.f32.mxu0 0.0
    %3070 = vmatmul.mubr.f32.gmra.mrb[0].mxu0 %v2182
    %v3071 = vpop.f32.mrb[0].mxu0
    %v3072 = vadd.f32 %v2527, %v3071
    %v3073 = vpop.f32.mrb[0].mxu0
    %v3074 = vadd.f32 %v2529, %v3073
    %3075 = vmatprep.mubr.f32.mxu0 0.0
    %3076 = vmatmul.mubr.f32.gmra.mrb[0].mxu0 %v2185
    %v3077 = vpop.f32.mrb[0].mxu0
    %v3078 = vadd.f32 %v2533, %v3077
    %v3079 = vpop.f32.mrb[0].mxu0
    %v3080 = vadd.f32 %v2535, %v3079
    %3081 = vmatprep.mubr.f32.mxu0 0.0
    %3082 = vmatmul.mubr.f32.gmra.mrb[0].mxu0 %v2188
    %v3083 = vpop.f32.mrb[0].mxu0
    %v3084 = vadd.f32 %v2539, %v3083
    %v3085 = vpop.f32.mrb[0].mxu0
    %v3086 = vadd.f32 %v2541, %v3085
    %3087 = vmatprep.mubr.f32.mxu0 0.0
    %3088 = vmatmul.mubr.f32.gmra.mrb[0].mxu0 %v2191
    %v3089 = vpop.f32.mrb[0].mxu0
    %v3090 = vadd.f32 %v2545, %v3089
    %v3091 = vpop.f32.mrb[0].mxu0
    %v3092 = vadd.f32 %v2547, %v3091
    %3093 = vmatprep.mubr.f32.mxu0 0.0
    %3094 = vmatmul.mubr.f32.gmra.mrb[0].mxu0 %v2194
    %v3095 = vpop.f32.mrb[0].mxu0
    %v3096 = vadd.f32 %v2551, %v3095
    %v3097 = vpop.f32.mrb[0].mxu0
    %v3098 = vadd.f32 %v2553, %v3097
    %3099 = vmatprep.mubr.f32.mxu0 0.0
    %3100 = vmatmul.mubr.f32.gmra.mrb[0].mxu0 %v2197
    %v3101 = vpop.f32.mrb[0].mxu0
    %v3102 = vadd.f32 %v2557, %v3101
    %v3103 = vpop.f32.mrb[0].mxu0
    %v3104 = vadd.f32 %v2559, %v3103
    %3105 = vmatprep.mubr.f32.mxu0 0.0
    %3106 = vmatmul.mubr.f32.gmra.mrb[0].mxu0 %v2200
    %v3107 = vpop.f32.mrb[0].mxu0
    %v3108 = vadd.f32 %v2563, %v3107
    %v3109 = vpop.f32.mrb[0].mxu0
    %v3110 = vadd.f32 %v2565, %v3109
    %3111 = vmatprep.mubr.f32.mxu0 0.0
    %3112 = vmatmul.mubr.f32.gmra.mrb[0].mxu0 %v2203
    %v3113 = vpop.f32.mrb[0].mxu0
    %v3114 = vadd.f32 %v2569, %v3113
    %v3115 = vpop.f32.mrb[0].mxu0
    %v3116 = vadd.f32 %v2571, %v3115
    %3117 = vmatprep.mubr.f32.mxu0 0.0
    %3118 = vmatmul.mubr.f32.gmra.mrb[0].mxu0 %v2206
    %v3119 = vpop.f32.mrb[0].mxu0
    %v3120 = vadd.f32 %v2575, %v3119
    %v3121 = vpop.f32.mrb[0].mxu0
    %v3122 = vadd.f32 %v2577, %v3121
    %3123 = vmatprep.mubr.f32.mxu0 0.0
    %3124 = vmatmul.mubr.f32.gmra.mrb[0].mxu0 %v2209
    %v3125 = vpop.f32.mrb[0].mxu0
    %v3126 = vadd.f32 %v2581, %v3125
    %v3127 = vpop.f32.mrb[0].mxu0
    %v3128 = vadd.f32 %v2583, %v3127
    %3129 = vmatprep.mubr.f32.mxu0 0.0
    %3130 = vmatmul.mubr.f32.gmra.mrb[0].mxu0 %v2212
    %v3131 = vpop.f32.mrb[0].mxu0
    %v3132 = vadd.f32 %v2587, %v3131
    %v3133 = vpop.f32.mrb[0].mxu0
    %v3134 = vadd.f32 %v2589, %v3133
    %3135 = vmatprep.mubr.f32.mxu0 0.0
    %3136 = vmatmul.mubr.f32.gmra.mrb[0].mxu0 %v2215
    %v3137 = vpop.f32.mrb[0].mxu0
    %v3138 = vadd.f32 %v2593, %v3137
    %v3139 = vpop.f32.mrb[0].mxu0
    %v3140 = vadd.f32 %v2595, %v3139
    %3141 = vmatprep.mubr.f32.mxu0 0.0
    %3142 = vmatmul.mubr.f32.gmra.mrb[0].mxu0 %v2218
    %v3143 = vpop.f32.mrb[0].mxu0
    %v3144 = vadd.f32 %v2599, %v3143
    %v3145 = vpop.f32.mrb[0].mxu0
    %v3146 = vadd.f32 %v2601, %v3145
    %3147 = vmatprep.mubr.f32.mxu0 0.0
    %3148 = vmatmul.mubr.f32.gmra.mrb[0].mxu0 %v2221
    %v3149 = vpop.f32.mrb[0].mxu0
    %v3150 = vadd.f32 %v2605, %v3149
    %v3151 = vpop.f32.mrb[0].mxu0
    %v3152 = vadd.f32 %v2607, %v3151
    %3153 = vmatprep.mubr.f32.mxu0 0.0
    %3154 = vmatmul.mubr.f32.gmra.mrb[0].mxu0 %v2224
    %v3155 = vpop.f32.mrb[0].mxu0
    %v3156 = vadd.f32 %v2611, %v3155
    %v3157 = vpop.f32.mrb[0].mxu0
    %v3158 = vadd.f32 %v2613, %v3157
    %3159 = vmatprep.mubr.f32.mxu0 0.0
    %3160 = vmatmul.mubr.f32.gmra.mrb[0].mxu0 %v2227
    %v3161 = vpop.f32.mrb[0].mxu0
    %v3162 = vadd.f32 %v2617, %v3161
    %v3163 = vpop.f32.mrb[0].mxu0
    %v3164 = vadd.f32 %v2619, %v3163
    %3165 = vmatprep.mubr.f32.mxu0 0.0
    %3166 = vmatmul.mubr.f32.gmra.mrb[0].mxu0 %v2230
    %v3167 = vpop.f32.mrb[0].mxu0
    %v3168 = vadd.f32 %v2623, %v3167
    %v3169 = vpop.f32.mrb[0].mxu0
    %v3170 = vadd.f32 %v2625, %v3169
    %3171 = vmatprep.mubr.f32.mxu0 0.0
    %3172 = vmatmul.mubr.f32.gmra.mrb[0].mxu0 %v2233
    %v3173 = vpop.f32.mrb[0].mxu0
    %v3174 = vadd.f32 %v2629, %v3173
    %v3175 = vpop.f32.mrb[0].mxu0
    %v3176 = vadd.f32 %v2631, %v3175
    %3177 = vmatprep.mubr.f32.mxu0 0.0
    %3178 = vmatmul.mubr.f32.gmra.mrb[0].mxu0 %v2236
    %v3179 = vpop.f32.mrb[0].mxu0
    %v3180 = vadd.f32 %v2635, %v3179
    %v3181 = vpop.f32.mrb[0].mxu0
    %v3182 = vadd.f32 %v2637, %v3181
    %3183 = vmatprep.mubr.f32.mxu0 0.0
    %3184 = vmatmul.mubr.f32.gmra.mrb[0].mxu0 %v2239
    %v3185 = vpop.f32.mrb[0].mxu0
    %v3186 = vadd.f32 %v2641, %v3185
    %v3187 = vpop.f32.mrb[0].mxu0
    %v3188 = vadd.f32 %v2643, %v3187
    %3189 = vmatprep.mubr.f32.mxu0 0.0
    %3190 = vmatmul.mubr.f32.gmra.mrb[0].mxu0 %v2242
    %v3191 = vpop.f32.mrb[0].mxu0
    %v3192 = vadd.f32 %v2647, %v3191
    %v3193 = vpop.f32.mrb[0].mxu0
    %v3194 = vadd.f32 %v2649, %v3193
    %3195 = vmatprep.mubr.f32.mxu0 0.0
    %3196 = vmatmul.mubr.f32.gmra.mrb[0].mxu0 %v2245
    %v3197 = vpop.f32.mrb[0].mxu0
    %v3198 = vadd.f32 %v2653, %v3197
    %v3199 = vpop.f32.mrb[0].mxu0
    %v3200 = vadd.f32 %v2655, %v3199
    %3201 = vmatprep.mubr.f32.mxu0 0.0
    %3202 = vmatmul.mubr.f32.gmra.mrb[0].mxu0 %v2248
    %v3203 = vpop.f32.mrb[0].mxu0
    %v3204 = vadd.f32 %v2659, %v3203
    %v3205 = vpop.f32.mrb[0].mxu0
    %v3206 = vadd.f32 %v2661, %v3205
    %3207 = vmatprep.mubr.f32.mxu0 0.0
    %3208 = vmatmul.mubr.f32.gmra.mrb[0].mxu0 %v2251
    %v3209 = vpop.f32.mrb[0].mxu0
    %v3210 = vadd.f32 %v2665, %v3209
    %v3211 = vpop.f32.mrb[0].mxu0
    %v3212 = vadd.f32 %v2667, %v3211
    %3213 = vmatprep.mubr.f32.mxu0 0.0
    %3214 = vmatmul.mubr.f32.gmra.mrb[0].mxu0 %v2254
    %v3215 = vpop.f32.mrb[0].mxu0
    %v3216 = vadd.f32 %v2671, %v3215
    %v3217 = vpop.f32.mrb[0].mxu0
    %v3218 = vadd.f32 %v2673, %v3217
    %3219 = vmatprep.mubr.f32.mxu0 0.0
    %3220 = vmatmul.mubr.f32.gmra.mrb[0].mxu0 %v2257
    %v3221 = vpop.f32.mrb[0].mxu0
    %v3222 = vadd.f32 %v2677, %v3221
    %v3223 = vpop.f32.mrb[0].mxu0
    %v3224 = vadd.f32 %v2679, %v3223
    %3225 = vmatprep.mubr.f32.mxu0 0.0
    %3226 = vmatmul.mubr.f32.gmra.mrb[0].mxu0 %v2260
    %v3227 = vpop.f32.mrb[0].mxu0
    %v3228 = vadd.f32 %v2683, %v3227
    %v3229 = vpop.f32.mrb[0].mxu0
    %v3230 = vadd.f32 %v2685, %v3229
    %3231 = vmatprep.mubr.f32.mxu0 0.0
    %3232 = vmatmul.mubr.f32.gmra.mrb[0].mxu0 %v2263
    %v3233 = vpop.f32.mrb[0].mxu0
    %v3234 = vadd.f32 %v2689, %v3233
    %v3235 = vpop.f32.mrb[0].mxu0
    %v3236 = vadd.f32 %v2691, %v3235
    %3237 = vmatprep.mubr.f32.mxu0 0.0
    %3238 = vmatmul.mubr.f32.gmra.mrb[0].mxu0 %v2266
    %v3239 = vpop.f32.mrb[0].mxu0
    %v3240 = vadd.f32 %v2695, %v3239
    %v3241 = vpop.f32.mrb[0].mxu0
    %v3242 = vadd.f32 %v2697, %v3241
    %3243 = vmatprep.mubr.f32.mxu0 0.0
    %3244 = vmatmul.mubr.f32.gmra.mrb[0].mxu0 %v2269
    %v3245 = vpop.f32.mrb[0].mxu0
    %v3246 = vadd.f32 %v2701, %v3245
    %v3247 = vpop.f32.mrb[0].mxu0
    %v3248 = vadd.f32 %v2703, %v3247
    %3249 = vmatprep.mubr.f32.mxu0 0.0
    %3250 = vmatmul.mubr.f32.gmra.mrb[0].mxu0 %v2272
    %v3251 = vpop.f32.mrb[0].mxu0
    %v3252 = vadd.f32 %v2707, %v3251
    %v3253 = vpop.f32.mrb[0].mxu0
    %v3254 = vadd.f32 %v2709, %v3253
    %3255 = vmatprep.mubr.f32.mxu0 0.0
    %3256 = vmatmul.mubr.f32.gmra.mrb[0].mxu0 %v2275
    %v3257 = vpop.f32.mrb[0].mxu0
    %v3258 = vadd.f32 %v2713, %v3257
    %v3259 = vpop.f32.mrb[0].mxu0
    %v3260 = vadd.f32 %v2715, %v3259
    %3261 = vmatprep.mubr.f32.mxu0 0.0
    %3262 = vmatmul.mubr.f32.gmra.mrb[0].mxu0 %v2278
    %v3263 = vpop.f32.mrb[0].mxu0
    %v3264 = vadd.f32 %v2719, %v3263
    %v3265 = vpop.f32.mrb[0].mxu0
    %v3266 = vadd.f32 %v2721, %v3265
    %3267 = vmatprep.mubr.f32.mxu0 0.0
    %3268 = vmatmul.mubr.f32.gmra.mrb[0].mxu0 %v2281
    %v3269 = vpop.f32.mrb[0].mxu0
    %v3270 = vadd.f32 %v2725, %v3269
    %v3271 = vpop.f32.mrb[0].mxu0
    %v3272 = vadd.f32 %v2727, %v3271
    %3273 = vmatprep.mubr.f32.mxu0 0.0
    %3274 = vmatmul.mubr.f32.gmra.mrb[0].mxu0 %v2284
    %v3275 = vpop.f32.mrb[0].mxu0
    %v3276 = vadd.f32 %v2731, %v3275
    %v3277 = vpop.f32.mrb[0].mxu0
    %v3278 = vadd.f32 %v2733, %v3277
    %3279 = vmatprep.mubr.f32.mxu0 0.0
    %3280 = vmatmul.mubr.f32.gmra.mrb[0].mxu0 %v2287
    %v3281 = vpop.f32.mrb[0].mxu0
    %v3282 = vadd.f32 %v2737, %v3281
    %v3283 = vpop.f32.mrb[0].mxu0
    %v3284 = vadd.f32 %v2739, %v3283
    %3285 = vmatprep.mubr.f32.mxu0 0.0
    %3286 = vmatmul.mubr.f32.gmra.mrb[0].mxu0 %v2290
    %v3287 = vpop.f32.mrb[0].mxu0
    %v3288 = vadd.f32 %v2743, %v3287
    %v3289 = vpop.f32.mrb[0].mxu0
    %v3290 = vadd.f32 %v2745, %v3289
    %3291 = vmatprep.mubr.f32.mxu0 0.0
    %3292 = vmatmul.mubr.f32.gmra.mrb[0].mxu0 %v2293
    %v3293 = vpop.f32.mrb[0].mxu0
    %v3294 = vadd.f32 %v2749, %v3293
    %v3295 = vpop.f32.mrb[0].mxu0
    %v3296 = vadd.f32 %v2751, %v3295
    %3297 = vmatprep.mubr.f32.mxu0 0.0
    %3298 = vmatmul.mubr.f32.gmra.mrb[0].mxu0 %v2296
    %v3299 = vpop.f32.mrb[0].mxu0
    %v3300 = vadd.f32 %v2755, %v3299
    %v3301 = vpop.f32.mrb[0].mxu0
    %v3302 = vadd.f32 %v2757, %v3301
    %3303 = vmatprep.mubr.f32.mxu0 0.0
    %3304 = vmatmul.mubr.f32.gmra.mrb[0].mxu0 %v2299
    %v3305 = vpop.f32.mrb[0].mxu0
    %v3306 = vadd.f32 %v2761, %v3305
    %v3307 = vpop.f32.mrb[0].mxu0
    %v3308 = vadd.f32 %v2763, %v3307
    %3309 = vmatprep.mubr.f32.mxu0 0.0
    %3310 = vmatmul.mubr.f32.gmra.mrb[0].mxu0 %v2302
    %v3311 = vpop.f32.mrb[0].mxu0
    %v3312 = vadd.f32 %v2767, %v3311
    %v3313 = vpop.f32.mrb[0].mxu0
    %v3314 = vadd.f32 %v2769, %v3313
    %3315 = vmatprep.mubr.f32.mxu0 0.0
    %3316 = vmatmul.mubr.f32.gmra.mrb[0].mxu0 %v2305
    %v3317 = vpop.f32.mrb[0].mxu0
    %v3318 = vadd.f32 %v2773, %v3317
    %v3319 = vpop.f32.mrb[0].mxu0
    %v3320 = vadd.f32 %v2775, %v3319
    %3321 = vmatprep.mubr.f32.mxu0 0.0
    %3322 = vmatmul.mubr.f32.gmra.mrb[0].mxu0 %v2308
    %v3323 = vpop.f32.mrb[0].mxu0
    %v3324 = vadd.f32 %v2779, %v3323
    %v3325 = vpop.f32.mrb[0].mxu0
    %v3326 = vadd.f32 %v2781, %v3325
    %3327 = vmatprep.mubr.f32.mxu0 0.0
    %3328 = vmatmul.mubr.f32.gmra.mrb[0].mxu0 %v2311
    %v3329 = vpop.f32.mrb[0].mxu0
    %v3330 = vadd.f32 %v2785, %v3329
    %v3331 = vpop.f32.mrb[0].mxu0
    %v3332 = vadd.f32 %v2787, %v3331
    %3333 = vmatprep.mubr.f32.mxu0 0.0
    %3334 = vmatmul.mubr.f32.gmra.mrb[0].mxu0 %v2314
    %v3335 = vpop.f32.mrb[0].mxu0
    %v3336 = vadd.f32 %v2791, %v3335
    %v3337 = vpop.f32.mrb[0].mxu0
    %v3338 = vadd.f32 %v2793, %v3337
    %3339 = vmatprep.mubr.f32.mxu0 0.0
    %3340 = vmatmul.mubr.f32.gmra.mrb[0].mxu0 %v2317
    %v3341 = vpop.f32.mrb[0].mxu0
    %v3342 = vadd.f32 %v2797, %v3341
    %v3343 = vpop.f32.mrb[0].mxu0
    %v3344 = vadd.f32 %v2799, %v3343
    %3345 = vmatprep.mubr.f32.mxu0 0.0
    %3346 = vmatmul.mubr.f32.gmra.mrb[0].mxu0 %v2320
    %v3347 = vpop.f32.mrb[0].mxu0
    %v3348 = vadd.f32 %v2803, %v3347
    %v3349 = vpop.f32.mrb[0].mxu0
    %v3350 = vadd.f32 %v2805, %v3349
    %3351 = vmatprep.mubr.f32.mxu0 0.0
    %3352 = vmatmul.mubr.f32.gmra.mrb[0].mxu0 %v2323
    %v3353 = vpop.f32.mrb[0].mxu0
    %v3354 = vadd.f32 %v2809, %v3353
    %v3355 = vpop.f32.mrb[0].mxu0
    %v3356 = vadd.f32 %v2811, %v3355
    %3357 = vmatprep.mubr.f32.mxu0 0.0
    %3358 = vmatmul.mubr.f32.gmra.mrb[0].mxu0 %v2326
    %v3359 = vpop.f32.mrb[0].mxu0
    %v3360 = vadd.f32 %v2815, %v3359
    %v3361 = vpop.f32.mrb[0].mxu0
    %v3362 = vadd.f32 %v2817, %v3361
    %3363 = vmatprep.mubr.f32.mxu0 0.0
    %3364 = vmatmul.mubr.f32.gmra.mrb[0].mxu0 %v2329
    %v3365 = vpop.f32.mrb[0].mxu0
    %v3366 = vadd.f32 %v2821, %v3365
    %v3367 = vpop.f32.mrb[0].mxu0
    %v3368 = vadd.f32 %v2823, %v3367
    %3369 = vmatprep.mubr.f32.mxu0 0.0
    %3370 = vmatmul.mubr.f32.gmra.mrb[0].mxu0 %v2332
    %v3371 = vpop.f32.mrb[0].mxu0
    %v3372 = vadd.f32 %v2827, %v3371
    %v3373 = vpop.f32.mrb[0].mxu0
    %v3374 = vadd.f32 %v2829, %v3373
    %3375 = vmatprep.mubr.f32.mxu0 0.0
    %3376 = vmatmul.mubr.f32.gmra.mrb[0].mxu0 %v2335
    %v3377 = vpop.f32.mrb[0].mxu0
    %v3378 = vadd.f32 %v2833, %v3377
    %v3379 = vpop.f32.mrb[0].mxu0
    %v3380 = vadd.f32 %v2835, %v3379
    %3381 = vmatprep.mubr.f32.mxu0 0.0
    %3382 = vmatmul.mubr.f32.gmra.mrb[0].mxu0 %v2338
    %v3383 = vpop.f32.mrb[0].mxu0
    %v3384 = vadd.f32 %v2839, %v3383
    %v3385 = vpop.f32.mrb[0].mxu0
    %v3386 = vadd.f32 %v2841, %v3385
    %3387 = vmatprep.mubr.f32.mxu0 0.0
    %3388 = vmatmul.mubr.f32.gmra.mrb[0].mxu0 %v2341
    %v3389 = vpop.f32.mrb[0].mxu0
    %v3390 = vadd.f32 %v2845, %v3389
    %v3391 = vpop.f32.mrb[0].mxu0
    %v3392 = vadd.f32 %v2847, %v3391
    %3393 = vmatprep.mubr.f32.mxu0 0.0
    %3394 = vmatmul.mubr.f32.gmra.mrb[0].mxu0 %v2344
    %v3395 = vpop.f32.mrb[0].mxu0
    %v3396 = vadd.f32 %v2851, %v3395
    %v3397 = vpop.f32.mrb[0].mxu0
    %v3398 = vadd.f32 %v2853, %v3397
    %3399 = vmatprep.mubr.f32.mxu0 0.0
    %3400 = vmatmul.mubr.f32.gmra.mrb[0].mxu0 %v2347
    %v3401 = vpop.f32.mrb[0].mxu0
    %v3402 = vadd.f32 %v2857, %v3401
    %v3403 = vpop.f32.mrb[0].mxu0
    %v3404 = vadd.f32 %v2859, %v3403
    %3405 = vmatprep.mubr.f32.mxu0 0.0
    %3406 = vmatmul.mubr.f32.gmra.mrb[0].mxu0 %v2350
    %v3407 = vpop.f32.mrb[0].mxu0
    %v3408 = vadd.f32 %v2863, %v3407
    %v3409 = vpop.f32.mrb[0].mxu0
    %v3410 = vadd.f32 %v2865, %v3409
    %3411 = vmatprep.mubr.f32.mxu0 0.0
    %3412 = vmatmul.mubr.f32.gmra.mrb[0].mxu0 %v2353
    %v3413 = vpop.f32.mrb[0].mxu0
    %v3414 = vadd.f32 %v2869, %v3413
    %v3415 = vpop.f32.mrb[0].mxu0
    %v3416 = vadd.f32 %v2871, %v3415
    %3417 = vmatprep.mubr.f32.mxu0 0.0
    %3418 = vmatmul.mubr.f32.gmra.mrb[0].mxu0 %v2356
    %v3419 = vpop.f32.mrb[0].mxu0
    %v3420 = vadd.f32 %v2875, %v3419
    %v3421 = vpop.f32.mrb[0].mxu0
    %v3422 = vadd.f32 %v2877, %v3421
    %3423 = vmatprep.mubr.f32.mxu0 0.0
    %3424 = vmatmul.mubr.f32.gmra.mrb[0].mxu0 %v2359
    %v3425 = vpop.f32.mrb[0].mxu0
    %v3426 = vadd.f32 %v2881, %v3425
    %v3427 = vpop.f32.mrb[0].mxu0
    %v3428 = vadd.f32 %v2883, %v3427
    %3429 = vmatprep.mubr.f32.mxu0 0.0
    %3430 = vmatmul.mubr.f32.gmra.mrb[0].mxu0 %v2362
    %v3431 = vpop.f32.mrb[0].mxu0
    %v3432 = vadd.f32 %v2887, %v3431
    %v3433 = vpop.f32.mrb[0].mxu0
    %v3434 = vadd.f32 %v2889, %v3433
    %3435 = vmatprep.mubr.f32.mxu0 0.0
    %3436 = vmatmul.mubr.f32.gmra.mrb[0].mxu0 %v2365
    %v3437 = vpop.f32.mrb[0].mxu0
    %v3438 = vadd.f32 %v2893, %v3437
    %v3439 = vpop.f32.mrb[0].mxu0
    %v3440 = vadd.f32 %v2895, %v3439
    %3441 = vmatprep.mubr.f32.mxu0 0.0
    %3442 = vmatmul.mubr.f32.gmra.mrb[0].mxu0 %v2368
    %v3443 = vpop.f32.mrb[0].mxu0
    %v3444 = vadd.f32 %v2899, %v3443
    %v3445 = vpop.f32.mrb[0].mxu0
    %v3446 = vadd.f32 %v2901, %v3445
    %3447 = vmatprep.mubr.f32.mxu0 0.0
    %3448 = vmatmul.mubr.f32.gmra.mrb[0].mxu0 %v2371
    %v3449 = vpop.f32.mrb[0].mxu0
    %v3450 = vadd.f32 %v2905, %v3449
    %v3451 = vpop.f32.mrb[0].mxu0
    %v3452 = vadd.f32 %v2907, %v3451
    %3453 = vmatprep.mubr.f32.mxu0 0.0
    %3454 = vmatmul.mubr.f32.gmra.mrb[0].mxu0 %v2374
    %v3455 = vpop.f32.mrb[0].mxu0
    %v3456 = vadd.f32 %v2911, %v3455
    %v3457 = vpop.f32.mrb[0].mxu0
    %v3458 = vadd.f32 %v2913, %v3457
    %3459 = vmatprep.mubr.f32.mxu0 0.0
    %3460 = vmatmul.mubr.f32.gmra.mrb[0].mxu0 %v2377
    %v3461 = vpop.f32.mrb[0].mxu0
    %v3462 = vadd.f32 %v2917, %v3461
    %v3463 = vpop.f32.mrb[0].mxu0
    %v3464 = vadd.f32 %v2919, %v3463
    %3465 = vmatprep.mubr.f32.mxu0 0.0
    %3466 = vmatmul.mubr.f32.gmra.mrb[0].mxu0 %v2380
    %v3467 = vpop.f32.mrb[0].mxu0
    %v3468 = vadd.f32 %v2923, %v3467
    %v3469 = vpop.f32.mrb[0].mxu0
    %v3470 = vadd.f32 %v2925, %v3469
    %3471 = vdwg.mxu0
    %v3472 = vmax.f32 %v2994, 0.0
    %v3473 = vmax.f32 %v2996, 0.0
    %v3474 = vmax.f32 %v3000, 0.0
    %v3475 = vmax.f32 %v3002, 0.0
    %v3476 = vmax.f32 %v3006, 0.0
    %v3477 = vmax.f32 %v3008, 0.0
    %v3478 = vmax.f32 %v3012, 0.0
    %v3479 = vmax.f32 %v3014, 0.0
    %v3480 = vmax.f32 %v3018, 0.0
    %v3481 = vmax.f32 %v3020, 0.0
    %v3482 = vmax.f32 %v3024, 0.0
    %v3483 = vmax.f32 %v3026, 0.0
    %v3484 = vmax.f32 %v3030, 0.0
    %v3485 = vmax.f32 %v3032, 0.0
    %v3486 = vmax.f32 %v3036, 0.0
    %v3487 = vmax.f32 %v3038, 0.0
    %v3488 = vmax.f32 %v3042, 0.0
    %v3489 = vmax.f32 %v3044, 0.0
    %v3490 = vmax.f32 %v3048, 0.0
    %v3491 = vmax.f32 %v3050, 0.0
    %v3492 = vmax.f32 %v3054, 0.0
    %v3493 = vmax.f32 %v3056, 0.0
    %v3494 = vmax.f32 %v3060, 0.0
    %v3495 = vmax.f32 %v3062, 0.0
    %v3496 = vmax.f32 %v3066, 0.0
    %v3497 = vmax.f32 %v3068, 0.0
    %v3498 = vmax.f32 %v3072, 0.0
    %v3499 = vmax.f32 %v3074, 0.0
    %v3500 = vmax.f32 %v3078, 0.0
    %v3501 = vmax.f32 %v3080, 0.0
    %v3502 = vmax.f32 %v3084, 0.0
    %v3503 = vmax.f32 %v3086, 0.0
    %v3504 = vmax.f32 %v3090, 0.0
    %v3505 = vmax.f32 %v3092, 0.0
    %v3506 = vmax.f32 %v3096, 0.0
    %v3507 = vmax.f32 %v3098, 0.0
    %v3508 = vmax.f32 %v3102, 0.0
    %v3509 = vmax.f32 %v3104, 0.0
    %v3510 = vmax.f32 %v3108, 0.0
    %v3511 = vmax.f32 %v3110, 0.0
    %v3512 = vmax.f32 %v3114, 0.0
    %v3513 = vmax.f32 %v3116, 0.0
    %v3514 = vmax.f32 %v3120, 0.0
    %v3515 = vmax.f32 %v3122, 0.0
    %v3516 = vmax.f32 %v3126, 0.0
    %v3517 = vmax.f32 %v3128, 0.0
    %v3518 = vmax.f32 %v3132, 0.0
    %v3519 = vmax.f32 %v3134, 0.0
    %v3520 = vmax.f32 %v3138, 0.0
    %v3521 = vmax.f32 %v3140, 0.0
    %v3522 = vmax.f32 %v3144, 0.0
    %v3523 = vmax.f32 %v3146, 0.0
    %v3524 = vmax.f32 %v3150, 0.0
    %v3525 = vmax.f32 %v3152, 0.0
    %v3526 = vmax.f32 %v3156, 0.0
    %v3527 = vmax.f32 %v3158, 0.0
    %v3528 = vmax.f32 %v3162, 0.0
    %v3529 = vmax.f32 %v3164, 0.0
    %v3530 = vmax.f32 %v3168, 0.0
    %v3531 = vmax.f32 %v3170, 0.0
    %v3532 = vmax.f32 %v3174, 0.0
    %v3533 = vmax.f32 %v3176, 0.0
    %v3534 = vmax.f32 %v3180, 0.0
    %v3535 = vmax.f32 %v3182, 0.0
    %v3536 = vmax.f32 %v3186, 0.0
    %v3537 = vmax.f32 %v3188, 0.0
    %v3538 = vmax.f32 %v3192, 0.0
    %v3539 = vmax.f32 %v3194, 0.0
    %v3540 = vmax.f32 %v3198, 0.0
    %v3541 = vmax.f32 %v3200, 0.0
    %v3542 = vmax.f32 %v3204, 0.0
    %v3543 = vmax.f32 %v3206, 0.0
    %v3544 = vmax.f32 %v3210, 0.0
    %v3545 = vmax.f32 %v3212, 0.0
    %v3546 = vmax.f32 %v3216, 0.0
    %v3547 = vmax.f32 %v3218, 0.0
    %v3548 = vmax.f32 %v3222, 0.0
    %v3549 = vmax.f32 %v3224, 0.0
    %v3550 = vmax.f32 %v3228, 0.0
    %v3551 = vmax.f32 %v3230, 0.0
    %v3552 = vmax.f32 %v3234, 0.0
    %v3553 = vmax.f32 %v3236, 0.0
    %v3554 = vmax.f32 %v3240, 0.0
    %v3555 = vmax.f32 %v3242, 0.0
    %v3556 = vmax.f32 %v3246, 0.0
    %v3557 = vmax.f32 %v3248, 0.0
    %v3558 = vmax.f32 %v3252, 0.0
    %v3559 = vmax.f32 %v3254, 0.0
    %v3560 = vmax.f32 %v3258, 0.0
    %v3561 = vmax.f32 %v3260, 0.0
    %v3562 = vmax.f32 %v3264, 0.0
    %v3563 = vmax.f32 %v3266, 0.0
    %v3564 = vmax.f32 %v3270, 0.0
    %v3565 = vmax.f32 %v3272, 0.0
    %v3566 = vmax.f32 %v3276, 0.0
    %v3567 = vmax.f32 %v3278, 0.0
    %v3568 = vmax.f32 %v3282, 0.0
    %v3569 = vmax.f32 %v3284, 0.0
    %v3570 = vmax.f32 %v3288, 0.0
    %v3571 = vmax.f32 %v3290, 0.0
    %v3572 = vmax.f32 %v3294, 0.0
    %v3573 = vmax.f32 %v3296, 0.0
    %v3574 = vmax.f32 %v3300, 0.0
    %v3575 = vmax.f32 %v3302, 0.0
    %v3576 = vmax.f32 %v3306, 0.0
    %v3577 = vmax.f32 %v3308, 0.0
    %v3578 = vmax.f32 %v3312, 0.0
    %v3579 = vmax.f32 %v3314, 0.0
    %v3580 = vmax.f32 %v3318, 0.0
    %v3581 = vmax.f32 %v3320, 0.0
    %v3582 = vmax.f32 %v3324, 0.0
    %v3583 = vmax.f32 %v3326, 0.0
    %v3584 = vmax.f32 %v3330, 0.0
    %v3585 = vmax.f32 %v3332, 0.0
    %v3586 = vmax.f32 %v3336, 0.0
    %v3587 = vmax.f32 %v3338, 0.0
    %v3588 = vmax.f32 %v3342, 0.0
    %v3589 = vmax.f32 %v3344, 0.0
    %v3590 = vmax.f32 %v3348, 0.0
    %v3591 = vmax.f32 %v3350, 0.0
    %v3592 = vmax.f32 %v3354, 0.0
    %v3593 = vmax.f32 %v3356, 0.0
    %v3594 = vmax.f32 %v3360, 0.0
    %v3595 = vmax.f32 %v3362, 0.0
    %v3596 = vmax.f32 %v3366, 0.0
    %v3597 = vmax.f32 %v3368, 0.0
    %v3598 = vmax.f32 %v3372, 0.0
    %v3599 = vmax.f32 %v3374, 0.0
    %v3600 = vmax.f32 %v3378, 0.0
    %v3601 = vmax.f32 %v3380, 0.0
    %v3602 = vmax.f32 %v3384, 0.0
    %v3603 = vmax.f32 %v3386, 0.0
    %v3604 = vmax.f32 %v3390, 0.0
    %v3605 = vmax.f32 %v3392, 0.0
    %v3606 = vmax.f32 %v3396, 0.0
    %v3607 = vmax.f32 %v3398, 0.0
    %v3608 = vmax.f32 %v3402, 0.0
    %v3609 = vmax.f32 %v3404, 0.0
    %v3610 = vmax.f32 %v3408, 0.0
    %v3611 = vmax.f32 %v3410, 0.0
    %v3612 = vmax.f32 %v3414, 0.0
    %v3613 = vmax.f32 %v3416, 0.0
    %v3614 = vmax.f32 %v3420, 0.0
    %v3615 = vmax.f32 %v3422, 0.0
    %v3616 = vmax.f32 %v3426, 0.0
    %v3617 = vmax.f32 %v3428, 0.0
    %v3618 = vmax.f32 %v3432, 0.0
    %v3619 = vmax.f32 %v3434, 0.0
    %v3620 = vmax.f32 %v3438, 0.0
    %v3621 = vmax.f32 %v3440, 0.0
    %v3622 = vmax.f32 %v3444, 0.0
    %v3623 = vmax.f32 %v3446, 0.0
    %v3624 = vmax.f32 %v3450, 0.0
    %v3625 = vmax.f32 %v3452, 0.0
    %v3626 = vmax.f32 %v3456, 0.0
    %v3627 = vmax.f32 %v3458, 0.0
    %v3628 = vmax.f32 %v3462, 0.0
    %v3629 = vmax.f32 %v3464, 0.0
    %v3630 = vmax.f32 %v3468, 0.0
    %v3631 = vmax.f32 %v3470, 0.0
    %v3632 = vld [vmem:[%s7] sm:$0xff]
    %v3633 = vld [vmem:[%s7 + $0x8] sm:$0xff]
    %v3634 = vld [vmem:[%s7 + $0x10] sm:$0xff]
    %v3635 = vld [vmem:[%s7 + $0x18] sm:$0xff]
    %v3636 = vld [vmem:[%s7 + $0x20] sm:$0xff]
    %v3637 = vld [vmem:[%s7 + $0x28] sm:$0xff]
    %v3638 = vld [vmem:[%s7 + $0x30] sm:$0xff]
    %v3639 = vld [vmem:[%s7 + $0x38] sm:$0xff]
    %v3640 = vld [vmem:[%s7 + $0x40] sm:$0xff]
    %v3641 = vld [vmem:[%s7 + $0x48] sm:$0xff]
    %v3642 = vld [vmem:[%s7 + $0x50] sm:$0xff]
    %v3643 = vld [vmem:[%s7 + $0x58] sm:$0xff]
    %v3644 = vld [vmem:[%s7 + $0x60] sm:$0xff]
    %v3645 = vld [vmem:[%s7 + $0x68] sm:$0xff]
    %v3646 = vld [vmem:[%s7 + $0x70] sm:$0xff]
    %v3647 = vld [vmem:[%s7 + $0x78] sm:$0xff]
    %v3648 = vld [vmem:[%s7 + $0x80] sm:$0xff]
    %v3649 = vld [vmem:[%s7 + $0x88] sm:$0xff]
    %v3650 = vld [vmem:[%s7 + $0x90] sm:$0xff]
    %v3651 = vld [vmem:[%s7 + $0x98] sm:$0xff]
    %v3652 = vld [vmem:[%s8] sm:$0xff]
    %v3653 = vld [vmem:[%s8 + $0x8] sm:$0xff]
    %v3654 = vld [vmem:[%s8 + $0x10] sm:$0xff]
    %v3655 = vld [vmem:[%s8 + $0x18] sm:$0xff]
    %3657 = vset.pattern.permute.xlu0 0
    %3658 = vperm.xlu0 %3657, %v3652
    %v3659 = vpop.permute.xlu0 %3658
    %3662 = vset.pattern.permute.xlu0 0
    %3663 = vperm.xlu0 %3662, %v3653
    %v3664 = vpop.permute.xlu0 %3663
    %3667 = vset.pattern.permute.xlu0 0
    %3668 = vperm.xlu0 %3667, %v3654
    %v3669 = vpop.permute.xlu0 %3668
    %3672 = vset.pattern.permute.xlu0 0
    %3673 = vperm.xlu0 %3672, %v3655
    %v3674 = vpop.permute.xlu0 %3673
    %3676 = vmatprep.subr.mxu0 %v3473
    %3677 = vmatpush1.msra.mxu0 %v3472
    %3678 = vmatprep.subr.mxu0 %v3475
    %3679 = vmatpush1.msra.mxu0 %v3474
    %3680 = vmatprep.subr.mxu0 %v3477
    %3681 = vmatpush1.msra.mxu0 %v3476
    %3682 = vmatprep.subr.mxu0 %v3479
    %3683 = vmatpush1.msra.mxu0 %v3478
    %3684 = vmatprep.subr.mxu0 %v3481
    %3685 = vmatpush1.msra.mxu0 %v3480
    %3686 = vmatprep.subr.mxu0 %v3483
    %3687 = vmatpush1.msra.mxu0 %v3482
    %3688 = vmatprep.subr.mxu0 %v3485
    %3689 = vmatpush1.msra.mxu0 %v3484
    %3690 = vmatprep.subr.mxu0 %v3487
    %3691 = vmatpush1.msra.mxu0 %v3486
    %3692 = vmatprep.subr.mxu0 %v3489
    %3693 = vmatpush1.msra.mxu0 %v3488
    %3694 = vmatprep.subr.mxu0 %v3491
    %3695 = vmatpush1.msra.mxu0 %v3490
    %3696 = vmatprep.subr.mxu0 %v3493
    %3697 = vmatpush1.msra.mxu0 %v3492
    %3698 = vmatprep.subr.mxu0 %v3495
    %3699 = vmatpush1.msra.mxu0 %v3494
    %3700 = vmatprep.subr.mxu0 %v3497
    %3701 = vmatpush1.msra.mxu0 %v3496
    %3702 = vmatprep.subr.mxu0 %v3499
    %3703 = vmatpush1.msra.mxu0 %v3498
    %3704 = vmatprep.subr.mxu0 %v3501
    %3705 = vmatpush1.msra.mxu0 %v3500
    %3706 = vmatprep.subr.mxu0 %v3503
    %3707 = vmatpush1.msra.mxu0 %v3502
    %3708 = vmatprep.subr.mxu0 %v3505
    %3709 = vmatpush1.msra.mxu0 %v3504
    %3710 = vmatprep.subr.mxu0 %v3507
    %3711 = vmatpush1.msra.mxu0 %v3506
    %3712 = vmatprep.subr.mxu0 %v3509
    %3713 = vmatpush1.msra.mxu0 %v3508
    %3714 = vmatprep.subr.mxu0 %v3511
    %3715 = vmatpush1.msra.mxu0 %v3510
    %3716 = vmatprep.subr.mxu0 %v3513
    %3717 = vmatpush1.msra.mxu0 %v3512
    %3718 = vmatprep.subr.mxu0 %v3515
    %3719 = vmatpush1.msra.mxu0 %v3514
    %3720 = vmatprep.subr.mxu0 %v3517
    %3721 = vmatpush1.msra.mxu0 %v3516
    %3722 = vmatprep.subr.mxu0 %v3519
    %3723 = vmatpush1.msra.mxu0 %v3518
    %3724 = vmatprep.subr.mxu0 %v3521
    %3725 = vmatpush1.msra.mxu0 %v3520
    %3726 = vmatprep.subr.mxu0 %v3523
    %3727 = vmatpush1.msra.mxu0 %v3522
    %3728 = vmatprep.subr.mxu0 %v3525
    %3729 = vmatpush1.msra.mxu0 %v3524
    %3730 = vmatprep.subr.mxu0 %v3527
    %3731 = vmatpush1.msra.mxu0 %v3526
    %3732 = vmatprep.subr.mxu0 %v3529
    %3733 = vmatpush1.msra.mxu0 %v3528
    %3734 = vmatprep.subr.mxu0 %v3531
    %3735 = vmatpush1.msra.mxu0 %v3530
    %3736 = vmatprep.subr.mxu0 %v3533
    %3737 = vmatpush1.msra.mxu0 %v3532
    %3738 = vmatprep.subr.mxu0 %v3535
    %3739 = vmatpush1.msra.mxu0 %v3534
    %3740 = vmatprep.mubr.f32.mxu0 %v3633
    %3741 = vmatmul.mubr.f32.gmra.mrb[0].mxu0 %v3632
    %v3742 = vpop.f32.mrb[0].mxu0
    %v3743 = vadd.f32 %v3659, %v3742
    %v3744 = vpop.f32.mrb[0].mxu0
    %v3745 = vadd.f32 %v3659, %v3744
    %3746 = vmatprep.mubr.f32.mxu0 %v3638
    %3747 = vmatmul.mubr.f32.gmra.mrb[0].mxu0 %v3637
    %v3748 = vpop.f32.mrb[0].mxu0
    %v3749 = vadd.f32 %v3664, %v3748
    %v3750 = vpop.f32.mrb[0].mxu0
    %v3751 = vadd.f32 %v3664, %v3750
    %3752 = vmatprep.mubr.f32.mxu0 %v3643
    %3753 = vmatmul.mubr.f32.gmra.mrb[0].mxu0 %v3642
    %v3754 = vpop.f32.mrb[0].mxu0
    %v3755 = vadd.f32 %v3669, %v3754
    %v3756 = vpop.f32.mrb[0].mxu0
    %v3757 = vadd.f32 %v3669, %v3756
    %3758 = vmatprep.mubr.f32.mxu0 %v3648
    %3759 = vmatmul.mubr.f32.gmra.mrb[0].mxu0 %v3647
    %v3760 = vpop.f32.mrb[0].mxu0
    %v3761 = vadd.f32 %v3674, %v3760
    %v3762 = vpop.f32.mrb[0].mxu0
    %v3763 = vadd.f32 %v3674, %v3762
    %3764 = vdwg.mxu0
    %3765 = vmatprep.subr.mxu0 %v3537
    %3766 = vmatpush1.msra.mxu0 %v3536
    %3767 = vmatprep.subr.mxu0 %v3539
    %3768 = vmatpush1.msra.mxu0 %v3538
    %3769 = vmatprep.subr.mxu0 %v3541
    %3770 = vmatpush1.msra.mxu0 %v3540
    %3771 = vmatprep.subr.mxu0 %v3543
    %3772 = vmatpush1.msra.mxu0 %v3542
    %3773 = vmatprep.subr.mxu0 %v3545
    %3774 = vmatpush1.msra.mxu0 %v3544
    %3775 = vmatprep.subr.mxu0 %v3547
    %3776 = vmatpush1.msra.mxu0 %v3546
    %3777 = vmatprep.subr.mxu0 %v3549
    %3778 = vmatpush1.msra.mxu0 %v3548
    %3779 = vmatprep.subr.mxu0 %v3551
    %3780 = vmatpush1.msra.mxu0 %v3550
    %3781 = vmatprep.subr.mxu0 %v3553
    %3782 = vmatpush1.msra.mxu0 %v3552
    %3783 = vmatprep.subr.mxu0 %v3555
    %3784 = vmatpush1.msra.mxu0 %v3554
    %3785 = vmatprep.subr.mxu0 %v3557
    %3786 = vmatpush1.msra.mxu0 %v3556
    %3787 = vmatprep.subr.mxu0 %v3559
    %3788 = vmatpush1.msra.mxu0 %v3558
    %3789 = vmatprep.subr.mxu0 %v3561
    %3790 = vmatpush1.msra.mxu0 %v3560
    %3791 = vmatprep.subr.mxu0 %v3563
    %3792 = vmatpush1.msra.mxu0 %v3562
    %3793 = vmatprep.subr.mxu0 %v3565
    %3794 = vmatpush1.msra.mxu0 %v3564
    %3795 = vmatprep.subr.mxu0 %v3567
    %3796 = vmatpush1.msra.mxu0 %v3566
    %3797 = vmatprep.subr.mxu0 %v3569
    %3798 = vmatpush1.msra.mxu0 %v3568
    %3799 = vmatprep.subr.mxu0 %v3571
    %3800 = vmatpush1.msra.mxu0 %v3570
    %3801 = vmatprep.subr.mxu0 %v3573
    %3802 = vmatpush1.msra.mxu0 %v3572
    %3803 = vmatprep.subr.mxu0 %v3575
    %3804 = vmatpush1.msra.mxu0 %v3574
    %3805 = vmatprep.subr.mxu0 %v3577
    %3806 = vmatpush1.msra.mxu0 %v3576
    %3807 = vmatprep.subr.mxu0 %v3579
    %3808 = vmatpush1.msra.mxu0 %v3578
    %3809 = vmatprep.subr.mxu0 %v3581
    %3810 = vmatpush1.msra.mxu0 %v3580
    %3811 = vmatprep.subr.mxu0 %v3583
    %3812 = vmatpush1.msra.mxu0 %v3582
    %3813 = vmatprep.subr.mxu0 %v3585
    %3814 = vmatpush1.msra.mxu0 %v3584
    %3815 = vmatprep.subr.mxu0 %v3587
    %3816 = vmatpush1.msra.mxu0 %v3586
    %3817 = vmatprep.subr.mxu0 %v3589
    %3818 = vmatpush1.msra.mxu0 %v3588
    %3819 = vmatprep.subr.mxu0 %v3591
    %3820 = vmatpush1.msra.mxu0 %v3590
    %3821 = vmatprep.subr.mxu0 %v3593
    %3822 = vmatpush1.msra.mxu0 %v3592
    %3823 = vmatprep.subr.mxu0 %v3595
    %3824 = vmatpush1.msra.mxu0 %v3594
    %3825 = vmatprep.subr.mxu0 %v3597
    %3826 = vmatpush1.msra.mxu0 %v3596
    %3827 = vmatprep.subr.mxu0 %v3599
    %3828 = vmatpush1.msra.mxu0 %v3598
    %3829 = vmatprep.mubr.f32.mxu0 %v3635
    %3830 = vmatmul.mubr.f32.gmra.mrb[0].mxu0 %v3634
    %v3831 = vpop.f32.mrb[0].mxu0
    %v3832 = vadd.f32 %v3743, %v3831
    %v3833 = vpop.f32.mrb[0].mxu0
    %v3834 = vadd.f32 %v3745, %v3833
    %3835 = vmatprep.mubr.f32.mxu0 %v3640
    %3836 = vmatmul.mubr.f32.gmra.mrb[0].mxu0 %v3639
    %v3837 = vpop.f32.mrb[0].mxu0
    %v3838 = vadd.f32 %v3749, %v3837
    %v3839 = vpop.f32.mrb[0].mxu0
    %v3840 = vadd.f32 %v3751, %v3839
    %3841 = vmatprep.mubr.f32.mxu0 %v3645
    %3842 = vmatmul.mubr.f32.gmra.mrb[0].mxu0 %v3644
    %v3843 = vpop.f32.mrb[0].mxu0
    %v3844 = vadd.f32 %v3755, %v3843
    %v3845 = vpop.f32.mrb[0].mxu0
    %v3846 = vadd.f32 %v3757, %v3845
    %3847 = vmatprep.mubr.f32.mxu0 %v3650
    %3848 = vmatmul.mubr.f32.gmra.mrb[0].mxu0 %v3649
    %v3849 = vpop.f32.mrb[0].mxu0
    %v3850 = vadd.f32 %v3761, %v3849
    %v3851 = vpop.f32.mrb[0].mxu0
    %v3852 = vadd.f32 %v3763, %v3851
    %3853 = vdwg.mxu0
    %3854 = vmatprep.subr.mxu0 %v3601
    %3855 = vmatpush1.msra.mxu0 %v3600
    %3856 = vmatprep.subr.mxu0 %v3603
    %3857 = vmatpush1.msra.mxu0 %v3602
    %3858 = vmatprep.subr.mxu0 %v3605
    %3859 = vmatpush1.msra.mxu0 %v3604
    %3860 = vmatprep.subr.mxu0 %v3607
    %3861 = vmatpush1.msra.mxu0 %v3606
    %3862 = vmatprep.subr.mxu0 %v3609
    %3863 = vmatpush1.msra.mxu0 %v3608
    %3864 = vmatprep.subr.mxu0 %v3611
    %3865 = vmatpush1.msra.mxu0 %v3610
    %3866 = vmatprep.subr.mxu0 %v3613
    %3867 = vmatpush1.msra.mxu0 %v3612
    %3868 = vmatprep.subr.mxu0 %v3615
    %3869 = vmatpush1.msra.mxu0 %v3614
    %3870 = vmatprep.subr.mxu0 %v3617
    %3871 = vmatpush1.msra.mxu0 %v3616
    %3872 = vmatprep.subr.mxu0 %v3619
    %3873 = vmatpush1.msra.mxu0 %v3618
    %3874 = vmatprep.subr.mxu0 %v3621
    %3875 = vmatpush1.msra.mxu0 %v3620
    %3876 = vmatprep.subr.mxu0 %v3623
    %3877 = vmatpush1.msra.mxu0 %v3622
    %3878 = vmatprep.subr.mxu0 %v3625
    %3879 = vmatpush1.msra.mxu0 %v3624
    %3880 = vmatprep.subr.mxu0 %v3627
    %3881 = vmatpush1.msra.mxu0 %v3626
    %3882 = vmatprep.subr.mxu0 %v3629
    %3883 = vmatpush1.msra.mxu0 %v3628
    %3884 = vmatprep.subr.mxu0 %v3631
    %3885 = vmatpush1.msra.mxu0 %v3630
    %3886 = vmatprep.subr.mxu0 0.0
    %3887 = vmatpush1.msra.mxu0 0.0
    %3888 = vmatprep.subr.mxu0 0.0
    %3889 = vmatpush1.msra.mxu0 0.0
    %3890 = vmatprep.subr.mxu0 0.0
    %3891 = vmatpush1.msra.mxu0 0.0
    %3892 = vmatprep.subr.mxu0 0.0
    %3893 = vmatpush1.msra.mxu0 0.0
    %3894 = vmatprep.subr.mxu0 0.0
    %3895 = vmatpush1.msra.mxu0 0.0
    %3896 = vmatprep.subr.mxu0 0.0
    %3897 = vmatpush1.msra.mxu0 0.0
    %3898 = vmatprep.subr.mxu0 0.0
    %3899 = vmatpush1.msra.mxu0 0.0
    %3900 = vmatprep.subr.mxu0 0.0
    %3901 = vmatpush1.msra.mxu0 0.0
    %3902 = vmatprep.subr.mxu0 0.0
    %3903 = vmatpush1.msra.mxu0 0.0
    %3904 = vmatprep.subr.mxu0 0.0
    %3905 = vmatpush1.msra.mxu0 0.0
    %3906 = vmatprep.subr.mxu0 0.0
    %3907 = vmatpush1.msra.mxu0 0.0
    %3908 = vmatprep.subr.mxu0 0.0
    %3909 = vmatpush1.msra.mxu0 0.0
    %3910 = vmatprep.subr.mxu0 0.0
    %3911 = vmatpush1.msra.mxu0 0.0
    %3912 = vmatprep.subr.mxu0 0.0
    %3913 = vmatpush1.msra.mxu0 0.0
    %3914 = vmatprep.subr.mxu0 0.0
    %3915 = vmatpush1.msra.mxu0 0.0
    %3916 = vmatprep.subr.mxu0 0.0
    %3917 = vmatpush1.msra.mxu0 0.0
    %3918 = vmatprep.mubr.f32.mxu0 0.0
    %3919 = vmatmul.mubr.f32.gmra.mrb[0].mxu0 %v3636
    %v3920 = vpop.f32.mrb[0].mxu0
    %v3921 = vadd.f32 %v3832, %v3920
    %v3922 = vpop.f32.mrb[0].mxu0
    %v3923 = vadd.f32 %v3834, %v3922
    %3924 = vmatprep.mubr.f32.mxu0 0.0
    %3925 = vmatmul.mubr.f32.gmra.mrb[0].mxu0 %v3641
    %v3926 = vpop.f32.mrb[0].mxu0
    %v3927 = vadd.f32 %v3838, %v3926
    %v3928 = vpop.f32.mrb[0].mxu0
    %v3929 = vadd.f32 %v3840, %v3928
    %3930 = vmatprep.mubr.f32.mxu0 0.0
    %3931 = vmatmul.mubr.f32.gmra.mrb[0].mxu0 %v3646
    %v3932 = vpop.f32.mrb[0].mxu0
    %v3933 = vadd.f32 %v3844, %v3932
    %v3934 = vpop.f32.mrb[0].mxu0
    %v3935 = vadd.f32 %v3846, %v3934
    %3936 = vmatprep.mubr.f32.mxu0 0.0
    %3937 = vmatmul.mubr.f32.gmra.mrb[0].mxu0 %v3651
    %v3938 = vpop.f32.mrb[0].mxu0
    %v3939 = vadd.f32 %v3850, %v3938
    %v3940 = vpop.f32.mrb[0].mxu0
    %v3941 = vadd.f32 %v3852, %v3940
    %3942 = vdwg.mxu0
    %v3943 = vmax.f32 %v3921, 0.0
    %v3944 = vmax.f32 %v3923, 0.0
    %v3945 = vmax.f32 %v3927, 0.0
    %v3946 = vmax.f32 %v3929, 0.0
    %v3947 = vmax.f32 %v3933, 0.0
    %v3948 = vmax.f32 %v3935, 0.0
    %v3949 = vmax.f32 %v3939, 0.0
    %v3950 = vmax.f32 %v3941, 0.0
    %v3951 = vld [vmem:[%s9] sm:$0x1]
    %v3952 = vld [vmem:[#allocation2] sm:$0x1]
    %3954 = vset.pattern.permute.xlu0 0
    %3955 = vperm.xlu0 %3954, %v3952
    %v3956 = vpop.permute.xlu0 %3955
    %v3958 = vlaneseq
    %v3959 = vshrl.u32 %v3958, 7
    %v3960 = vsub.s32 0, %v3959
    %v3961 = vrot.slane %v3956, %v3960
    %v3963 = vsel %vm915, %v3951, 0
    %3965 = vmatprep.subr.mxu0 %v3944
    %3966 = vmatpush1.msra.mxu0 %v3943
    %3967 = vmatprep.subr.mxu0 %v3946
    %3968 = vmatpush1.msra.mxu0 %v3945
    %3969 = vmatprep.subr.mxu0 %v3948
    %3970 = vmatpush1.msra.mxu0 %v3947
    %3971 = vmatprep.subr.mxu0 %v3950
    %3972 = vmatpush1.msra.mxu0 %v3949
    %3973 = vmatprep.subr.mxu0 0.0
    %3974 = vmatpush1.msra.mxu0 0.0
    %3975 = vmatprep.subr.mxu0 0.0
    %3976 = vmatpush1.msra.mxu0 0.0
    %3977 = vmatprep.subr.mxu0 0.0
    %3978 = vmatpush1.msra.mxu0 0.0
    %3979 = vmatprep.subr.mxu0 0.0
    %3980 = vmatpush1.msra.mxu0 0.0
    %3981 = vmatprep.subr.mxu0 0.0
    %3982 = vmatpush1.msra.mxu0 0.0
    %3983 = vmatprep.subr.mxu0 0.0
    %3984 = vmatpush1.msra.mxu0 0.0
    %3985 = vmatprep.subr.mxu0 0.0
    %3986 = vmatpush1.msra.mxu0 0.0
    %3987 = vmatprep.subr.mxu0 0.0
    %3988 = vmatpush1.msra.mxu0 0.0
    %3989 = vmatprep.subr.mxu0 0.0
    %3990 = vmatpush1.msra.mxu0 0.0
    %3991 = vmatprep.subr.mxu0 0.0
    %3992 = vmatpush1.msra.mxu0 0.0
    %3993 = vmatprep.subr.mxu0 0.0
    %3994 = vmatpush1.msra.mxu0 0.0
    %3995 = vmatprep.subr.mxu0 0.0
    %3996 = vmatpush1.msra.mxu0 0.0
    %3997 = vmatprep.subr.mxu0 0.0
    %3998 = vmatpush1.msra.mxu0 0.0
    %3999 = vmatprep.subr.mxu0 0.0
    %4000 = vmatpush1.msra.mxu0 0.0
    %4001 = vmatprep.subr.mxu0 0.0
    %4002 = vmatpush1.msra.mxu0 0.0
    %4003 = vmatprep.subr.mxu0 0.0
    %4004 = vmatpush1.msra.mxu0 0.0
    %4005 = vmatprep.subr.mxu0 0.0
    %4006 = vmatpush1.msra.mxu0 0.0
    %4007 = vmatprep.subr.mxu0 0.0
    %4008 = vmatpush1.msra.mxu0 0.0
    %4009 = vmatprep.subr.mxu0 0.0
    %4010 = vmatpush1.msra.mxu0 0.0
    %4011 = vmatprep.subr.mxu0 0.0
    %4012 = vmatpush1.msra.mxu0 0.0
    %4013 = vmatprep.subr.mxu0 0.0
    %4014 = vmatpush1.msra.mxu0 0.0
    %4015 = vmatprep.subr.mxu0 0.0
    %4016 = vmatpush1.msra.mxu0 0.0
    %4017 = vmatprep.subr.mxu0 0.0
    %4018 = vmatpush1.msra.mxu0 0.0
    %4019 = vmatprep.subr.mxu0 0.0
    %4020 = vmatpush1.msra.mxu0 0.0
    %4021 = vmatprep.subr.mxu0 0.0
    %4022 = vmatpush1.msra.mxu0 0.0
    %4023 = vmatprep.subr.mxu0 0.0
    %4024 = vmatpush1.msra.mxu0 0.0
    %4025 = vmatprep.subr.mxu0 0.0
    %4026 = vmatpush1.msra.mxu0 0.0
    %4027 = vmatprep.subr.mxu0 0.0
    %4028 = vmatpush1.msra.mxu0 0.0
    %4029 = vmatprep.mubr.f32.mxu0 0.0
    %4030 = vmatmul.mubr.f32.gmra.mrb[0].mxu0 %v3963
    %v4031 = vpop.f32.mrb[0].mxu0
    %v4032 = vadd.f32 %v3961, %v4031
    %v4033 = vpop.f32.mrb[0].mxu0
    %v4034 = vadd.f32 %v3961, %v4033
    %4035 = vdwg.mxu0
    %v4038 = vcombine.low %v4032, %v4034
    %v4040 = vunpack.c.l.s4 1966171168
    %v4041 = vunpack.c.0.s8 %v4040
    %v4042 = vlaneseq
    %v4043 = vshrl.u32 %v4042, 7
    %v4044 = vsub.s32 %v4041, %v4043
    %v4045 = vrot.slane %v4038, %v4044
    %v4047 = vunpack.c.l.s4 1966171168
    %v4048 = vunpack.c.0.s8 %v4047
    %v4049 = vlaneseq
    %v4050 = vshrl.u32 %v4049, 7
    %v4051 = vsub.s32 %v4048, %v4050
    %v4052 = vrot.slane %v4045, %v4051
    %v4054 = vlaneseq
    %vm4055 = vcmp.ge.s32.totalorder %v4054, 0
    %vm4056 = vcmp.lt.s32.totalorder %v4054, 256
    %vm4057 = vmand %vm4055, %vm4056
    %4058 = vst.msk [vmem:[#allocation3] sm:$0x3] %vm4057, %v4052
    // Predicated region
    $region46: #{tpu_custom_call.1} parent=1 // pred_check
      _
    $region47: #{tpu_custom_call.1} parent=1 // pred_check_branch
      %4060 = sbr.rel (0) target = $region49
    $region48: #{tpu_custom_call.1} parent=1 // pred_region
      %s4062 = ssub.s32 32, 32
      %4063 = vsyncadd [#allocation4], %s4062
      %s4065 = sshll.u32 [#allocation3], 4
      %s4066 = int_to_ptr.vmem [resolvable:$true] %s4065
      %4068 = dma.vmem_to_hbm [thread:$0]  %s4066, 32, %s11, [#allocation4]
    $region49: #{tpu_custom_call.1} parent=1 // pred_fallthru
      _
    // Predicated region
    $region50: #{tpu_custom_call.1} parent=1 // pred_check
      _
    $region51: #{tpu_custom_call.1} parent=1 // pred_check_branch
      %4070 = sbr.rel (0) target = $region53
    $region52: #{tpu_custom_call.1} parent=1 // pred_region
      %4071 = dma.done [#allocation4], 32
    $region53: #{tpu_custom_call.1} parent=1 // pred_fallthru
      _
    %4072 = vsyncpa [#allocation4], 1

</llo_original>
